<compile_context>
chip_gen: v7x
topology: tpu7x:2x2x1
jax: 0.10.0
libtpu: 0.0.40
codegen_flags: <defaults>
</compile_context>

<pallas_src>
import functools

import jax
import jax.numpy as jnp
from jax import lax
from jax.experimental import pallas as pl
from jax.experimental.pallas import tpu as pltpu

EPS = 1e-12           # torch.nn.functional.normalize default eps
EPS_SQ = EPS * EPS


def _foreach_image(bt, body):
    """Static unroll for small bt; fori_loop(unroll=True) bounds live ranges
    (vreg/VMEM-temp pressure) when bt is large."""
    if bt <= 4:
        for b in range(bt):
            body(b)
    else:
        def _step(b, carry):
            body(b)
            return carry
        lax.fori_loop(0, bt, _step, 0, unroll=True)


def _netvlad_kernel(x_ref, w_ref, b_ref, c_ref, o_ref, acc_ref, s_ref,
                    *, mm_dtype, n_total, tn, ragged):
    # x_ref : (bt, C, tn)  native dtype (f32 or bf16; NOT pre-cast in wrapper)
    # w_ref : (K, C)  mm_dtype (pre-cast once in wrapper)
    # b_ref : (K, 1)  f32      c_ref: (K, C) f32
    # o_ref : (bt, K, C) f32
    # acc_ref: (bt, C, K) f32  sum_n (a*inv_norm)[k,n] * x[c,n]
    # s_ref : (bt, K, 1) f32  sum_n a[k,n]
    j = pl.program_id(1)
    bt, C, _ = x_ref.shape
    K = w_ref.shape[0]

    @pl.when(j == 0)
    def _init():
        acc_ref[...] = jnp.zeros_like(acc_ref)
        s_ref[...] = jnp.zeros_like(s_ref)

    # Hoisted out of the per-image loop (JAX does not CSE broadcast_in_dim).
    w_mm = w_ref[...]                                       # (K, C) mm_dtype
    bias_bc = jnp.broadcast_to(b_ref[...], (K, tn))         # (K, tn) f32

    if ragged:
        lane = lax.broadcasted_iota(jnp.int32, (1, tn), 1)
        valid = (j * tn + lane) < n_total                   # (1, tn) bool
    else:
        valid = None

    def per_image(b):
        x = x_ref[b]                                        # (C, tn)
        if ragged:
            # Zero padded lanes so they contribute nothing to lane reductions
            # or the tn-contraction below (and never produce inf/nan).
            x = jnp.where(valid, x, 0)
        x_f32 = x.astype(jnp.float32)

        # Per-pixel inverse L2 norm; the scale is applied on the (K, tn) side
        # of both matmuls instead of materializing a normalized (C, tn) copy.
        ssq = jnp.sum(x_f32 * x_f32, axis=0, keepdims=True)            # (1,tn)
        inv_norm = lax.rsqrt(jnp.maximum(ssq, EPS_SQ))                 # (1,tn)

        # In-kernel cast only (no extra HBM pass over x in the wrapper).
        x_mm = x if x.dtype == mm_dtype else x.astype(mm_dtype)        # (C,tn)

        # 1x1-conv logits: (K,C) @ (C,tn) -- natural MXU orientation.
        raw = lax.dot_general(w_mm, x_mm, (((1,), (0,)), ((), ())),
                              preferred_element_type=jnp.float32)      # (K,tn)
        logits = raw * inv_norm + bias_bc

        # Softmax over clusters (axis 0); EUP approx reciprocal for the denom.
        m = jnp.max(logits, axis=0, keepdims=True)                     # (1,tn)
        e = jnp.exp(logits - m)                                        # (K,tn)
        denom = jnp.sum(e, axis=0, keepdims=True)                      # (1,tn)
        a = e * pl.reciprocal(denom, approx=True)                      # (K,tn)
        if ragged:
            a = jnp.where(valid, a, 0.0)

        # Assignment mass per cluster.
        s_ref[b] += jnp.sum(a, axis=1, keepdims=True)                  # (K,1)

        # Accumulate sum_n (a*inv_norm)[k,n] * x[c,n] as a (C, K) block: the
        # large (C, tn) operand stays un-transposed; only the ~4x smaller
        # (K, tn) operand ends up on the transposed side of the MXU.
        # (On v7x this += should map to the MRB in-place accumulate.)
        a_scaled = (a * inv_norm).astype(mm_dtype)                     # (K,tn)
        acc_ref[b] += lax.dot_general(
            x_mm, a_scaled, (((1,), (1,)), ((), ())),
            preferred_element_type=jnp.float32)                        # (C,K)

    _foreach_image(bt, per_image)

    @pl.when(j == pl.num_programs(1) - 1)
    def _finalize():
        cent = c_ref[...]                                              # (K,C)

        def finalize_image(b):
            # One small (C,K)->(K,C) transpose per image (not per N tile).
            vlad = jnp.transpose(acc_ref[b]) - cent * s_ref[b]         # (K,C)
            # Intra-normalization over C.
            vn = jnp.sum(vlad * vlad, axis=1, keepdims=True)           # (K,1)
            vlad = vlad * lax.rsqrt(jnp.maximum(vn, EPS_SQ))
            # Global L2 normalization over the flattened (K*C,) descriptor.
            gn = jnp.sum(vlad * vlad, keepdims=True)                   # (1,1)
            vlad = vlad * lax.rsqrt(jnp.maximum(gn, EPS_SQ))
            # TODO(synk): when C % 128 != 0, write a lane-dense (bt, K*C)
            # block instead (masked vst otherwise); at C=128 already dense.
            o_ref[b] = vlad.astype(o_ref.dtype)

        _foreach_image(bt, finalize_image)


def _device_hints():
    """(is_v5_class, has_two_tensorcores) -- best-effort, safe fallback."""
    kind = ""
    try:
        kind = jax.devices()[0].device_kind.lower()
    except Exception:
        pass
    is_v5 = "v5" in kind
    multi_tc = "v7" in kind
    return is_v5, multi_tc


def _pick_n_tile(n, *, cap=2048):
    """Full N when small; otherwise a 128-aligned tile <= cap.  A non-divisor
    tile (ragged last block) is allowed -- the kernel masks padded lanes."""
    if n <= cap:
        return n                            # full extent (legal per block rules)
    best = cap - cap % 128
    for tile in range(best, 127, -128):
        if n % tile == 0:
            return tile                     # aligned divisor: no masking needed
    return best                             # ragged last tile, masked in-kernel


def _pick_batch_tile(batch, rows_per_step, *, target_rows=256,
                     min_parallel_steps=1):
    """Images per grid step: amortize the ~600-cycle/step overhead.  Only keep
    >= 2 parallel steps when the chip actually has 2 TensorCores (v7x)."""
    divs = [d for d in range(1, batch + 1) if batch % d == 0]
    bt = next((d for d in divs if d * rows_per_step >= target_rows), divs[-1])
    while bt > 1 and batch // bt < min_parallel_steps:
        bt = max(d for d in divs if d < bt)
    return bt


def _vmem_bytes(bt, C, tn, K, x_itemsize, w_itemsize):
    """Rough double-buffered working-set estimate (lane-padded)."""
    pad = lambda v: -(-v // 128) * 128
    x_blk = 2 * bt * C * pad(tn) * x_itemsize            # input, 2 buffers
    out_blk = 2 * bt * K * pad(C) * 4                    # output, 2 buffers
    consts = 2 * (K * pad(C) * (w_itemsize + 4) + K * 128 * 4)
    scratch = bt * C * pad(K) * 4 + bt * K * 128 * 4
    return x_blk + out_blk + consts + scratch


def netvlad_forward(x_nchw, conv_w, conv_b, centroids, *,
                    use_bf16_matmul=None, batch_tile=None, n_tile=None,
                    x_buffers=2):
    """x_nchw: (B, C, H, W);  conv_w: (K, C);  conv_b: (K,);  centroids: (K, C)."""
    B, C, H, W = x_nchw.shape
    K = conv_w.shape[0]
    N = H * W

    is_v5, multi_tc = _device_hints()
    if use_bf16_matmul is None:
        use_bf16_matmul = is_v5             # v5 MXU is bf16-native; f32 is multi-pass
    mm_dtype = jnp.bfloat16 if use_bf16_matmul else jnp.float32

    # (B, C, H, W) -> (B, C, N): contiguous reshape only.  No transpose and no
    # dtype cast here -- a wrapper cast would be an extra full HBM pass over x.
    x = x_nchw.reshape(B, C, N)

    tn = n_tile if n_tile is not None else _pick_n_tile(N)
    if tn != N:
        assert tn % 128 == 0, "tiled N blocks must be lane-aligned (128)"
    ragged = (N % tn) != 0
    n_steps = pl.cdiv(N, tn)

    bt = batch_tile if batch_tile is not None else _pick_batch_tile(
        B, tn, min_parallel_steps=2 if multi_tc else 1)
    assert B % bt == 0

    # Respect the tighter v7x VMEM (64 MiB physical): trim bt if needed and set
    # an explicit scoped-VMEM limit with headroom.
    x_isz = jnp.dtype(x.dtype).itemsize
    w_isz = jnp.dtype(mm_dtype).itemsize
    budget = 40 * 1024 * 1024
    while bt > 1 and _vmem_bytes(bt, C, tn, K, x_isz, w_isz) > budget:
        bt = max(d for d in range(1, bt) if B % d == 0)
    est = _vmem_bytes(bt, C, tn, K, x_isz, w_isz)
    vmem_limit = int(min(max(32 * 1024 * 1024, 2 * est), 64 * 1024 * 1024))

    # Tiny constants: pre-cast once in the wrapper (no per-grid-step cast DMA).
    w = conv_w.astype(mm_dtype)
    bias = conv_b.reshape(K, 1).astype(jnp.float32)
    cent = centroids.astype(jnp.float32)

    kernel = functools.partial(
        _netvlad_kernel, mm_dtype=mm_dtype, n_total=N, tn=tn, ragged=ragged)

    x_idx = lambda i, j: (i, 0, j)
    if x_buffers is not None and x_buffers != 2:
        # Optional deeper pipelining if profiling shows exposed x DMA waits.
        x_spec = pl.BlockSpec((bt, C, tn), x_idx,
                              pipeline_mode=pl.Buffered(x_buffers))
    else:
        x_spec = pl.BlockSpec((bt, C, tn), x_idx)

    out = pl.pallas_call(
        kernel,
        out_shape=jax.ShapeDtypeStruct((B, K, C), jnp.float32),
        grid=(B // bt, n_steps),
        in_specs=[
            x_spec,                                          # features (B,C,N)
            pl.BlockSpec((K, C), lambda i, j: (0, 0)),       # conv weight
            pl.BlockSpec((K, 1), lambda i, j: (0, 0)),       # conv bias
            pl.BlockSpec((K, C), lambda i, j: (0, 0)),       # centroids
        ],
        out_specs=pl.BlockSpec((bt, K, C), lambda i, j: (i, 0, 0)),
        scratch_shapes=[
            pltpu.VMEM((bt, C, K), jnp.float32),   # sum_n (a*inv)[k,n]*x[c,n]
            pltpu.VMEM((bt, K, 1), jnp.float32),   # sum_n a[k,n]
        ],
        compiler_params=pltpu.CompilerParams(
            dimension_semantics=("parallel", "arbitrary"),
            vmem_limit_bytes=vmem_limit),
    )(x, w, bias, cent)

    # (B, K, C) -> (B, K*C): matches torch .view(B, -1); free reshape in XLA.
    return out.reshape(B, K * C)


def netvlad_reference(x_nchw, conv_w, conv_b, centroids):
    """Pure-JAX reference mirroring the PyTorch forward, for validation."""
    B, C, H, W = x_nchw.shape
    K = conv_w.shape[0]
    N = H * W
    x = x_nchw.astype(jnp.float32)
    xn = x / jnp.maximum(jnp.sqrt(jnp.sum(x * x, axis=1, keepdims=True)), EPS)
    logits = jnp.einsum('bchw,kc->bkhw', xn, conv_w) + conv_b[None, :, None, None]
    logits = logits.reshape(B, K, N)
    a = jax.nn.softmax(logits, axis=1)                        # (B, K, N)
    xf = xn.reshape(B, C, N)                                  # (B, C, N)
    resid = xf[:, None, :, :] - centroids[None, :, :, None]   # (B, K, C, N)
    vlad = jnp.sum(resid * a[:, :, None, :], axis=-1)         # (B, K, C)
    vlad = vlad / jnp.maximum(
        jnp.sqrt(jnp.sum(vlad * vlad, axis=2, keepdims=True)), EPS)
    vlad = vlad.reshape(B, K * C)
    vlad = vlad / jnp.maximum(
        jnp.sqrt(jnp.sum(vlad * vlad, axis=1, keepdims=True)), EPS)
    return vlad


if __name__ == "__main__":
    def init_params(k, K, C, alpha=1.0):
        # NetVLAD _init_params: centroids ~ U[0,1); W = 2*alpha*centroids;
        # b = -alpha * ||centroid_k||
        cent = jax.random.uniform(k, (K, C), dtype=jnp.float32)
        w = 2.0 * alpha * cent
        b = -alpha * jnp.sqrt(jnp.sum(cent * cent, axis=1))
        return w, b, cent

    key = jax.random.PRNGKey(0)

    # --- Config 1: f32 matmul, module-like width C=128, K=32, 8x8 spatial ---
    B, C, K, H, W = 4, 128, 32, 8, 8
    k_x, k_c, key = jax.random.split(key, 3)
    x = jax.random.normal(k_x, (B, C, H, W), dtype=jnp.float32)
    w, b, cent = init_params(k_c, K, C)
    out = jax.block_until_ready(
        netvlad_forward(x, w, b, cent, use_bf16_matmul=False))
    ref = jax.block_until_ready(netvlad_reference(x, w, b, cent))
    assert out.shape == (B, K * C)
    err = float(jnp.max(jnp.abs(out - ref)))
    assert err < 1e-3, f"f32 config mismatch vs reference: {err}"

    # --- Config 2: bf16 MXU operands (cast in-kernel; x stays f32 in HBM) ---
    # Compared against the full-f32 reference with a bf16-appropriate bound.
    B2, C2, K2, H2, W2 = 2, 64, 16, 8, 8
    k_x2, k_c2, key = jax.random.split(key, 3)
    x2 = jax.random.normal(k_x2, (B2, C2, H2, W2), dtype=jnp.float32)
    w2, b2, c2 = init_params(k_c2, K2, C2)
    out2 = jax.block_until_ready(
        netvlad_forward(x2, w2, b2, c2, use_bf16_matmul=True))
    ref2 = jax.block_until_ready(netvlad_reference(x2, w2, b2, c2))
    assert out2.shape == (B2, K2 * C2)
    err2 = float(jnp.max(jnp.abs(out2 - ref2)))
    assert err2 < 3e-2, f"bf16 config mismatch vs reference: {err2}"

    # --- Config 3: ragged N (H=W=12 -> N=144, tn=128): exercises multi-tile
    # streaming reduction + in-kernel masking of the partial last tile. ---
    B3, C3, K3, H3, W3 = 2, 64, 16, 12, 12
    k_x3, k_c3, key = jax.random.split(key, 3)
    x3 = jax.random.normal(k_x3, (B3, C3, H3, W3), dtype=jnp.float32)
    w3, b3, c3 = init_params(k_c3, K3, C3)
    out3 = jax.block_until_ready(
        netvlad_forward(x3, w3, b3, c3, use_bf16_matmul=False, n_tile=128))
    ref3 = jax.block_until_ready(netvlad_reference(x3, w3, b3, c3))
    assert out3.shape == (B3, K3 * C3)
    err3 = float(jnp.max(jnp.abs(out3 - ref3)))
    assert err3 < 1e-3, f"ragged config mismatch vs reference: {err3}"

    print("KERNEL_OK")
</pallas_src>

<mosaic_0001>
module attributes {stable_mosaic.version = 11 : i64} {
  func.func @_netvlad_kernel(%arg0: i32, %arg1: i32, %arg2: memref<4x128x64xf32, #tpu.memory_space<vmem>>, %arg3: memref<32x128xf32, #tpu.memory_space<vmem>>, %arg4: memref<32x1xf32, #tpu.memory_space<vmem>>, %arg5: memref<32x128xf32, #tpu.memory_space<vmem>>, %arg6: memref<4x32x128xf32, #tpu.memory_space<vmem>>, %arg7: memref<4x128x32xf32, #tpu.memory_space<vmem>>, %arg8: memref<4x32x1xf32, #tpu.memory_space<vmem>>) attributes {dimension_semantics = [#tpu.dimension_semantics<parallel>, #tpu.dimension_semantics<arbitrary>], iteration_bounds = array<i64: 1, 1>, scalar_prefetch = 0 : i64, scratch_operands = 2 : i64, tpu.core_type = #tpu.core_type<tc>, window_params = [{transform_indices = @transform_0, window_bounds = array<i64: 4, 128, 64>}, {pipeline_mode = #tpu.pipeline_mode<synchronous>, transform_indices = @transform_1, window_bounds = array<i64: 32, 128>}, {pipeline_mode = #tpu.pipeline_mode<synchronous>, transform_indices = @transform_2, window_bounds = array<i64: 32, 1>}, {pipeline_mode = #tpu.pipeline_mode<synchronous>, transform_indices = @transform_3, window_bounds = array<i64: 32, 128>}, {transform_indices = @transform_4, window_bounds = array<i64: 4, 32, 128>}]} {
    %c0_i32 = arith.constant 0 : i32
    %0 = arith.cmpi eq, %arg1, %c0_i32 : i32
    %1 = arith.extui %0 : i1 to i32
    %c0_i32_0 = arith.constant 0 : i32
    %2 = arith.cmpi ne, %1, %c0_i32_0 : i32
    scf.if %2 {
      %cst_90 = arith.constant 0.000000e+00 : f32
      %166 = vector.broadcast %cst_90 : f32 to vector<4x128x32xf32>
      %c0_91 = arith.constant 0 : index
      %c0_92 = arith.constant 0 : index
      %c0_93 = arith.constant 0 : index
      %167 = vector.load %arg7[%c0_91, %c0_92, %c0_93] : memref<4x128x32xf32, #tpu.memory_space<vmem>>, vector<4x128x32xf32>
      tpu.vector_store %arg7[%c0_91, %c0_92, %c0_93], %166 {strides = array<i32>} : memref<4x128x32xf32, #tpu.memory_space<vmem>>, vector<4x128x32xf32>,
      %cst_94 = arith.constant 0.000000e+00 : f32
      %168 = vector.broadcast %cst_94 : f32 to vector<4x32x1xf32>
      %c0_95 = arith.constant 0 : index
      %c0_96 = arith.constant 0 : index
      %c0_97 = arith.constant 0 : index
      %169 = vector.load %arg8[%c0_95, %c0_96, %c0_97] : memref<4x32x1xf32, #tpu.memory_space<vmem>>, vector<4x32x1xf32>
      tpu.vector_store %arg8[%c0_95, %c0_96, %c0_97], %168 {strides = array<i32>} : memref<4x32x1xf32, #tpu.memory_space<vmem>>, vector<4x32x1xf32>,
    } else {
    }
    %c0 = arith.constant 0 : index
    %c0_1 = arith.constant 0 : index
    %3 = vector.load %arg3[%c0, %c0_1] : memref<32x128xf32, #tpu.memory_space<vmem>>, vector<32x128xf32>
    %c0_2 = arith.constant 0 : index
    %c0_3 = arith.constant 0 : index
    %4 = vector.load %arg4[%c0_2, %c0_3] : memref<32x1xf32, #tpu.memory_space<vmem>>, vector<32x1xf32>
    %5 = vector.shape_cast %4 : vector<32x1xf32> to vector<32x1xf32>
    %6 = vector.broadcast %5 : vector<32x1xf32> to vector<32x64xf32>
    %c0_4 = arith.constant 0 : index
    %c0_5 = arith.constant 0 : index
    %c0_6 = arith.constant 0 : index
    %7 = vector.load %arg2[%c0_4, %c0_5, %c0_6] : memref<4x128x64xf32, #tpu.memory_space<vmem>>, vector<1x128x64xf32>
    %8 = vector.shape_cast %7 : vector<1x128x64xf32> to vector<128x64xf32>
    %9 = arith.mulf %8, %8 : vector<128x64xf32>
    %cst = arith.constant dense<0.000000e+00> : vector<64xf32>
    %10 = vector.multi_reduction <add>, %9, %cst [0] : vector<128x64xf32> to vector<64xf32>
    %11 = vector.shape_cast %10 : vector<64xf32> to vector<1x64xf32>
    %cst_7 = arith.constant 1.000000e-24 : f32
    %12 = vector.broadcast %cst_7 : f32 to vector<1x64xf32>
    %13 = arith.maximumf %11, %12 : vector<1x64xf32>
    %14 = math.rsqrt %13 : vector<1x64xf32>
    %cst_8 = arith.constant dense<0.000000e+00> : vector<32x64xf32>
    %15 = tpu.matmul %3, %8, %cst_8 {dimension_numbers = #tpu.dot_dimension_numbers<[1], [0], [0], [1], [0, 0, 1, 1], [], []>} : vector<32x128xf32>, vector<128x64xf32>, vector<32x64xf32> -> vector<32x64xf32>
    %16 = vector.broadcast %14 : vector<1x64xf32> to vector<32x64xf32>
    %17 = arith.mulf %15, %16 : vector<32x64xf32>
    %18 = arith.addf %17, %6 : vector<32x64xf32>
    %cst_9 = arith.constant dense<0xFF800000> : vector<64xf32>
    %19 = vector.multi_reduction <maximumf>, %18, %cst_9 [0] : vector<32x64xf32> to vector<64xf32>
    %20 = vector.shape_cast %19 : vector<64xf32> to vector<1x64xf32>
    %21 = vector.broadcast %20 : vector<1x64xf32> to vector<32x64xf32>
    %22 = arith.subf %18, %21 : vector<32x64xf32>
    %23 = math.exp %22 : vector<32x64xf32>
    %cst_10 = arith.constant dense<0.000000e+00> : vector<64xf32>
    %24 = vector.multi_reduction <add>, %23, %cst_10 [0] : vector<32x64xf32> to vector<64xf32>
    %25 = vector.shape_cast %24 : vector<64xf32> to vector<1x64xf32>
    %26 = tpu.reciprocal %25 {approx = true} : vector<1x64xf32> -> vector<1x64xf32>
    %27 = vector.broadcast %26 : vector<1x64xf32> to vector<32x64xf32>
    %28 = arith.mulf %23, %27 : vector<32x64xf32>
    %c0_11 = arith.constant 0 : index
    %c0_12 = arith.constant 0 : index
    %c0_13 = arith.constant 0 : index
    %29 = vector.load %arg8[%c0_11, %c0_12, %c0_13] : memref<4x32x1xf32, #tpu.memory_space<vmem>>, vector<1x32x1xf32>
    %30 = vector.shape_cast %29 : vector<1x32x1xf32> to vector<32x1xf32>
    %cst_14 = arith.constant dense<0.000000e+00> : vector<32xf32>
    %31 = vector.multi_reduction <add>, %28, %cst_14 [1] : vector<32x64xf32> to vector<32xf32>
    %32 = vector.shape_cast %31 : vector<32xf32> to vector<32x1xf32>
    %33 = arith.addf %30, %32 : vector<32x1xf32>
    %c0_15 = arith.constant 0 : index
    %c0_16 = arith.constant 0 : index
    %c0_17 = arith.constant 0 : index
    %34 = vector.load %arg8[%c0_15, %c0_16, %c0_17] : memref<4x32x1xf32, #tpu.memory_space<vmem>>, vector<1x32x1xf32>
    %35 = vector.shape_cast %34 : vector<1x32x1xf32> to vector<32x1xf32>
    %36 = vector.shape_cast %33 : vector<32x1xf32> to vector<1x32x1xf32>
    tpu.vector_store %arg8[%c0_15, %c0_16, %c0_17], %36 {strides = array<i32>} : memref<4x32x1xf32, #tpu.memory_space<vmem>>, vector<1x32x1xf32>,
    %37 = vector.broadcast %14 : vector<1x64xf32> to vector<32x64xf32>
    %38 = arith.mulf %28, %37 : vector<32x64xf32>
    %c0_18 = arith.constant 0 : index
    %c0_19 = arith.constant 0 : index
    %c0_20 = arith.constant 0 : index
    %39 = vector.load %arg7[%c0_18, %c0_19, %c0_20] : memref<4x128x32xf32, #tpu.memory_space<vmem>>, vector<1x128x32xf32>
    %40 = vector.shape_cast %39 : vector<1x128x32xf32> to vector<128x32xf32>
    %cst_21 = arith.constant dense<0.000000e+00> : vector<128x32xf32>
    %41 = tpu.matmul %8, %38, %cst_21 {dimension_numbers = #tpu.dot_dimension_numbers<[1], [1], [0], [0], [0, 0, 1, 0], [], []>} : vector<128x64xf32>, vector<32x64xf32>, vector<128x32xf32> -> vector<128x32xf32>
    %42 = arith.addf %40, %41 : vector<128x32xf32>
    %c0_22 = arith.constant 0 : index
    %c0_23 = arith.constant 0 : index
    %c0_24 = arith.constant 0 : index
    %43 = vector.load %arg7[%c0_22, %c0_23, %c0_24] : memref<4x128x32xf32, #tpu.memory_space<vmem>>, vector<1x128x32xf32>
    %44 = vector.shape_cast %43 : vector<1x128x32xf32> to vector<128x32xf32>
    %45 = vector.shape_cast %42 : vector<128x32xf32> to vector<1x128x32xf32>
    tpu.vector_store %arg7[%c0_22, %c0_23, %c0_24], %45 {strides = array<i32>} : memref<4x128x32xf32, #tpu.memory_space<vmem>>, vector<1x128x32xf32>,
    %c1 = arith.constant 1 : index
    %c0_25 = arith.constant 0 : index
    %c0_26 = arith.constant 0 : index
    %46 = vector.load %arg2[%c1, %c0_25, %c0_26] : memref<4x128x64xf32, #tpu.memory_space<vmem>>, vector<1x128x64xf32>
    %47 = vector.shape_cast %46 : vector<1x128x64xf32> to vector<128x64xf32>
    %48 = arith.mulf %47, %47 : vector<128x64xf32>
    %cst_27 = arith.constant dense<0.000000e+00> : vector<64xf32>
    %49 = vector.multi_reduction <add>, %48, %cst_27 [0] : vector<128x64xf32> to vector<64xf32>
    %50 = vector.shape_cast %49 : vector<64xf32> to vector<1x64xf32>
    %cst_28 = arith.constant 1.000000e-24 : f32
    %51 = vector.broadcast %cst_28 : f32 to vector<1x64xf32>
    %52 = arith.maximumf %50, %51 : vector<1x64xf32>
    %53 = math.rsqrt %52 : vector<1x64xf32>
    %cst_29 = arith.constant dense<0.000000e+00> : vector<32x64xf32>
    %54 = tpu.matmul %3, %47, %cst_29 {dimension_numbers = #tpu.dot_dimension_numbers<[1], [0], [0], [1], [0, 0, 1, 1], [], []>} : vector<32x128xf32>, vector<128x64xf32>, vector<32x64xf32> -> vector<32x64xf32>
    %55 = vector.broadcast %53 : vector<1x64xf32> to vector<32x64xf32>
    %56 = arith.mulf %54, %55 : vector<32x64xf32>
    %57 = arith.addf %56, %6 : vector<32x64xf32>
    %cst_30 = arith.constant dense<0xFF800000> : vector<64xf32>
    %58 = vector.multi_reduction <maximumf>, %57, %cst_30 [0] : vector<32x64xf32> to vector<64xf32>
    %59 = vector.shape_cast %58 : vector<64xf32> to vector<1x64xf32>
    %60 = vector.broadcast %59 : vector<1x64xf32> to vector<32x64xf32>
    %61 = arith.subf %57, %60 : vector<32x64xf32>
    %62 = math.exp %61 : vector<32x64xf32>
    %cst_31 = arith.constant dense<0.000000e+00> : vector<64xf32>
    %63 = vector.multi_reduction <add>, %62, %cst_31 [0] : vector<32x64xf32> to vector<64xf32>
    %64 = vector.shape_cast %63 : vector<64xf32> to vector<1x64xf32>
    %65 = tpu.reciprocal %64 {approx = true} : vector<1x64xf32> -> vector<1x64xf32>
    %66 = vector.broadcast %65 : vector<1x64xf32> to vector<32x64xf32>
    %67 = arith.mulf %62, %66 : vector<32x64xf32>
    %c1_32 = arith.constant 1 : index
    %c0_33 = arith.constant 0 : index
    %c0_34 = arith.constant 0 : index
    %68 = vector.load %arg8[%c1_32, %c0_33, %c0_34] : memref<4x32x1xf32, #tpu.memory_space<vmem>>, vector<1x32x1xf32>
    %69 = vector.shape_cast %68 : vector<1x32x1xf32> to vector<32x1xf32>
    %cst_35 = arith.constant dense<0.000000e+00> : vector<32xf32>
    %70 = vector.multi_reduction <add>, %67, %cst_35 [1] : vector<32x64xf32> to vector<32xf32>
    %71 = vector.shape_cast %70 : vector<32xf32> to vector<32x1xf32>
    %72 = arith.addf %69, %71 : vector<32x1xf32>
    %c1_36 = arith.constant 1 : index
    %c0_37 = arith.constant 0 : index
    %c0_38 = arith.constant 0 : index
    %73 = vector.load %arg8[%c1_36, %c0_37, %c0_38] : memref<4x32x1xf32, #tpu.memory_space<vmem>>, vector<1x32x1xf32>
    %74 = vector.shape_cast %73 : vector<1x32x1xf32> to vector<32x1xf32>
    %75 = vector.shape_cast %72 : vector<32x1xf32> to vector<1x32x1xf32>
    tpu.vector_store %arg8[%c1_36, %c0_37, %c0_38], %75 {strides = array<i32>} : memref<4x32x1xf32, #tpu.memory_space<vmem>>, vector<1x32x1xf32>,
    %76 = vector.broadcast %53 : vector<1x64xf32> to vector<32x64xf32>
    %77 = arith.mulf %67, %76 : vector<32x64xf32>
    %c1_39 = arith.constant 1 : index
    %c0_40 = arith.constant 0 : index
    %c0_41 = arith.constant 0 : index
    %78 = vector.load %arg7[%c1_39, %c0_40, %c0_41] : memref<4x128x32xf32, #tpu.memory_space<vmem>>, vector<1x128x32xf32>
    %79 = vector.shape_cast %78 : vector<1x128x32xf32> to vector<128x32xf32>
    %cst_42 = arith.constant dense<0.000000e+00> : vector<128x32xf32>
    %80 = tpu.matmul %47, %77, %cst_42 {dimension_numbers = #tpu.dot_dimension_numbers<[1], [1], [0], [0], [0, 0, 1, 0], [], []>} : vector<128x64xf32>, vector<32x64xf32>, vector<128x32xf32> -> vector<128x32xf32>
    %81 = arith.addf %79, %80 : vector<128x32xf32>
    %c1_43 = arith.constant 1 : index
    %c0_44 = arith.constant 0 : index
    %c0_45 = arith.constant 0 : index
    %82 = vector.load %arg7[%c1_43, %c0_44, %c0_45] : memref<4x128x32xf32, #tpu.memory_space<vmem>>, vector<1x128x32xf32>
    %83 = vector.shape_cast %82 : vector<1x128x32xf32> to vector<128x32xf32>
    %84 = vector.shape_cast %81 : vector<128x32xf32> to vector<1x128x32xf32>
    tpu.vector_store %arg7[%c1_43, %c0_44, %c0_45], %84 {strides = array<i32>} : memref<4x128x32xf32, #tpu.memory_space<vmem>>, vector<1x128x32xf32>,
    %c2 = arith.constant 2 : index
    %c0_46 = arith.constant 0 : index
    %c0_47 = arith.constant 0 : index
    %85 = vector.load %arg2[%c2, %c0_46, %c0_47] : memref<4x128x64xf32, #tpu.memory_space<vmem>>, vector<1x128x64xf32>
    %86 = vector.shape_cast %85 : vector<1x128x64xf32> to vector<128x64xf32>
    %87 = arith.mulf %86, %86 : vector<128x64xf32>
    %cst_48 = arith.constant dense<0.000000e+00> : vector<64xf32>
    %88 = vector.multi_reduction <add>, %87, %cst_48 [0] : vector<128x64xf32> to vector<64xf32>
    %89 = vector.shape_cast %88 : vector<64xf32> to vector<1x64xf32>
    %cst_49 = arith.constant 1.000000e-24 : f32
    %90 = vector.broadcast %cst_49 : f32 to vector<1x64xf32>
    %91 = arith.maximumf %89, %90 : vector<1x64xf32>
    %92 = math.rsqrt %91 : vector<1x64xf32>
    %cst_50 = arith.constant dense<0.000000e+00> : vector<32x64xf32>
    %93 = tpu.matmul %3, %86, %cst_50 {dimension_numbers = #tpu.dot_dimension_numbers<[1], [0], [0], [1], [0, 0, 1, 1], [], []>} : vector<32x128xf32>, vector<128x64xf32>, vector<32x64xf32> -> vector<32x64xf32>
    %94 = vector.broadcast %92 : vector<1x64xf32> to vector<32x64xf32>
    %95 = arith.mulf %93, %94 : vector<32x64xf32>
    %96 = arith.addf %95, %6 : vector<32x64xf32>
    %cst_51 = arith.constant dense<0xFF800000> : vector<64xf32>
    %97 = vector.multi_reduction <maximumf>, %96, %cst_51 [0] : vector<32x64xf32> to vector<64xf32>
    %98 = vector.shape_cast %97 : vector<64xf32> to vector<1x64xf32>
    %99 = vector.broadcast %98 : vector<1x64xf32> to vector<32x64xf32>
    %100 = arith.subf %96, %99 : vector<32x64xf32>
    %101 = math.exp %100 : vector<32x64xf32>
    %cst_52 = arith.constant dense<0.000000e+00> : vector<64xf32>
    %102 = vector.multi_reduction <add>, %101, %cst_52 [0] : vector<32x64xf32> to vector<64xf32>
    %103 = vector.shape_cast %102 : vector<64xf32> to vector<1x64xf32>
    %104 = tpu.reciprocal %103 {approx = true} : vector<1x64xf32> -> vector<1x64xf32>
    %105 = vector.broadcast %104 : vector<1x64xf32> to vector<32x64xf32>
    %106 = arith.mulf %101, %105 : vector<32x64xf32>
    %c2_53 = arith.constant 2 : index
    %c0_54 = arith.constant 0 : index
    %c0_55 = arith.constant 0 : index
    %107 = vector.load %arg8[%c2_53, %c0_54, %c0_55] : memref<4x32x1xf32, #tpu.memory_space<vmem>>, vector<1x32x1xf32>
    %108 = vector.shape_cast %107 : vector<1x32x1xf32> to vector<32x1xf32>
    %cst_56 = arith.constant dense<0.000000e+00> : vector<32xf32>
    %109 = vector.multi_reduction <add>, %106, %cst_56 [1] : vector<32x64xf32> to vector<32xf32>
    %110 = vector.shape_cast %109 : vector<32xf32> to vector<32x1xf32>
    %111 = arith.addf %108, %110 : vector<32x1xf32>
    %c2_57 = arith.constant 2 : index
    %c0_58 = arith.constant 0 : index
    %c0_59 = arith.constant 0 : index
    %112 = vector.load %arg8[%c2_57, %c0_58, %c0_59] : memref<4x32x1xf32, #tpu.memory_space<vmem>>, vector<1x32x1xf32>
    %113 = vector.shape_cast %112 : vector<1x32x1xf32> to vector<32x1xf32>
    %114 = vector.shape_cast %111 : vector<32x1xf32> to vector<1x32x1xf32>
    tpu.vector_store %arg8[%c2_57, %c0_58, %c0_59], %114 {strides = array<i32>} : memref<4x32x1xf32, #tpu.memory_space<vmem>>, vector<1x32x1xf32>,
    %115 = vector.broadcast %92 : vector<1x64xf32> to vector<32x64xf32>
    %116 = arith.mulf %106, %115 : vector<32x64xf32>
    %c2_60 = arith.constant 2 : index
    %c0_61 = arith.constant 0 : index
    %c0_62 = arith.constant 0 : index
    %117 = vector.load %arg7[%c2_60, %c0_61, %c0_62] : memref<4x128x32xf32, #tpu.memory_space<vmem>>, vector<1x128x32xf32>
    %118 = vector.shape_cast %117 : vector<1x128x32xf32> to vector<128x32xf32>
    %cst_63 = arith.constant dense<0.000000e+00> : vector<128x32xf32>
    %119 = tpu.matmul %86, %116, %cst_63 {dimension_numbers = #tpu.dot_dimension_numbers<[1], [1], [0], [0], [0, 0, 1, 0], [], []>} : vector<128x64xf32>, vector<32x64xf32>, vector<128x32xf32> -> vector<128x32xf32>
    %120 = arith.addf %118, %119 : vector<128x32xf32>
    %c2_64 = arith.constant 2 : index
    %c0_65 = arith.constant 0 : index
    %c0_66 = arith.constant 0 : index
    %121 = vector.load %arg7[%c2_64, %c0_65, %c0_66] : memref<4x128x32xf32, #tpu.memory_space<vmem>>, vector<1x128x32xf32>
    %122 = vector.shape_cast %121 : vector<1x128x32xf32> to vector<128x32xf32>
    %123 = vector.shape_cast %120 : vector<128x32xf32> to vector<1x128x32xf32>
    tpu.vector_store %arg7[%c2_64, %c0_65, %c0_66], %123 {strides = array<i32>} : memref<4x128x32xf32, #tpu.memory_space<vmem>>, vector<1x128x32xf32>,
    %c3 = arith.constant 3 : index
    %c0_67 = arith.constant 0 : index
    %c0_68 = arith.constant 0 : index
    %124 = vector.load %arg2[%c3, %c0_67, %c0_68] : memref<4x128x64xf32, #tpu.memory_space<vmem>>, vector<1x128x64xf32>
    %125 = vector.shape_cast %124 : vector<1x128x64xf32> to vector<128x64xf32>
    %126 = arith.mulf %125, %125 : vector<128x64xf32>
    %cst_69 = arith.constant dense<0.000000e+00> : vector<64xf32>
    %127 = vector.multi_reduction <add>, %126, %cst_69 [0] : vector<128x64xf32> to vector<64xf32>
    %128 = vector.shape_cast %127 : vector<64xf32> to vector<1x64xf32>
    %cst_70 = arith.constant 1.000000e-24 : f32
    %129 = vector.broadcast %cst_70 : f32 to vector<1x64xf32>
    %130 = arith.maximumf %128, %129 : vector<1x64xf32>
    %131 = math.rsqrt %130 : vector<1x64xf32>
    %cst_71 = arith.constant dense<0.000000e+00> : vector<32x64xf32>
    %132 = tpu.matmul %3, %125, %cst_71 {dimension_numbers = #tpu.dot_dimension_numbers<[1], [0], [0], [1], [0, 0, 1, 1], [], []>} : vector<32x128xf32>, vector<128x64xf32>, vector<32x64xf32> -> vector<32x64xf32>
    %133 = vector.broadcast %131 : vector<1x64xf32> to vector<32x64xf32>
    %134 = arith.mulf %132, %133 : vector<32x64xf32>
    %135 = arith.addf %134, %6 : vector<32x64xf32>
    %cst_72 = arith.constant dense<0xFF800000> : vector<64xf32>
    %136 = vector.multi_reduction <maximumf>, %135, %cst_72 [0] : vector<32x64xf32> to vector<64xf32>
    %137 = vector.shape_cast %136 : vector<64xf32> to vector<1x64xf32>
    %138 = vector.broadcast %137 : vector<1x64xf32> to vector<32x64xf32>
    %139 = arith.subf %135, %138 : vector<32x64xf32>
    %140 = math.exp %139 : vector<32x64xf32>
    %cst_73 = arith.constant dense<0.000000e+00> : vector<64xf32>
    %141 = vector.multi_reduction <add>, %140, %cst_73 [0] : vector<32x64xf32> to vector<64xf32>
    %142 = vector.shape_cast %141 : vector<64xf32> to vector<1x64xf32>
    %143 = tpu.reciprocal %142 {approx = true} : vector<1x64xf32> -> vector<1x64xf32>
    %144 = vector.broadcast %143 : vector<1x64xf32> to vector<32x64xf32>
    %145 = arith.mulf %140, %144 : vector<32x64xf32>
    %c3_74 = arith.constant 3 : index
    %c0_75 = arith.constant 0 : index
    %c0_76 = arith.constant 0 : index
    %146 = vector.load %arg8[%c3_74, %c0_75, %c0_76] : memref<4x32x1xf32, #tpu.memory_space<vmem>>, vector<1x32x1xf32>
    %147 = vector.shape_cast %146 : vector<1x32x1xf32> to vector<32x1xf32>
    %cst_77 = arith.constant dense<0.000000e+00> : vector<32xf32>
    %148 = vector.multi_reduction <add>, %145, %cst_77 [1] : vector<32x64xf32> to vector<32xf32>
    %149 = vector.shape_cast %148 : vector<32xf32> to vector<32x1xf32>
    %150 = arith.addf %147, %149 : vector<32x1xf32>
    %c3_78 = arith.constant 3 : index
    %c0_79 = arith.constant 0 : index
    %c0_80 = arith.constant 0 : index
    %151 = vector.load %arg8[%c3_78, %c0_79, %c0_80] : memref<4x32x1xf32, #tpu.memory_space<vmem>>, vector<1x32x1xf32>
    %152 = vector.shape_cast %151 : vector<1x32x1xf32> to vector<32x1xf32>
    %153 = vector.shape_cast %150 : vector<32x1xf32> to vector<1x32x1xf32>
    tpu.vector_store %arg8[%c3_78, %c0_79, %c0_80], %153 {strides = array<i32>} : memref<4x32x1xf32, #tpu.memory_space<vmem>>, vector<1x32x1xf32>,
    %154 = vector.broadcast %131 : vector<1x64xf32> to vector<32x64xf32>
    %155 = arith.mulf %145, %154 : vector<32x64xf32>
    %c3_81 = arith.constant 3 : index
    %c0_82 = arith.constant 0 : index
    %c0_83 = arith.constant 0 : index
    %156 = vector.load %arg7[%c3_81, %c0_82, %c0_83] : memref<4x128x32xf32, #tpu.memory_space<vmem>>, vector<1x128x32xf32>
    %157 = vector.shape_cast %156 : vector<1x128x32xf32> to vector<128x32xf32>
    %cst_84 = arith.constant dense<0.000000e+00> : vector<128x32xf32>
    %158 = tpu.matmul %125, %155, %cst_84 {dimension_numbers = #tpu.dot_dimension_numbers<[1], [1], [0], [0], [0, 0, 1, 0], [], []>} : vector<128x64xf32>, vector<32x64xf32>, vector<128x32xf32> -> vector<128x32xf32>
    %159 = arith.addf %157, %158 : vector<128x32xf32>
    %c3_85 = arith.constant 3 : index
    %c0_86 = arith.constant 0 : index
    %c0_87 = arith.constant 0 : index
    %160 = vector.load %arg7[%c3_85, %c0_86, %c0_87] : memref<4x128x32xf32, #tpu.memory_space<vmem>>, vector<1x128x32xf32>
    %161 = vector.shape_cast %160 : vector<1x128x32xf32> to vector<128x32xf32>
    %162 = vector.shape_cast %159 : vector<128x32xf32> to vector<1x128x32xf32>
    tpu.vector_store %arg7[%c3_85, %c0_86, %c0_87], %162 {strides = array<i32>} : memref<4x128x32xf32, #tpu.memory_space<vmem>>, vector<1x128x32xf32>,
    %c0_i32_88 = arith.constant 0 : i32
    %163 = arith.cmpi eq, %arg1, %c0_i32_88 : i32
    %164 = arith.extui %163 : i1 to i32
    %c0_i32_89 = arith.constant 0 : i32
    %165 = arith.cmpi ne, %164, %c0_i32_89 : i32
    scf.if %165 {
      %c0_90 = arith.constant 0 : index
      %c0_91 = arith.constant 0 : index
      %166 = vector.load %arg5[%c0_90, %c0_91] : memref<32x128xf32, #tpu.memory_space<vmem>>, vector<32x128xf32>
      %c0_92 = arith.constant 0 : index
      %c0_93 = arith.constant 0 : index
      %c0_94 = arith.constant 0 : index
      %167 = vector.load %arg7[%c0_92, %c0_93, %c0_94] : memref<4x128x32xf32, #tpu.memory_space<vmem>>, vector<1x128x32xf32>
      %168 = vector.shape_cast %167 : vector<1x128x32xf32> to vector<128x32xf32>
      %169 = tpu.transpose %168, [1, 0] : vector<128x32xf32> -> vector<32x128xf32>
      %c0_95 = arith.constant 0 : index
      %c0_96 = arith.constant 0 : index
      %c0_97 = arith.constant 0 : index
      %170 = vector.load %arg8[%c0_95, %c0_96, %c0_97] : memref<4x32x1xf32, #tpu.memory_space<vmem>>, vector<1x32x1xf32>
      %171 = vector.shape_cast %170 : vector<1x32x1xf32> to vector<32x1xf32>
      %172 = vector.broadcast %171 : vector<32x1xf32> to vector<32x128xf32>
      %173 = arith.mulf %166, %172 : vector<32x128xf32>
      %174 = arith.subf %169, %173 : vector<32x128xf32>
      %175 = arith.mulf %174, %174 : vector<32x128xf32>
      %cst_98 = arith.constant dense<0.000000e+00> : vector<32xf32>
      %176 = vector.multi_reduction <add>, %175, %cst_98 [1] : vector<32x128xf32> to vector<32xf32>
      %177 = vector.shape_cast %176 : vector<32xf32> to vector<32x1xf32>
      %cst_99 = arith.constant 1.000000e-24 : f32
      %178 = vector.broadcast %cst_99 : f32 to vector<32x1xf32>
      %179 = arith.maximumf %177, %178 : vector<32x1xf32>
      %180 = math.rsqrt %179 : vector<32x1xf32>
      %181 = vector.broadcast %180 : vector<32x1xf32> to vector<32x128xf32>
      %182 = arith.mulf %174, %181 : vector<32x128xf32>
      %183 = arith.mulf %182, %182 : vector<32x128xf32>
      %184 = vector.shape_cast %183 : vector<32x128xf32> to vector<1x32x128xf32>
      %cst_100 = arith.constant dense<0.000000e+00> : vector<1xf32>
      %185 = vector.multi_reduction <add>, %184, %cst_100 [1, 2] : vector<1x32x128xf32> to vector<1xf32>
      %186 = vector.shape_cast %185 : vector<1xf32> to vector<1x1x1xf32>
      %187 = vector.extract %186[0, 0, 0] : f32 from vector<1x1x1xf32>
      %188 = vector.broadcast %187 : f32 to vector<1x1xf32>
      %cst_101 = arith.constant 1.000000e-24 : f32
      %189 = vector.broadcast %cst_101 : f32 to vector<1x1xf32>
      %190 = arith.maximumf %188, %189 : vector<1x1xf32>
      %191 = math.rsqrt %190 : vector<1x1xf32>
      %192 = vector.broadcast %191 : vector<1x1xf32> to vector<32x128xf32>
      %193 = arith.mulf %182, %192 : vector<32x128xf32>
      %c0_102 = arith.constant 0 : index
      %c0_103 = arith.constant 0 : index
      %c0_104 = arith.constant 0 : index
      %194 = vector.load %arg6[%c0_102, %c0_103, %c0_104] : memref<4x32x128xf32, #tpu.memory_space<vmem>>, vector<1x32x128xf32>
      %195 = vector.shape_cast %194 : vector<1x32x128xf32> to vector<32x128xf32>
      %196 = vector.shape_cast %193 : vector<32x128xf32> to vector<1x32x128xf32>
      tpu.vector_store %arg6[%c0_102, %c0_103, %c0_104], %196 {strides = array<i32>} : memref<4x32x128xf32, #tpu.memory_space<vmem>>, vector<1x32x128xf32>,
      %c1_105 = arith.constant 1 : index
      %c0_106 = arith.constant 0 : index
      %c0_107 = arith.constant 0 : index
      %197 = vector.load %arg7[%c1_105, %c0_106, %c0_107] : memref<4x128x32xf32, #tpu.memory_space<vmem>>, vector<1x128x32xf32>
      %198 = vector.shape_cast %197 : vector<1x128x32xf32> to vector<128x32xf32>
      %199 = tpu.transpose %198, [1, 0] : vector<128x32xf32> -> vector<32x128xf32>
      %c1_108 = arith.constant 1 : index
      %c0_109 = arith.constant 0 : index
      %c0_110 = arith.constant 0 : index
      %200 = vector.load %arg8[%c1_108, %c0_109, %c0_110] : memref<4x32x1xf32, #tpu.memory_space<vmem>>, vector<1x32x1xf32>
      %201 = vector.shape_cast %200 : vector<1x32x1xf32> to vector<32x1xf32>
      %202 = vector.broadcast %201 : vector<32x1xf32> to vector<32x128xf32>
      %203 = arith.mulf %166, %202 : vector<32x128xf32>
      %204 = arith.subf %199, %203 : vector<32x128xf32>
      %205 = arith.mulf %204, %204 : vector<32x128xf32>
      %cst_111 = arith.constant dense<0.000000e+00> : vector<32xf32>
      %206 = vector.multi_reduction <add>, %205, %cst_111 [1] : vector<32x128xf32> to vector<32xf32>
      %207 = vector.shape_cast %206 : vector<32xf32> to vector<32x1xf32>
      %cst_112 = arith.constant 1.000000e-24 : f32
      %208 = vector.broadcast %cst_112 : f32 to vector<32x1xf32>
      %209 = arith.maximumf %207, %208 : vector<32x1xf32>
      %210 = math.rsqrt %209 : vector<32x1xf32>
      %211 = vector.broadcast %210 : vector<32x1xf32> to vector<32x128xf32>
      %212 = arith.mulf %204, %211 : vector<32x128xf32>
      %213 = arith.mulf %212, %212 : vector<32x128xf32>
      %214 = vector.shape_cast %213 : vector<32x128xf32> to vector<1x32x128xf32>
      %cst_113 = arith.constant dense<0.000000e+00> : vector<1xf32>
      %215 = vector.multi_reduction <add>, %214, %cst_113 [1, 2] : vector<1x32x128xf32> to vector<1xf32>
      %216 = vector.shape_cast %215 : vector<1xf32> to vector<1x1x1xf32>
      %217 = vector.extract %216[0, 0, 0] : f32 from vector<1x1x1xf32>
      %218 = vector.broadcast %217 : f32 to vector<1x1xf32>
      %cst_114 = arith.constant 1.000000e-24 : f32
      %219 = vector.broadcast %cst_114 : f32 to vector<1x1xf32>
      %220 = arith.maximumf %218, %219 : vector<1x1xf32>
      %221 = math.rsqrt %220 : vector<1x1xf32>
      %222 = vector.broadcast %221 : vector<1x1xf32> to vector<32x128xf32>
      %223 = arith.mulf %212, %222 : vector<32x128xf32>
      %c1_115 = arith.constant 1 : index
      %c0_116 = arith.constant 0 : index
      %c0_117 = arith.constant 0 : index
      %224 = vector.load %arg6[%c1_115, %c0_116, %c0_117] : memref<4x32x128xf32, #tpu.memory_space<vmem>>, vector<1x32x128xf32>
      %225 = vector.shape_cast %224 : vector<1x32x128xf32> to vector<32x128xf32>
      %226 = vector.shape_cast %223 : vector<32x128xf32> to vector<1x32x128xf32>
      tpu.vector_store %arg6[%c1_115, %c0_116, %c0_117], %226 {strides = array<i32>} : memref<4x32x128xf32, #tpu.memory_space<vmem>>, vector<1x32x128xf32>,
      %c2_118 = arith.constant 2 : index
      %c0_119 = arith.constant 0 : index
      %c0_120 = arith.constant 0 : index
      %227 = vector.load %arg7[%c2_118, %c0_119, %c0_120] : memref<4x128x32xf32, #tpu.memory_space<vmem>>, vector<1x128x32xf32>
      %228 = vector.shape_cast %227 : vector<1x128x32xf32> to vector<128x32xf32>
      %229 = tpu.transpose %228, [1, 0] : vector<128x32xf32> -> vector<32x128xf32>
      %c2_121 = arith.constant 2 : index
      %c0_122 = arith.constant 0 : index
      %c0_123 = arith.constant 0 : index
      %230 = vector.load %arg8[%c2_121, %c0_122, %c0_123] : memref<4x32x1xf32, #tpu.memory_space<vmem>>, vector<1x32x1xf32>
      %231 = vector.shape_cast %230 : vector<1x32x1xf32> to vector<32x1xf32>
      %232 = vector.broadcast %231 : vector<32x1xf32> to vector<32x128xf32>
      %233 = arith.mulf %166, %232 : vector<32x128xf32>
      %234 = arith.subf %229, %233 : vector<32x128xf32>
      %235 = arith.mulf %234, %234 : vector<32x128xf32>
      %cst_124 = arith.constant dense<0.000000e+00> : vector<32xf32>
      %236 = vector.multi_reduction <add>, %235, %cst_124 [1] : vector<32x128xf32> to vector<32xf32>
      %237 = vector.shape_cast %236 : vector<32xf32> to vector<32x1xf32>
      %cst_125 = arith.constant 1.000000e-24 : f32
      %238 = vector.broadcast %cst_125 : f32 to vector<32x1xf32>
      %239 = arith.maximumf %237, %238 : vector<32x1xf32>
      %240 = math.rsqrt %239 : vector<32x1xf32>
      %241 = vector.broadcast %240 : vector<32x1xf32> to vector<32x128xf32>
      %242 = arith.mulf %234, %241 : vector<32x128xf32>
      %243 = arith.mulf %242, %242 : vector<32x128xf32>
      %244 = vector.shape_cast %243 : vector<32x128xf32> to vector<1x32x128xf32>
      %cst_126 = arith.constant dense<0.000000e+00> : vector<1xf32>
      %245 = vector.multi_reduction <add>, %244, %cst_126 [1, 2] : vector<1x32x128xf32> to vector<1xf32>
      %246 = vector.shape_cast %245 : vector<1xf32> to vector<1x1x1xf32>
      %247 = vector.extract %246[0, 0, 0] : f32 from vector<1x1x1xf32>
      %248 = vector.broadcast %247 : f32 to vector<1x1xf32>
      %cst_127 = arith.constant 1.000000e-24 : f32
      %249 = vector.broadcast %cst_127 : f32 to vector<1x1xf32>
      %250 = arith.maximumf %248, %249 : vector<1x1xf32>
      %251 = math.rsqrt %250 : vector<1x1xf32>
      %252 = vector.broadcast %251 : vector<1x1xf32> to vector<32x128xf32>
      %253 = arith.mulf %242, %252 : vector<32x128xf32>
      %c2_128 = arith.constant 2 : index
      %c0_129 = arith.constant 0 : index
      %c0_130 = arith.constant 0 : index
      %254 = vector.load %arg6[%c2_128, %c0_129, %c0_130] : memref<4x32x128xf32, #tpu.memory_space<vmem>>, vector<1x32x128xf32>
      %255 = vector.shape_cast %254 : vector<1x32x128xf32> to vector<32x128xf32>
      %256 = vector.shape_cast %253 : vector<32x128xf32> to vector<1x32x128xf32>
      tpu.vector_store %arg6[%c2_128, %c0_129, %c0_130], %256 {strides = array<i32>} : memref<4x32x128xf32, #tpu.memory_space<vmem>>, vector<1x32x128xf32>,
      %c3_131 = arith.constant 3 : index
      %c0_132 = arith.constant 0 : index
      %c0_133 = arith.constant 0 : index
      %257 = vector.load %arg7[%c3_131, %c0_132, %c0_133] : memref<4x128x32xf32, #tpu.memory_space<vmem>>, vector<1x128x32xf32>
      %258 = vector.shape_cast %257 : vector<1x128x32xf32> to vector<128x32xf32>
      %259 = tpu.transpose %258, [1, 0] : vector<128x32xf32> -> vector<32x128xf32>
      %c3_134 = arith.constant 3 : index
      %c0_135 = arith.constant 0 : index
      %c0_136 = arith.constant 0 : index
      %260 = vector.load %arg8[%c3_134, %c0_135, %c0_136] : memref<4x32x1xf32, #tpu.memory_space<vmem>>, vector<1x32x1xf32>
      %261 = vector.shape_cast %260 : vector<1x32x1xf32> to vector<32x1xf32>
      %262 = vector.broadcast %261 : vector<32x1xf32> to vector<32x128xf32>
      %263 = arith.mulf %166, %262 : vector<32x128xf32>
      %264 = arith.subf %259, %263 : vector<32x128xf32>
      %265 = arith.mulf %264, %264 : vector<32x128xf32>
      %cst_137 = arith.constant dense<0.000000e+00> : vector<32xf32>
      %266 = vector.multi_reduction <add>, %265, %cst_137 [1] : vector<32x128xf32> to vector<32xf32>
      %267 = vector.shape_cast %266 : vector<32xf32> to vector<32x1xf32>
      %cst_138 = arith.constant 1.000000e-24 : f32
      %268 = vector.broadcast %cst_138 : f32 to vector<32x1xf32>
      %269 = arith.maximumf %267, %268 : vector<32x1xf32>
      %270 = math.rsqrt %269 : vector<32x1xf32>
      %271 = vector.broadcast %270 : vector<32x1xf32> to vector<32x128xf32>
      %272 = arith.mulf %264, %271 : vector<32x128xf32>
      %273 = arith.mulf %272, %272 : vector<32x128xf32>
      %274 = vector.shape_cast %273 : vector<32x128xf32> to vector<1x32x128xf32>
      %cst_139 = arith.constant dense<0.000000e+00> : vector<1xf32>
      %275 = vector.multi_reduction <add>, %274, %cst_139 [1, 2] : vector<1x32x128xf32> to vector<1xf32>
      %276 = vector.shape_cast %275 : vector<1xf32> to vector<1x1x1xf32>
      %277 = vector.extract %276[0, 0, 0] : f32 from vector<1x1x1xf32>
      %278 = vector.broadcast %277 : f32 to vector<1x1xf32>
      %cst_140 = arith.constant 1.000000e-24 : f32
      %279 = vector.broadcast %cst_140 : f32 to vector<1x1xf32>
      %280 = arith.maximumf %278, %279 : vector<1x1xf32>
      %281 = math.rsqrt %280 : vector<1x1xf32>
      %282 = vector.broadcast %281 : vector<1x1xf32> to vector<32x128xf32>
      %283 = arith.mulf %272, %282 : vector<32x128xf32>
      %c3_141 = arith.constant 3 : index
      %c0_142 = arith.constant 0 : index
      %c0_143 = arith.constant 0 : index
      %284 = vector.load %arg6[%c3_141, %c0_142, %c0_143] : memref<4x32x128xf32, #tpu.memory_space<vmem>>, vector<1x32x128xf32>
      %285 = vector.shape_cast %284 : vector<1x32x128xf32> to vector<32x128xf32>
      %286 = vector.shape_cast %283 : vector<32x128xf32> to vector<1x32x128xf32>
      tpu.vector_store %arg6[%c3_141, %c0_142, %c0_143], %286 {strides = array<i32>} : memref<4x32x128xf32, #tpu.memory_space<vmem>>, vector<1x32x128xf32>,
    } else {
    }
    return
  }
  func.func @transform_0(%arg0: i32, %arg1: i32) -> (i32, i32, i32) {
    %c0_i32 = arith.constant 0 : i32
    %c0_i32_0 = arith.constant 0 : i32
    return %arg0, %c0_i32, %arg1 : i32, i32, i32
  }
  func.func @transform_1(%arg0: i32, %arg1: i32) -> (i32, i32) {
    %c0_i32 = arith.constant 0 : i32
    %c0_i32_0 = arith.constant 0 : i32
    %c0_i32_1 = arith.constant 0 : i32
    return %c0_i32, %c0_i32_0 : i32, i32
  }
  func.func @transform_2(%arg0: i32, %arg1: i32) -> (i32, i32) {
    %c0_i32 = arith.constant 0 : i32
    %c0_i32_0 = arith.constant 0 : i32
    %c0_i32_1 = arith.constant 0 : i32
    return %c0_i32, %c0_i32_0 : i32, i32
  }
  func.func @transform_3(%arg0: i32, %arg1: i32) -> (i32, i32) {
    %c0_i32 = arith.constant 0 : i32
    %c0_i32_0 = arith.constant 0 : i32
    %c0_i32_1 = arith.constant 0 : i32
    return %c0_i32, %c0_i32_0 : i32, i32
  }
  func.func @transform_4(%arg0: i32, %arg1: i32) -> (i32, i32, i32) {
    %c0_i32 = arith.constant 0 : i32
    %c0_i32_0 = arith.constant 0 : i32
    %c0_i32_1 = arith.constant 0 : i32
    return %arg0, %c0_i32, %c0_i32_0 : i32, i32, i32
  }
}

</mosaic_0001>

<llo_original>
// kernel: tpu_custom_call.1
$region0: #{tpu_custom_call.1}
  #allocation0 [shape = 'u32[]', space=smem, size = 0x4, offset = 0x4, fixed_abs, tag = 'smem constant byte address 0x4 - core index']
  #allocation1 [shape = 'u32[144,128]{1,0:T(1,128)}', space=vmem, size = 0x12000, scoped, tag = 'internal scratch']
  #allocation2 [shape = 'f32[4,128,32]{2,1,0:T(8,128)}', space=vmem, size = 0x40000, scoped, tag = 'scratch operand']
  #allocation3 [shape = 'f32[4,32,1]{2,1,0:T(8,128)}', space=vmem, size = 0x10000, scoped, tag = 'scratch operand']
  %s0 = inlined_call_operand.vmem [shape: f32[4,128,64], index: 0, kind: input, shape index: {}]
  %s1 = inlined_call_operand.vmem [shape: f32[32,128], index: 1, kind: input, shape index: {}]
  %s2 = inlined_call_operand.vmem [shape: f32[32,1], index: 2, kind: input, shape index: {}]
  %s3 = inlined_call_operand.vmem [shape: f32[32,128], index: 3, kind: input, shape index: {}]
  %s4 = inlined_call_operand.hbm [shape: f32[4,32,128], index: 4, kind: output, shape index: {}]
  %s5 = sld [smem:[#allocation0]]
  $region34: #{tpu_custom_call.1} parent=0
    _
  %s7 = ssub.s32 1, %s5
  %s8 = scalar_select 0, %s7, %s5
  $region1: #{tpu_custom_call.1} parent=0
    #allocation4 [shape = 'u8[65536]{0}', space=vmem, size = 0x10000, scoped, tag = 'output window, operand 0, single buffered']
    #allocation5 [shape = 's32[1]{0}', space=sflag, size = 0x4, scoped, tag = 'scoped memory for tpu_custom_call.1']
    %9 = vsyncpa [#allocation5], 0
    // Predicated region
    $region2: #{tpu_custom_call.1} parent=1 // pred_check
      _
    $region3: #{tpu_custom_call.1} parent=1 // pred_check_branch
      %11 = sbr.rel (0) target = $region5
    $region4: #{tpu_custom_call.1} parent=1 // pred_region
      _
    $region5: #{tpu_custom_call.1} parent=1 // pred_fallthru
      _
    // Predicated region
    $region6: #{tpu_custom_call.1} parent=1 // pred_check
      _
    $region7: #{tpu_custom_call.1} parent=1 // pred_check_branch
      %13 = sbr.rel (0) target = $region9
    $region8: #{tpu_custom_call.1} parent=1 // pred_region
      _
    $region9: #{tpu_custom_call.1} parent=1 // pred_fallthru
      _
    // Predicated region
    $region10: #{tpu_custom_call.1} parent=1 // pred_check
      _
    $region11: #{tpu_custom_call.1} parent=1 // pred_check_branch
      %15 = sbr.rel (0) target = $region13
    $region12: #{tpu_custom_call.1} parent=1 // pred_region
      _
    $region13: #{tpu_custom_call.1} parent=1 // pred_fallthru
      _
    // Predicated region
    $region14: #{tpu_custom_call.1} parent=1 // pred_check
      _
    $region15: #{tpu_custom_call.1} parent=1 // pred_check_branch
      %17 = sbr.rel (0) target = $region17
    $region16: #{tpu_custom_call.1} parent=1 // pred_region
      _
    $region17: #{tpu_custom_call.1} parent=1 // pred_fallthru
      _
    %p18 = scmp.eq.s32.totalorder 0, 0
    // Predicated region
    $region18: #{tpu_custom_call.1} parent=1 // pred_check
      %p19 = pneg %p18
    $region19: #{tpu_custom_call.1} parent=1 // pred_check_branch
      %21 = sbr.rel (%p19) target = $region21
    $region20: #{tpu_custom_call.1} parent=1 // pred_region
      %vm22 = vcmask 261120
      %23 = vst.msk [vmem:[#allocation2] sm:$0xff] %vm22, 0.0
      %24 = vst.msk [vmem:[#allocation2 + $0x8] sm:$0xff] %vm22, 0.0
      %25 = vst.msk [vmem:[#allocation2 + $0x10] sm:$0xff] %vm22, 0.0
      %26 = vst.msk [vmem:[#allocation2 + $0x18] sm:$0xff] %vm22, 0.0
      %27 = vst.msk [vmem:[#allocation2 + $0x20] sm:$0xff] %vm22, 0.0
      %28 = vst.msk [vmem:[#allocation2 + $0x28] sm:$0xff] %vm22, 0.0
      %29 = vst.msk [vmem:[#allocation2 + $0x30] sm:$0xff] %vm22, 0.0
      %30 = vst.msk [vmem:[#allocation2 + $0x38] sm:$0xff] %vm22, 0.0
      %31 = vst.msk [vmem:[#allocation2 + $0x40] sm:$0xff] %vm22, 0.0
      %32 = vst.msk [vmem:[#allocation2 + $0x48] sm:$0xff] %vm22, 0.0
      %33 = vst.msk [vmem:[#allocation2 + $0x50] sm:$0xff] %vm22, 0.0
      %34 = vst.msk [vmem:[#allocation2 + $0x58] sm:$0xff] %vm22, 0.0
      %35 = vst.msk [vmem:[#allocation2 + $0x60] sm:$0xff] %vm22, 0.0
      %36 = vst.msk [vmem:[#allocation2 + $0x68] sm:$0xff] %vm22, 0.0
      %37 = vst.msk [vmem:[#allocation2 + $0x70] sm:$0xff] %vm22, 0.0
      %38 = vst.msk [vmem:[#allocation2 + $0x78] sm:$0xff] %vm22, 0.0
      %39 = vst.msk [vmem:[#allocation2 + $0x80] sm:$0xff] %vm22, 0.0
      %40 = vst.msk [vmem:[#allocation2 + $0x88] sm:$0xff] %vm22, 0.0
      %41 = vst.msk [vmem:[#allocation2 + $0x90] sm:$0xff] %vm22, 0.0
      %42 = vst.msk [vmem:[#allocation2 + $0x98] sm:$0xff] %vm22, 0.0
      %43 = vst.msk [vmem:[#allocation2 + $0xa0] sm:$0xff] %vm22, 0.0
      %44 = vst.msk [vmem:[#allocation2 + $0xa8] sm:$0xff] %vm22, 0.0
      %45 = vst.msk [vmem:[#allocation2 + $0xb0] sm:$0xff] %vm22, 0.0
      %46 = vst.msk [vmem:[#allocation2 + $0xb8] sm:$0xff] %vm22, 0.0
      %47 = vst.msk [vmem:[#allocation2 + $0xc0] sm:$0xff] %vm22, 0.0
      %48 = vst.msk [vmem:[#allocation2 + $0xc8] sm:$0xff] %vm22, 0.0
      %49 = vst.msk [vmem:[#allocation2 + $0xd0] sm:$0xff] %vm22, 0.0
      %50 = vst.msk [vmem:[#allocation2 + $0xd8] sm:$0xff] %vm22, 0.0
      %51 = vst.msk [vmem:[#allocation2 + $0xe0] sm:$0xff] %vm22, 0.0
      %52 = vst.msk [vmem:[#allocation2 + $0xe8] sm:$0xff] %vm22, 0.0
      %53 = vst.msk [vmem:[#allocation2 + $0xf0] sm:$0xff] %vm22, 0.0
      %54 = vst.msk [vmem:[#allocation2 + $0xf8] sm:$0xff] %vm22, 0.0
      %55 = vst.msk [vmem:[#allocation2 + $0x100] sm:$0xff] %vm22, 0.0
      %56 = vst.msk [vmem:[#allocation2 + $0x108] sm:$0xff] %vm22, 0.0
      %57 = vst.msk [vmem:[#allocation2 + $0x110] sm:$0xff] %vm22, 0.0
      %58 = vst.msk [vmem:[#allocation2 + $0x118] sm:$0xff] %vm22, 0.0
      %59 = vst.msk [vmem:[#allocation2 + $0x120] sm:$0xff] %vm22, 0.0
      %60 = vst.msk [vmem:[#allocation2 + $0x128] sm:$0xff] %vm22, 0.0
      %61 = vst.msk [vmem:[#allocation2 + $0x130] sm:$0xff] %vm22, 0.0
      %62 = vst.msk [vmem:[#allocation2 + $0x138] sm:$0xff] %vm22, 0.0
      %63 = vst.msk [vmem:[#allocation2 + $0x140] sm:$0xff] %vm22, 0.0
      %64 = vst.msk [vmem:[#allocation2 + $0x148] sm:$0xff] %vm22, 0.0
      %65 = vst.msk [vmem:[#allocation2 + $0x150] sm:$0xff] %vm22, 0.0
      %66 = vst.msk [vmem:[#allocation2 + $0x158] sm:$0xff] %vm22, 0.0
      %67 = vst.msk [vmem:[#allocation2 + $0x160] sm:$0xff] %vm22, 0.0
      %68 = vst.msk [vmem:[#allocation2 + $0x168] sm:$0xff] %vm22, 0.0
      %69 = vst.msk [vmem:[#allocation2 + $0x170] sm:$0xff] %vm22, 0.0
      %70 = vst.msk [vmem:[#allocation2 + $0x178] sm:$0xff] %vm22, 0.0
      %71 = vst.msk [vmem:[#allocation2 + $0x180] sm:$0xff] %vm22, 0.0
      %72 = vst.msk [vmem:[#allocation2 + $0x188] sm:$0xff] %vm22, 0.0
      %73 = vst.msk [vmem:[#allocation2 + $0x190] sm:$0xff] %vm22, 0.0
      %74 = vst.msk [vmem:[#allocation2 + $0x198] sm:$0xff] %vm22, 0.0
      %75 = vst.msk [vmem:[#allocation2 + $0x1a0] sm:$0xff] %vm22, 0.0
      %76 = vst.msk [vmem:[#allocation2 + $0x1a8] sm:$0xff] %vm22, 0.0
      %77 = vst.msk [vmem:[#allocation2 + $0x1b0] sm:$0xff] %vm22, 0.0
      %78 = vst.msk [vmem:[#allocation2 + $0x1b8] sm:$0xff] %vm22, 0.0
      %79 = vst.msk [vmem:[#allocation2 + $0x1c0] sm:$0xff] %vm22, 0.0
      %80 = vst.msk [vmem:[#allocation2 + $0x1c8] sm:$0xff] %vm22, 0.0
      %81 = vst.msk [vmem:[#allocation2 + $0x1d0] sm:$0xff] %vm22, 0.0
      %82 = vst.msk [vmem:[#allocation2 + $0x1d8] sm:$0xff] %vm22, 0.0
      %83 = vst.msk [vmem:[#allocation2 + $0x1e0] sm:$0xff] %vm22, 0.0
      %84 = vst.msk [vmem:[#allocation2 + $0x1e8] sm:$0xff] %vm22, 0.0
      %85 = vst.msk [vmem:[#allocation2 + $0x1f0] sm:$0xff] %vm22, 0.0
      %86 = vst.msk [vmem:[#allocation2 + $0x1f8] sm:$0xff] %vm22, 0.0
      %vm87 = vcmask 7168
      %88 = vst.msk [vmem:[#allocation3] sm:$0xff] %vm87, 0.0
      %89 = vst.msk [vmem:[#allocation3 + $0x8] sm:$0xff] %vm87, 0.0
      %90 = vst.msk [vmem:[#allocation3 + $0x10] sm:$0xff] %vm87, 0.0
      %91 = vst.msk [vmem:[#allocation3 + $0x18] sm:$0xff] %vm87, 0.0
      %92 = vst.msk [vmem:[#allocation3 + $0x20] sm:$0xff] %vm87, 0.0
      %93 = vst.msk [vmem:[#allocation3 + $0x28] sm:$0xff] %vm87, 0.0
      %94 = vst.msk [vmem:[#allocation3 + $0x30] sm:$0xff] %vm87, 0.0
      %95 = vst.msk [vmem:[#allocation3 + $0x38] sm:$0xff] %vm87, 0.0
      %96 = vst.msk [vmem:[#allocation3 + $0x40] sm:$0xff] %vm87, 0.0
      %97 = vst.msk [vmem:[#allocation3 + $0x48] sm:$0xff] %vm87, 0.0
      %98 = vst.msk [vmem:[#allocation3 + $0x50] sm:$0xff] %vm87, 0.0
      %99 = vst.msk [vmem:[#allocation3 + $0x58] sm:$0xff] %vm87, 0.0
      %100 = vst.msk [vmem:[#allocation3 + $0x60] sm:$0xff] %vm87, 0.0
      %101 = vst.msk [vmem:[#allocation3 + $0x68] sm:$0xff] %vm87, 0.0
      %102 = vst.msk [vmem:[#allocation3 + $0x70] sm:$0xff] %vm87, 0.0
      %103 = vst.msk [vmem:[#allocation3 + $0x78] sm:$0xff] %vm87, 0.0
    $region21: #{tpu_custom_call.1} parent=1 // pred_fallthru
      _
    %v104 = vld [vmem:[%s1] sm:$0xff]
    %v105 = vld [vmem:[%s1 + $0x8] sm:$0xff]
    %v106 = vld [vmem:[%s1 + $0x10] sm:$0xff]
    %v107 = vld [vmem:[%s1 + $0x18] sm:$0xff]
    %v108 = vld [vmem:[%s2] sm:$0xff]
    %v109 = vld [vmem:[%s2 + $0x8] sm:$0xff]
    %v110 = vld [vmem:[%s2 + $0x10] sm:$0xff]
    %v111 = vld [vmem:[%s2 + $0x18] sm:$0xff]
    %113 = vset.pattern.permute.xlu0 0
    %114 = vperm.xlu0 %113, %v108
    %v115 = vpop.permute.xlu0 %114
    %118 = vset.pattern.permute.xlu0 0
    %119 = vperm.xlu0 %118, %v109
    %v120 = vpop.permute.xlu0 %119
    %123 = vset.pattern.permute.xlu0 0
    %124 = vperm.xlu0 %123, %v110
    %v125 = vpop.permute.xlu0 %124
    %128 = vset.pattern.permute.xlu0 0
    %129 = vperm.xlu0 %128, %v111
    %v130 = vpop.permute.xlu0 %129
    %v132 = vld [vmem:[%s0] sm:$0xff]
    %v133 = vld [vmem:[%s0 + $0x8] sm:$0xff]
    %v134 = vld [vmem:[%s0 + $0x10] sm:$0xff]
    %v135 = vld [vmem:[%s0 + $0x18] sm:$0xff]
    %v136 = vld [vmem:[%s0 + $0x20] sm:$0xff]
    %v137 = vld [vmem:[%s0 + $0x28] sm:$0xff]
    %v138 = vld [vmem:[%s0 + $0x30] sm:$0xff]
    %v139 = vld [vmem:[%s0 + $0x38] sm:$0xff]
    %v140 = vld [vmem:[%s0 + $0x40] sm:$0xff]
    %v141 = vld [vmem:[%s0 + $0x48] sm:$0xff]
    %v142 = vld [vmem:[%s0 + $0x50] sm:$0xff]
    %v143 = vld [vmem:[%s0 + $0x58] sm:$0xff]
    %v144 = vld [vmem:[%s0 + $0x60] sm:$0xff]
    %v145 = vld [vmem:[%s0 + $0x68] sm:$0xff]
    %v146 = vld [vmem:[%s0 + $0x70] sm:$0xff]
    %v147 = vld [vmem:[%s0 + $0x78] sm:$0xff]
    %v148 = vmul.f32 %v132, %v132
    %v149 = vmul.f32 %v133, %v133
    %v150 = vmul.f32 %v134, %v134
    %v151 = vmul.f32 %v135, %v135
    %v152 = vmul.f32 %v136, %v136
    %v153 = vmul.f32 %v137, %v137
    %v154 = vmul.f32 %v138, %v138
    %v155 = vmul.f32 %v139, %v139
    %v156 = vmul.f32 %v140, %v140
    %v157 = vmul.f32 %v141, %v141
    %v158 = vmul.f32 %v142, %v142
    %v159 = vmul.f32 %v143, %v143
    %v160 = vmul.f32 %v144, %v144
    %v161 = vmul.f32 %v145, %v145
    %v162 = vmul.f32 %v146, %v146
    %v163 = vmul.f32 %v147, %v147
    %vm164 = vcmask 523264
    %v165 = vsel %vm164, %v148, 0.0
    %v166 = vsel %vm164, %v149, 0.0
    %v167 = vadd.f32 %v165, %v166
    %v168 = vsel %vm164, %v150, 0.0
    %v169 = vadd.f32 %v167, %v168
    %v170 = vsel %vm164, %v151, 0.0
    %v171 = vadd.f32 %v169, %v170
    %v172 = vsel %vm164, %v152, 0.0
    %v173 = vadd.f32 %v171, %v172
    %v174 = vsel %vm164, %v153, 0.0
    %v175 = vadd.f32 %v173, %v174
    %v176 = vsel %vm164, %v154, 0.0
    %v177 = vadd.f32 %v175, %v176
    %v178 = vsel %vm164, %v155, 0.0
    %v179 = vadd.f32 %v177, %v178
    %v180 = vsel %vm164, %v156, 0.0
    %v181 = vadd.f32 %v179, %v180
    %v182 = vsel %vm164, %v157, 0.0
    %v183 = vadd.f32 %v181, %v182
    %v184 = vsel %vm164, %v158, 0.0
    %v185 = vadd.f32 %v183, %v184
    %v186 = vsel %vm164, %v159, 0.0
    %v187 = vadd.f32 %v185, %v186
    %v188 = vsel %vm164, %v160, 0.0
    %v189 = vadd.f32 %v187, %v188
    %v190 = vsel %vm164, %v161, 0.0
    %v191 = vadd.f32 %v189, %v190
    %v192 = vsel %vm164, %v162, 0.0
    %v193 = vadd.f32 %v191, %v192
    %v194 = vsel %vm164, %v163, 0.0
    %v195 = vadd.f32 %v193, %v194
    %v196 = vrot.slane %v195, 4
    %v197 = vadd.f32 %v195, %v196
    %v198 = vrot.slane %v197, 2
    %v199 = vadd.f32 %v197, %v198
    %v200 = vrot.slane %v199, 1
    %v201 = vadd.f32 %v199, %v200
    %v202 = vmax.f32 %v201, 1e-24
    %v203 = vrsqrt.pop %v202
    %204 = vmatprep.subr.mxu0 0.0
    %205 = vmatpush1.msra.mxu0 %v132
    %206 = vmatprep.subr.mxu0 0.0
    %207 = vmatpush1.msra.mxu0 %v133
    %208 = vmatprep.subr.mxu0 0.0
    %209 = vmatpush1.msra.mxu0 %v134
    %210 = vmatprep.subr.mxu0 0.0
    %211 = vmatpush1.msra.mxu0 %v135
    %212 = vmatprep.subr.mxu0 0.0
    %213 = vmatpush1.msra.mxu0 %v136
    %214 = vmatprep.subr.mxu0 0.0
    %215 = vmatpush1.msra.mxu0 %v137
    %216 = vmatprep.subr.mxu0 0.0
    %217 = vmatpush1.msra.mxu0 %v138
    %218 = vmatprep.subr.mxu0 0.0
    %219 = vmatpush1.msra.mxu0 %v139
    %220 = vmatprep.subr.mxu0 0.0
    %221 = vmatpush1.msra.mxu0 %v140
    %222 = vmatprep.subr.mxu0 0.0
    %223 = vmatpush1.msra.mxu0 %v141
    %224 = vmatprep.subr.mxu0 0.0
    %225 = vmatpush1.msra.mxu0 %v142
    %226 = vmatprep.subr.mxu0 0.0
    %227 = vmatpush1.msra.mxu0 %v143
    %228 = vmatprep.subr.mxu0 0.0
    %229 = vmatpush1.msra.mxu0 %v144
    %230 = vmatprep.subr.mxu0 0.0
    %231 = vmatpush1.msra.mxu0 %v145
    %232 = vmatprep.subr.mxu0 0.0
    %233 = vmatpush1.msra.mxu0 %v146
    %234 = vmatprep.subr.mxu0 0.0
    %235 = vmatpush1.msra.mxu0 %v147
    %236 = vmatprep.subr.mxu0 0.0
    %237 = vmatpush1.msra.mxu0 0.0
    %238 = vmatprep.subr.mxu0 0.0
    %239 = vmatpush1.msra.mxu0 0.0
    %240 = vmatprep.subr.mxu0 0.0
    %241 = vmatpush1.msra.mxu0 0.0
    %242 = vmatprep.subr.mxu0 0.0
    %243 = vmatpush1.msra.mxu0 0.0
    %244 = vmatprep.subr.mxu0 0.0
    %245 = vmatpush1.msra.mxu0 0.0
    %246 = vmatprep.subr.mxu0 0.0
    %247 = vmatpush1.msra.mxu0 0.0
    %248 = vmatprep.subr.mxu0 0.0
    %249 = vmatpush1.msra.mxu0 0.0
    %250 = vmatprep.subr.mxu0 0.0
    %251 = vmatpush1.msra.mxu0 0.0
    %252 = vmatprep.subr.mxu0 0.0
    %253 = vmatpush1.msra.mxu0 0.0
    %254 = vmatprep.subr.mxu0 0.0
    %255 = vmatpush1.msra.mxu0 0.0
    %256 = vmatprep.subr.mxu0 0.0
    %257 = vmatpush1.msra.mxu0 0.0
    %258 = vmatprep.subr.mxu0 0.0
    %259 = vmatpush1.msra.mxu0 0.0
    %260 = vmatprep.subr.mxu0 0.0
    %261 = vmatpush1.msra.mxu0 0.0
    %262 = vmatprep.subr.mxu0 0.0
    %263 = vmatpush1.msra.mxu0 0.0
    %264 = vmatprep.subr.mxu0 0.0
    %265 = vmatpush1.msra.mxu0 0.0
    %266 = vmatprep.subr.mxu0 0.0
    %267 = vmatpush1.msra.mxu0 0.0
    %268 = vmatprep.mubr.f32.mxu0 0.0
    %269 = vmatmul.mubr.f32.gmra.mrb[0].mxu0 %v104
    %v270 = vpop.f32.mrb[0].mxu0
    %v271 = vadd.f32 0.0, %v270
    %v272 = vpop.f32.mrb[0].mxu0
    %273 = vmatprep.mubr.f32.mxu0 0.0
    %274 = vmatmul.mubr.f32.gmra.mrb[0].mxu0 %v105
    %v275 = vpop.f32.mrb[0].mxu0
    %v276 = vadd.f32 0.0, %v275
    %v277 = vpop.f32.mrb[0].mxu0
    %278 = vmatprep.mubr.f32.mxu0 0.0
    %279 = vmatmul.mubr.f32.gmra.mrb[0].mxu0 %v106
    %v280 = vpop.f32.mrb[0].mxu0
    %v281 = vadd.f32 0.0, %v280
    %v282 = vpop.f32.mrb[0].mxu0
    %283 = vmatprep.mubr.f32.mxu0 0.0
    %284 = vmatmul.mubr.f32.gmra.mrb[0].mxu0 %v107
    %v285 = vpop.f32.mrb[0].mxu0
    %v286 = vadd.f32 0.0, %v285
    %v287 = vpop.f32.mrb[0].mxu0
    %288 = vdwg.mxu0
    %v289 = vmul.f32 %v271, %v203
    %v290 = vmul.f32 %v276, %v203
    %v291 = vmul.f32 %v281, %v203
    %v292 = vmul.f32 %v286, %v203
    %v293 = vadd.f32 %v289, %v115
    %v294 = vadd.f32 %v290, %v120
    %v295 = vadd.f32 %v291, %v125
    %v296 = vadd.f32 %v292, %v130
    %v297 = vsel %vm164, %v293, -inf
    %v298 = vsel %vm164, %v294, -inf
    %v299 = vsel %vm164, %v295, -inf
    %v300 = vsel %vm164, %v296, -inf
    %v301 = vmax.f32 %v297, %v298
    %v302 = vmax.f32 %v299, %v300
    %v303 = vmax.f32 %v301, %v302
    %v304 = vrot.slane %v303, 4
    %v305 = vmax.f32 %v303, %v304
    %v306 = vrot.slane %v305, 2
    %v307 = vmax.f32 %v305, %v306
    %v308 = vrot.slane %v307, 1
    %v309 = vmax.f32 %v307, %v308
    %v310 = vsub.f32 %v293, %v309
    %v311 = vsub.f32 %v294, %v309
    %v312 = vsub.f32 %v295, %v309
    %v313 = vsub.f32 %v296, %v309
    %v314 = vmul.f32 %v310, 1.442695
    %v315 = vpow.pop %v314
    %v316 = vmul.f32 %v311, 1.442695
    %v317 = vpow.pop %v316
    %v318 = vmul.f32 %v312, 1.442695
    %v319 = vpow.pop %v318
    %v320 = vmul.f32 %v313, 1.442695
    %v321 = vpow.pop %v320
    %v322 = vsel %vm164, %v315, 0.0
    %v323 = vsel %vm164, %v317, 0.0
    %v324 = vadd.f32 %v322, %v323
    %v325 = vsel %vm164, %v319, 0.0
    %v326 = vadd.f32 %v324, %v325
    %v327 = vsel %vm164, %v321, 0.0
    %v328 = vadd.f32 %v326, %v327
    %v329 = vrot.slane %v328, 4
    %v330 = vadd.f32 %v328, %v329
    %v331 = vrot.slane %v330, 2
    %v332 = vadd.f32 %v330, %v331
    %v333 = vrot.slane %v332, 1
    %v334 = vadd.f32 %v332, %v333
    %v335 = vrcp.pop %v334
    %v336 = vmul.f32 %v315, %v335
    %v337 = vmul.f32 %v317, %v335
    %v338 = vmul.f32 %v319, %v335
    %v339 = vmul.f32 %v321, %v335
    %v340 = vld [vmem:[#allocation3] sm:$0xff]
    %v341 = vld [vmem:[#allocation3 + $0x8] sm:$0xff]
    %v342 = vld [vmem:[#allocation3 + $0x10] sm:$0xff]
    %v343 = vld [vmem:[#allocation3 + $0x18] sm:$0xff]
    %v344 = vsel %vm164, %v336, 0.0
    %345 = vadd.xlane.f32.xlu0 %v344
    %v346 = vpop.xlane.xlu0 %345
    %v347 = vsel %vm164, %v337, 0.0
    %348 = vadd.xlane.f32.xlu0 %v347
    %v349 = vpop.xlane.xlu0 %348
    %v350 = vsel %vm164, %v338, 0.0
    %351 = vadd.xlane.f32.xlu0 %v350
    %v352 = vpop.xlane.xlu0 %351
    %v353 = vsel %vm164, %v339, 0.0
    %354 = vadd.xlane.f32.xlu0 %v353
    %v355 = vpop.xlane.xlu0 %354
    %v356 = vadd.f32 %v340, %v346
    %v357 = vadd.f32 %v341, %v349
    %v358 = vadd.f32 %v342, %v352
    %v359 = vadd.f32 %v343, %v355
    %vm360 = vcmask 7168
    %361 = vst.msk [vmem:[#allocation3] sm:$0xff] %vm360, %v356
    %362 = vst.msk [vmem:[#allocation3 + $0x8] sm:$0xff] %vm360, %v357
    %363 = vst.msk [vmem:[#allocation3 + $0x10] sm:$0xff] %vm360, %v358
    %364 = vst.msk [vmem:[#allocation3 + $0x18] sm:$0xff] %vm360, %v359
    %v365 = vmul.f32 %v336, %v203
    %v366 = vmul.f32 %v337, %v203
    %v367 = vmul.f32 %v338, %v203
    %v368 = vmul.f32 %v339, %v203
    %v369 = vld [vmem:[#allocation2] sm:$0xff]
    %v370 = vld [vmem:[#allocation2 + $0x8] sm:$0xff]
    %v371 = vld [vmem:[#allocation2 + $0x10] sm:$0xff]
    %v372 = vld [vmem:[#allocation2 + $0x18] sm:$0xff]
    %v373 = vld [vmem:[#allocation2 + $0x20] sm:$0xff]
    %v374 = vld [vmem:[#allocation2 + $0x28] sm:$0xff]
    %v375 = vld [vmem:[#allocation2 + $0x30] sm:$0xff]
    %v376 = vld [vmem:[#allocation2 + $0x38] sm:$0xff]
    %v377 = vld [vmem:[#allocation2 + $0x40] sm:$0xff]
    %v378 = vld [vmem:[#allocation2 + $0x48] sm:$0xff]
    %v379 = vld [vmem:[#allocation2 + $0x50] sm:$0xff]
    %v380 = vld [vmem:[#allocation2 + $0x58] sm:$0xff]
    %v381 = vld [vmem:[#allocation2 + $0x60] sm:$0xff]
    %v382 = vld [vmem:[#allocation2 + $0x68] sm:$0xff]
    %v383 = vld [vmem:[#allocation2 + $0x70] sm:$0xff]
    %v384 = vld [vmem:[#allocation2 + $0x78] sm:$0xff]
    %v386 = vsel %vm164, %v132, 0
    %v389 = vsel %vm164, %v133, 0
    %v392 = vsel %vm164, %v134, 0
    %v395 = vsel %vm164, %v135, 0
    %v398 = vsel %vm164, %v136, 0
    %v401 = vsel %vm164, %v137, 0
    %v404 = vsel %vm164, %v138, 0
    %v407 = vsel %vm164, %v139, 0
    %v410 = vsel %vm164, %v140, 0
    %v413 = vsel %vm164, %v141, 0
    %v416 = vsel %vm164, %v142, 0
    %v419 = vsel %vm164, %v143, 0
    %v422 = vsel %vm164, %v144, 0
    %v425 = vsel %vm164, %v145, 0
    %v428 = vsel %vm164, %v146, 0
    %v431 = vsel %vm164, %v147, 0
    %v434 = vsel %vm164, %v365, 0
    %v437 = vsel %vm164, %v366, 0
    %v440 = vsel %vm164, %v367, 0
    %v443 = vsel %vm164, %v368, 0
    %445 = vmatprep.subr.mxu0 0.0
    %446 = vmatpush1.xpose.msra.mxu0 %v434
    %447 = vmatprep.subr.mxu0 0.0
    %448 = vmatpush1.xpose.msra.mxu0 %v437
    %449 = vmatprep.subr.mxu0 0.0
    %450 = vmatpush1.xpose.msra.mxu0 %v440
    %451 = vmatprep.subr.mxu0 0.0
    %452 = vmatpush1.xpose.msra.mxu0 %v443
    %453 = vmatprep.subr.mxu0 0.0
    %454 = vmatpush1.xpose.msra.mxu0 0.0
    %455 = vmatprep.subr.mxu0 0.0
    %456 = vmatpush1.xpose.msra.mxu0 0.0
    %457 = vmatprep.subr.mxu0 0.0
    %458 = vmatpush1.xpose.msra.mxu0 0.0
    %459 = vmatprep.subr.mxu0 0.0
    %460 = vmatpush1.xpose.msra.mxu0 0.0
    %461 = vmatprep.subr.mxu0 0.0
    %462 = vmatpush1.xpose.msra.mxu0 0.0
    %463 = vmatprep.subr.mxu0 0.0
    %464 = vmatpush1.xpose.msra.mxu0 0.0
    %465 = vmatprep.subr.mxu0 0.0
    %466 = vmatpush1.xpose.msra.mxu0 0.0
    %467 = vmatprep.subr.mxu0 0.0
    %468 = vmatpush1.xpose.msra.mxu0 0.0
    %469 = vmatprep.subr.mxu0 0.0
    %470 = vmatpush1.xpose.msra.mxu0 0.0
    %471 = vmatprep.subr.mxu0 0.0
    %472 = vmatpush1.xpose.msra.mxu0 0.0
    %473 = vmatprep.subr.mxu0 0.0
    %474 = vmatpush1.xpose.msra.mxu0 0.0
    %475 = vmatprep.subr.mxu0 0.0
    %476 = vmatpush1.xpose.msra.mxu0 0.0
    %477 = vmatprep.subr.mxu0 0.0
    %478 = vmatpush1.xpose.msra.mxu0 0.0
    %479 = vmatprep.subr.mxu0 0.0
    %480 = vmatpush1.xpose.msra.mxu0 0.0
    %481 = vmatprep.subr.mxu0 0.0
    %482 = vmatpush1.xpose.msra.mxu0 0.0
    %483 = vmatprep.subr.mxu0 0.0
    %484 = vmatpush1.xpose.msra.mxu0 0.0
    %485 = vmatprep.subr.mxu0 0.0
    %486 = vmatpush1.xpose.msra.mxu0 0.0
    %487 = vmatprep.subr.mxu0 0.0
    %488 = vmatpush1.xpose.msra.mxu0 0.0
    %489 = vmatprep.subr.mxu0 0.0
    %490 = vmatpush1.xpose.msra.mxu0 0.0
    %491 = vmatprep.subr.mxu0 0.0
    %492 = vmatpush1.xpose.msra.mxu0 0.0
    %493 = vmatprep.subr.mxu0 0.0
    %494 = vmatpush1.xpose.msra.mxu0 0.0
    %495 = vmatprep.subr.mxu0 0.0
    %496 = vmatpush1.xpose.msra.mxu0 0.0
    %497 = vmatprep.subr.mxu0 0.0
    %498 = vmatpush1.xpose.msra.mxu0 0.0
    %499 = vmatprep.subr.mxu0 0.0
    %500 = vmatpush1.xpose.msra.mxu0 0.0
    %501 = vmatprep.subr.mxu0 0.0
    %502 = vmatpush1.xpose.msra.mxu0 0.0
    %503 = vmatprep.subr.mxu0 0.0
    %504 = vmatpush1.xpose.msra.mxu0 0.0
    %505 = vmatprep.subr.mxu0 0.0
    %506 = vmatpush1.xpose.msra.mxu0 0.0
    %507 = vmatprep.subr.mxu0 0.0
    %508 = vmatpush1.xpose.msra.mxu0 0.0
    %509 = vmatprep.mubr.f32.mxu0 0.0
    %510 = vmatmul.mubr.f32.gmra.mrb[0].mxu0 %v386
    %v511 = vpop.f32.mrb[0].mxu0
    %v512 = vadd.f32 0.0, %v511
    %v513 = vpop.f32.mrb[0].mxu0
    %514 = vmatprep.mubr.f32.mxu0 0.0
    %515 = vmatmul.mubr.f32.gmra.mrb[0].mxu0 %v389
    %v516 = vpop.f32.mrb[0].mxu0
    %v517 = vadd.f32 0.0, %v516
    %v518 = vpop.f32.mrb[0].mxu0
    %519 = vmatprep.mubr.f32.mxu0 0.0
    %520 = vmatmul.mubr.f32.gmra.mrb[0].mxu0 %v392
    %v521 = vpop.f32.mrb[0].mxu0
    %v522 = vadd.f32 0.0, %v521
    %v523 = vpop.f32.mrb[0].mxu0
    %524 = vmatprep.mubr.f32.mxu0 0.0
    %525 = vmatmul.mubr.f32.gmra.mrb[0].mxu0 %v395
    %v526 = vpop.f32.mrb[0].mxu0
    %v527 = vadd.f32 0.0, %v526
    %v528 = vpop.f32.mrb[0].mxu0
    %529 = vmatprep.mubr.f32.mxu0 0.0
    %530 = vmatmul.mubr.f32.gmra.mrb[0].mxu0 %v398
    %v531 = vpop.f32.mrb[0].mxu0
    %v532 = vadd.f32 0.0, %v531
    %v533 = vpop.f32.mrb[0].mxu0
    %534 = vmatprep.mubr.f32.mxu0 0.0
    %535 = vmatmul.mubr.f32.gmra.mrb[0].mxu0 %v401
    %v536 = vpop.f32.mrb[0].mxu0
    %v537 = vadd.f32 0.0, %v536
    %v538 = vpop.f32.mrb[0].mxu0
    %539 = vmatprep.mubr.f32.mxu0 0.0
    %540 = vmatmul.mubr.f32.gmra.mrb[0].mxu0 %v404
    %v541 = vpop.f32.mrb[0].mxu0
    %v542 = vadd.f32 0.0, %v541
    %v543 = vpop.f32.mrb[0].mxu0
    %544 = vmatprep.mubr.f32.mxu0 0.0
    %545 = vmatmul.mubr.f32.gmra.mrb[0].mxu0 %v407
    %v546 = vpop.f32.mrb[0].mxu0
    %v547 = vadd.f32 0.0, %v546
    %v548 = vpop.f32.mrb[0].mxu0
    %549 = vmatprep.mubr.f32.mxu0 0.0
    %550 = vmatmul.mubr.f32.gmra.mrb[0].mxu0 %v410
    %v551 = vpop.f32.mrb[0].mxu0
    %v552 = vadd.f32 0.0, %v551
    %v553 = vpop.f32.mrb[0].mxu0
    %554 = vmatprep.mubr.f32.mxu0 0.0
    %555 = vmatmul.mubr.f32.gmra.mrb[0].mxu0 %v413
    %v556 = vpop.f32.mrb[0].mxu0
    %v557 = vadd.f32 0.0, %v556
    %v558 = vpop.f32.mrb[0].mxu0
    %559 = vmatprep.mubr.f32.mxu0 0.0
    %560 = vmatmul.mubr.f32.gmra.mrb[0].mxu0 %v416
    %v561 = vpop.f32.mrb[0].mxu0
    %v562 = vadd.f32 0.0, %v561
    %v563 = vpop.f32.mrb[0].mxu0
    %564 = vmatprep.mubr.f32.mxu0 0.0
    %565 = vmatmul.mubr.f32.gmra.mrb[0].mxu0 %v419
    %v566 = vpop.f32.mrb[0].mxu0
    %v567 = vadd.f32 0.0, %v566
    %v568 = vpop.f32.mrb[0].mxu0
    %569 = vmatprep.mubr.f32.mxu0 0.0
    %570 = vmatmul.mubr.f32.gmra.mrb[0].mxu0 %v422
    %v571 = vpop.f32.mrb[0].mxu0
    %v572 = vadd.f32 0.0, %v571
    %v573 = vpop.f32.mrb[0].mxu0
    %574 = vmatprep.mubr.f32.mxu0 0.0
    %575 = vmatmul.mubr.f32.gmra.mrb[0].mxu0 %v425
    %v576 = vpop.f32.mrb[0].mxu0
    %v577 = vadd.f32 0.0, %v576
    %v578 = vpop.f32.mrb[0].mxu0
    %579 = vmatprep.mubr.f32.mxu0 0.0
    %580 = vmatmul.mubr.f32.gmra.mrb[0].mxu0 %v428
    %v581 = vpop.f32.mrb[0].mxu0
    %v582 = vadd.f32 0.0, %v581
    %v583 = vpop.f32.mrb[0].mxu0
    %584 = vmatprep.mubr.f32.mxu0 0.0
    %585 = vmatmul.mubr.f32.gmra.mrb[0].mxu0 %v431
    %v586 = vpop.f32.mrb[0].mxu0
    %v587 = vadd.f32 0.0, %v586
    %v588 = vpop.f32.mrb[0].mxu0
    %589 = vdwg.mxu0
    %v590 = vadd.f32 %v369, %v512
    %v591 = vadd.f32 %v370, %v517
    %v592 = vadd.f32 %v371, %v522
    %v593 = vadd.f32 %v372, %v527
    %v594 = vadd.f32 %v373, %v532
    %v595 = vadd.f32 %v374, %v537
    %v596 = vadd.f32 %v375, %v542
    %v597 = vadd.f32 %v376, %v547
    %v598 = vadd.f32 %v377, %v552
    %v599 = vadd.f32 %v378, %v557
    %v600 = vadd.f32 %v379, %v562
    %v601 = vadd.f32 %v380, %v567
    %v602 = vadd.f32 %v381, %v572
    %v603 = vadd.f32 %v382, %v577
    %v604 = vadd.f32 %v383, %v582
    %v605 = vadd.f32 %v384, %v587
    %vm606 = vcmask 261120
    %607 = vst.msk [vmem:[#allocation2] sm:$0xff] %vm606, %v590
    %608 = vst.msk [vmem:[#allocation2 + $0x8] sm:$0xff] %vm606, %v591
    %609 = vst.msk [vmem:[#allocation2 + $0x10] sm:$0xff] %vm606, %v592
    %610 = vst.msk [vmem:[#allocation2 + $0x18] sm:$0xff] %vm606, %v593
    %611 = vst.msk [vmem:[#allocation2 + $0x20] sm:$0xff] %vm606, %v594
    %612 = vst.msk [vmem:[#allocation2 + $0x28] sm:$0xff] %vm606, %v595
    %613 = vst.msk [vmem:[#allocation2 + $0x30] sm:$0xff] %vm606, %v596
    %614 = vst.msk [vmem:[#allocation2 + $0x38] sm:$0xff] %vm606, %v597
    %615 = vst.msk [vmem:[#allocation2 + $0x40] sm:$0xff] %vm606, %v598
    %616 = vst.msk [vmem:[#allocation2 + $0x48] sm:$0xff] %vm606, %v599
    %617 = vst.msk [vmem:[#allocation2 + $0x50] sm:$0xff] %vm606, %v600
    %618 = vst.msk [vmem:[#allocation2 + $0x58] sm:$0xff] %vm606, %v601
    %619 = vst.msk [vmem:[#allocation2 + $0x60] sm:$0xff] %vm606, %v602
    %620 = vst.msk [vmem:[#allocation2 + $0x68] sm:$0xff] %vm606, %v603
    %621 = vst.msk [vmem:[#allocation2 + $0x70] sm:$0xff] %vm606, %v604
    %622 = vst.msk [vmem:[#allocation2 + $0x78] sm:$0xff] %vm606, %v605
    %s623 = scalar_lea.vmem %s0, 128
    %v624 = vld [vmem:[%s623] sm:$0xff]
    %v625 = vld [vmem:[%s623 + $0x8] sm:$0xff]
    %v626 = vld [vmem:[%s623 + $0x10] sm:$0xff]
    %v627 = vld [vmem:[%s623 + $0x18] sm:$0xff]
    %v628 = vld [vmem:[%s623 + $0x20] sm:$0xff]
    %v629 = vld [vmem:[%s623 + $0x28] sm:$0xff]
    %v630 = vld [vmem:[%s623 + $0x30] sm:$0xff]
    %v631 = vld [vmem:[%s623 + $0x38] sm:$0xff]
    %v632 = vld [vmem:[%s623 + $0x40] sm:$0xff]
    %v633 = vld [vmem:[%s623 + $0x48] sm:$0xff]
    %v634 = vld [vmem:[%s623 + $0x50] sm:$0xff]
    %v635 = vld [vmem:[%s623 + $0x58] sm:$0xff]
    %v636 = vld [vmem:[%s623 + $0x60] sm:$0xff]
    %v637 = vld [vmem:[%s623 + $0x68] sm:$0xff]
    %v638 = vld [vmem:[%s623 + $0x70] sm:$0xff]
    %v639 = vld [vmem:[%s623 + $0x78] sm:$0xff]
    %v640 = vmul.f32 %v624, %v624
    %v641 = vmul.f32 %v625, %v625
    %v642 = vmul.f32 %v626, %v626
    %v643 = vmul.f32 %v627, %v627
    %v644 = vmul.f32 %v628, %v628
    %v645 = vmul.f32 %v629, %v629
    %v646 = vmul.f32 %v630, %v630
    %v647 = vmul.f32 %v631, %v631
    %v648 = vmul.f32 %v632, %v632
    %v649 = vmul.f32 %v633, %v633
    %v650 = vmul.f32 %v634, %v634
    %v651 = vmul.f32 %v635, %v635
    %v652 = vmul.f32 %v636, %v636
    %v653 = vmul.f32 %v637, %v637
    %v654 = vmul.f32 %v638, %v638
    %v655 = vmul.f32 %v639, %v639
    %v656 = vsel %vm164, %v640, 0.0
    %v657 = vsel %vm164, %v641, 0.0
    %v658 = vadd.f32 %v656, %v657
    %v659 = vsel %vm164, %v642, 0.0
    %v660 = vadd.f32 %v658, %v659
    %v661 = vsel %vm164, %v643, 0.0
    %v662 = vadd.f32 %v660, %v661
    %v663 = vsel %vm164, %v644, 0.0
    %v664 = vadd.f32 %v662, %v663
    %v665 = vsel %vm164, %v645, 0.0
    %v666 = vadd.f32 %v664, %v665
    %v667 = vsel %vm164, %v646, 0.0
    %v668 = vadd.f32 %v666, %v667
    %v669 = vsel %vm164, %v647, 0.0
    %v670 = vadd.f32 %v668, %v669
    %v671 = vsel %vm164, %v648, 0.0
    %v672 = vadd.f32 %v670, %v671
    %v673 = vsel %vm164, %v649, 0.0
    %v674 = vadd.f32 %v672, %v673
    %v675 = vsel %vm164, %v650, 0.0
    %v676 = vadd.f32 %v674, %v675
    %v677 = vsel %vm164, %v651, 0.0
    %v678 = vadd.f32 %v676, %v677
    %v679 = vsel %vm164, %v652, 0.0
    %v680 = vadd.f32 %v678, %v679
    %v681 = vsel %vm164, %v653, 0.0
    %v682 = vadd.f32 %v680, %v681
    %v683 = vsel %vm164, %v654, 0.0
    %v684 = vadd.f32 %v682, %v683
    %v685 = vsel %vm164, %v655, 0.0
    %v686 = vadd.f32 %v684, %v685
    %v687 = vrot.slane %v686, 4
    %v688 = vadd.f32 %v686, %v687
    %v689 = vrot.slane %v688, 2
    %v690 = vadd.f32 %v688, %v689
    %v691 = vrot.slane %v690, 1
    %v692 = vadd.f32 %v690, %v691
    %v693 = vmax.f32 %v692, 1e-24
    %v694 = vrsqrt.pop %v693
    %695 = vmatprep.subr.mxu0 0.0
    %696 = vmatpush1.msra.mxu0 %v624
    %697 = vmatprep.subr.mxu0 0.0
    %698 = vmatpush1.msra.mxu0 %v625
    %699 = vmatprep.subr.mxu0 0.0
    %700 = vmatpush1.msra.mxu0 %v626
    %701 = vmatprep.subr.mxu0 0.0
    %702 = vmatpush1.msra.mxu0 %v627
    %703 = vmatprep.subr.mxu0 0.0
    %704 = vmatpush1.msra.mxu0 %v628
    %705 = vmatprep.subr.mxu0 0.0
    %706 = vmatpush1.msra.mxu0 %v629
    %707 = vmatprep.subr.mxu0 0.0
    %708 = vmatpush1.msra.mxu0 %v630
    %709 = vmatprep.subr.mxu0 0.0
    %710 = vmatpush1.msra.mxu0 %v631
    %711 = vmatprep.subr.mxu0 0.0
    %712 = vmatpush1.msra.mxu0 %v632
    %713 = vmatprep.subr.mxu0 0.0
    %714 = vmatpush1.msra.mxu0 %v633
    %715 = vmatprep.subr.mxu0 0.0
    %716 = vmatpush1.msra.mxu0 %v634
    %717 = vmatprep.subr.mxu0 0.0
    %718 = vmatpush1.msra.mxu0 %v635
    %719 = vmatprep.subr.mxu0 0.0
    %720 = vmatpush1.msra.mxu0 %v636
    %721 = vmatprep.subr.mxu0 0.0
    %722 = vmatpush1.msra.mxu0 %v637
    %723 = vmatprep.subr.mxu0 0.0
    %724 = vmatpush1.msra.mxu0 %v638
    %725 = vmatprep.subr.mxu0 0.0
    %726 = vmatpush1.msra.mxu0 %v639
    %727 = vmatprep.subr.mxu0 0.0
    %728 = vmatpush1.msra.mxu0 0.0
    %729 = vmatprep.subr.mxu0 0.0
    %730 = vmatpush1.msra.mxu0 0.0
    %731 = vmatprep.subr.mxu0 0.0
    %732 = vmatpush1.msra.mxu0 0.0
    %733 = vmatprep.subr.mxu0 0.0
    %734 = vmatpush1.msra.mxu0 0.0
    %735 = vmatprep.subr.mxu0 0.0
    %736 = vmatpush1.msra.mxu0 0.0
    %737 = vmatprep.subr.mxu0 0.0
    %738 = vmatpush1.msra.mxu0 0.0
    %739 = vmatprep.subr.mxu0 0.0
    %740 = vmatpush1.msra.mxu0 0.0
    %741 = vmatprep.subr.mxu0 0.0
    %742 = vmatpush1.msra.mxu0 0.0
    %743 = vmatprep.subr.mxu0 0.0
    %744 = vmatpush1.msra.mxu0 0.0
    %745 = vmatprep.subr.mxu0 0.0
    %746 = vmatpush1.msra.mxu0 0.0
    %747 = vmatprep.subr.mxu0 0.0
    %748 = vmatpush1.msra.mxu0 0.0
    %749 = vmatprep.subr.mxu0 0.0
    %750 = vmatpush1.msra.mxu0 0.0
    %751 = vmatprep.subr.mxu0 0.0
    %752 = vmatpush1.msra.mxu0 0.0
    %753 = vmatprep.subr.mxu0 0.0
    %754 = vmatpush1.msra.mxu0 0.0
    %755 = vmatprep.subr.mxu0 0.0
    %756 = vmatpush1.msra.mxu0 0.0
    %757 = vmatprep.subr.mxu0 0.0
    %758 = vmatpush1.msra.mxu0 0.0
    %759 = vmatprep.mubr.f32.mxu0 0.0
    %760 = vmatmul.mubr.f32.gmra.mrb[0].mxu0 %v104
    %v761 = vpop.f32.mrb[0].mxu0
    %v762 = vadd.f32 0.0, %v761
    %v763 = vpop.f32.mrb[0].mxu0
    %764 = vmatprep.mubr.f32.mxu0 0.0
    %765 = vmatmul.mubr.f32.gmra.mrb[0].mxu0 %v105
    %v766 = vpop.f32.mrb[0].mxu0
    %v767 = vadd.f32 0.0, %v766
    %v768 = vpop.f32.mrb[0].mxu0
    %769 = vmatprep.mubr.f32.mxu0 0.0
    %770 = vmatmul.mubr.f32.gmra.mrb[0].mxu0 %v106
    %v771 = vpop.f32.mrb[0].mxu0
    %v772 = vadd.f32 0.0, %v771
    %v773 = vpop.f32.mrb[0].mxu0
    %774 = vmatprep.mubr.f32.mxu0 0.0
    %775 = vmatmul.mubr.f32.gmra.mrb[0].mxu0 %v107
    %v776 = vpop.f32.mrb[0].mxu0
    %v777 = vadd.f32 0.0, %v776
    %v778 = vpop.f32.mrb[0].mxu0
    %779 = vdwg.mxu0
    %v780 = vmul.f32 %v762, %v694
    %v781 = vmul.f32 %v767, %v694
    %v782 = vmul.f32 %v772, %v694
    %v783 = vmul.f32 %v777, %v694
    %v784 = vadd.f32 %v780, %v115
    %v785 = vadd.f32 %v781, %v120
    %v786 = vadd.f32 %v782, %v125
    %v787 = vadd.f32 %v783, %v130
    %v788 = vsel %vm164, %v784, -inf
    %v789 = vsel %vm164, %v785, -inf
    %v790 = vsel %vm164, %v786, -inf
    %v791 = vsel %vm164, %v787, -inf
    %v792 = vmax.f32 %v788, %v789
    %v793 = vmax.f32 %v790, %v791
    %v794 = vmax.f32 %v792, %v793
    %v795 = vrot.slane %v794, 4
    %v796 = vmax.f32 %v794, %v795
    %v797 = vrot.slane %v796, 2
    %v798 = vmax.f32 %v796, %v797
    %v799 = vrot.slane %v798, 1
    %v800 = vmax.f32 %v798, %v799
    %v801 = vsub.f32 %v784, %v800
    %v802 = vsub.f32 %v785, %v800
    %v803 = vsub.f32 %v786, %v800
    %v804 = vsub.f32 %v787, %v800
    %v805 = vmul.f32 %v801, 1.442695
    %v806 = vpow.pop %v805
    %v807 = vmul.f32 %v802, 1.442695
    %v808 = vpow.pop %v807
    %v809 = vmul.f32 %v803, 1.442695
    %v810 = vpow.pop %v809
    %v811 = vmul.f32 %v804, 1.442695
    %v812 = vpow.pop %v811
    %v813 = vsel %vm164, %v806, 0.0
    %v814 = vsel %vm164, %v808, 0.0
    %v815 = vadd.f32 %v813, %v814
    %v816 = vsel %vm164, %v810, 0.0
    %v817 = vadd.f32 %v815, %v816
    %v818 = vsel %vm164, %v812, 0.0
    %v819 = vadd.f32 %v817, %v818
    %v820 = vrot.slane %v819, 4
    %v821 = vadd.f32 %v819, %v820
    %v822 = vrot.slane %v821, 2
    %v823 = vadd.f32 %v821, %v822
    %v824 = vrot.slane %v823, 1
    %v825 = vadd.f32 %v823, %v824
    %v826 = vrcp.pop %v825
    %v827 = vmul.f32 %v806, %v826
    %v828 = vmul.f32 %v808, %v826
    %v829 = vmul.f32 %v810, %v826
    %v830 = vmul.f32 %v812, %v826
    %s831 = scalar_lea.vmem [#allocation3], 32
    %v832 = vld [vmem:[%s831] sm:$0xff]
    %v833 = vld [vmem:[%s831 + $0x8] sm:$0xff]
    %v834 = vld [vmem:[%s831 + $0x10] sm:$0xff]
    %v835 = vld [vmem:[%s831 + $0x18] sm:$0xff]
    %v836 = vsel %vm164, %v827, 0.0
    %837 = vadd.xlane.f32.xlu0 %v836
    %v838 = vpop.xlane.xlu0 %837
    %v839 = vsel %vm164, %v828, 0.0
    %840 = vadd.xlane.f32.xlu0 %v839
    %v841 = vpop.xlane.xlu0 %840
    %v842 = vsel %vm164, %v829, 0.0
    %843 = vadd.xlane.f32.xlu0 %v842
    %v844 = vpop.xlane.xlu0 %843
    %v845 = vsel %vm164, %v830, 0.0
    %846 = vadd.xlane.f32.xlu0 %v845
    %v847 = vpop.xlane.xlu0 %846
    %v848 = vadd.f32 %v832, %v838
    %v849 = vadd.f32 %v833, %v841
    %v850 = vadd.f32 %v834, %v844
    %v851 = vadd.f32 %v835, %v847
    %852 = vst.msk [vmem:[%s831] sm:$0xff] %vm360, %v848
    %853 = vst.msk [vmem:[%s831 + $0x8] sm:$0xff] %vm360, %v849
    %854 = vst.msk [vmem:[%s831 + $0x10] sm:$0xff] %vm360, %v850
    %855 = vst.msk [vmem:[%s831 + $0x18] sm:$0xff] %vm360, %v851
    %v856 = vmul.f32 %v827, %v694
    %v857 = vmul.f32 %v828, %v694
    %v858 = vmul.f32 %v829, %v694
    %v859 = vmul.f32 %v830, %v694
    %s860 = scalar_lea.vmem [#allocation2], 128
    %v861 = vld [vmem:[%s860] sm:$0xff]
    %v862 = vld [vmem:[%s860 + $0x8] sm:$0xff]
    %v863 = vld [vmem:[%s860 + $0x10] sm:$0xff]
    %v864 = vld [vmem:[%s860 + $0x18] sm:$0xff]
    %v865 = vld [vmem:[%s860 + $0x20] sm:$0xff]
    %v866 = vld [vmem:[%s860 + $0x28] sm:$0xff]
    %v867 = vld [vmem:[%s860 + $0x30] sm:$0xff]
    %v868 = vld [vmem:[%s860 + $0x38] sm:$0xff]
    %v869 = vld [vmem:[%s860 + $0x40] sm:$0xff]
    %v870 = vld [vmem:[%s860 + $0x48] sm:$0xff]
    %v871 = vld [vmem:[%s860 + $0x50] sm:$0xff]
    %v872 = vld [vmem:[%s860 + $0x58] sm:$0xff]
    %v873 = vld [vmem:[%s860 + $0x60] sm:$0xff]
    %v874 = vld [vmem:[%s860 + $0x68] sm:$0xff]
    %v875 = vld [vmem:[%s860 + $0x70] sm:$0xff]
    %v876 = vld [vmem:[%s860 + $0x78] sm:$0xff]
    %v878 = vsel %vm164, %v624, 0
    %v881 = vsel %vm164, %v625, 0
    %v884 = vsel %vm164, %v626, 0
    %v887 = vsel %vm164, %v627, 0
    %v890 = vsel %vm164, %v628, 0
    %v893 = vsel %vm164, %v629, 0
    %v896 = vsel %vm164, %v630, 0
    %v899 = vsel %vm164, %v631, 0
    %v902 = vsel %vm164, %v632, 0
    %v905 = vsel %vm164, %v633, 0
    %v908 = vsel %vm164, %v634, 0
    %v911 = vsel %vm164, %v635, 0
    %v914 = vsel %vm164, %v636, 0
    %v917 = vsel %vm164, %v637, 0
    %v920 = vsel %vm164, %v638, 0
    %v923 = vsel %vm164, %v639, 0
    %v926 = vsel %vm164, %v856, 0
    %v929 = vsel %vm164, %v857, 0
    %v932 = vsel %vm164, %v858, 0
    %v935 = vsel %vm164, %v859, 0
    %937 = vmatprep.subr.mxu0 0.0
    %938 = vmatpush1.xpose.msra.mxu0 %v926
    %939 = vmatprep.subr.mxu0 0.0
    %940 = vmatpush1.xpose.msra.mxu0 %v929
    %941 = vmatprep.subr.mxu0 0.0
    %942 = vmatpush1.xpose.msra.mxu0 %v932
    %943 = vmatprep.subr.mxu0 0.0
    %944 = vmatpush1.xpose.msra.mxu0 %v935
    %945 = vmatprep.subr.mxu0 0.0
    %946 = vmatpush1.xpose.msra.mxu0 0.0
    %947 = vmatprep.subr.mxu0 0.0
    %948 = vmatpush1.xpose.msra.mxu0 0.0
    %949 = vmatprep.subr.mxu0 0.0
    %950 = vmatpush1.xpose.msra.mxu0 0.0
    %951 = vmatprep.subr.mxu0 0.0
    %952 = vmatpush1.xpose.msra.mxu0 0.0
    %953 = vmatprep.subr.mxu0 0.0
    %954 = vmatpush1.xpose.msra.mxu0 0.0
    %955 = vmatprep.subr.mxu0 0.0
    %956 = vmatpush1.xpose.msra.mxu0 0.0
    %957 = vmatprep.subr.mxu0 0.0
    %958 = vmatpush1.xpose.msra.mxu0 0.0
    %959 = vmatprep.subr.mxu0 0.0
    %960 = vmatpush1.xpose.msra.mxu0 0.0
    %961 = vmatprep.subr.mxu0 0.0
    %962 = vmatpush1.xpose.msra.mxu0 0.0
    %963 = vmatprep.subr.mxu0 0.0
    %964 = vmatpush1.xpose.msra.mxu0 0.0
    %965 = vmatprep.subr.mxu0 0.0
    %966 = vmatpush1.xpose.msra.mxu0 0.0
    %967 = vmatprep.subr.mxu0 0.0
    %968 = vmatpush1.xpose.msra.mxu0 0.0
    %969 = vmatprep.subr.mxu0 0.0
    %970 = vmatpush1.xpose.msra.mxu0 0.0
    %971 = vmatprep.subr.mxu0 0.0
    %972 = vmatpush1.xpose.msra.mxu0 0.0
    %973 = vmatprep.subr.mxu0 0.0
    %974 = vmatpush1.xpose.msra.mxu0 0.0
    %975 = vmatprep.subr.mxu0 0.0
    %976 = vmatpush1.xpose.msra.mxu0 0.0
    %977 = vmatprep.subr.mxu0 0.0
    %978 = vmatpush1.xpose.msra.mxu0 0.0
    %979 = vmatprep.subr.mxu0 0.0
    %980 = vmatpush1.xpose.msra.mxu0 0.0
    %981 = vmatprep.subr.mxu0 0.0
    %982 = vmatpush1.xpose.msra.mxu0 0.0
    %983 = vmatprep.subr.mxu0 0.0
    %984 = vmatpush1.xpose.msra.mxu0 0.0
    %985 = vmatprep.subr.mxu0 0.0
    %986 = vmatpush1.xpose.msra.mxu0 0.0
    %987 = vmatprep.subr.mxu0 0.0
    %988 = vmatpush1.xpose.msra.mxu0 0.0
    %989 = vmatprep.subr.mxu0 0.0
    %990 = vmatpush1.xpose.msra.mxu0 0.0
    %991 = vmatprep.subr.mxu0 0.0
    %992 = vmatpush1.xpose.msra.mxu0 0.0
    %993 = vmatprep.subr.mxu0 0.0
    %994 = vmatpush1.xpose.msra.mxu0 0.0
    %995 = vmatprep.subr.mxu0 0.0
    %996 = vmatpush1.xpose.msra.mxu0 0.0
    %997 = vmatprep.subr.mxu0 0.0
    %998 = vmatpush1.xpose.msra.mxu0 0.0
    %999 = vmatprep.subr.mxu0 0.0
    %1000 = vmatpush1.xpose.msra.mxu0 0.0
    %1001 = vmatprep.mubr.f32.mxu0 0.0
    %1002 = vmatmul.mubr.f32.gmra.mrb[0].mxu0 %v878
    %v1003 = vpop.f32.mrb[0].mxu0
    %v1004 = vadd.f32 0.0, %v1003
    %v1005 = vpop.f32.mrb[0].mxu0
    %1006 = vmatprep.mubr.f32.mxu0 0.0
    %1007 = vmatmul.mubr.f32.gmra.mrb[0].mxu0 %v881
    %v1008 = vpop.f32.mrb[0].mxu0
    %v1009 = vadd.f32 0.0, %v1008
    %v1010 = vpop.f32.mrb[0].mxu0
    %1011 = vmatprep.mubr.f32.mxu0 0.0
    %1012 = vmatmul.mubr.f32.gmra.mrb[0].mxu0 %v884
    %v1013 = vpop.f32.mrb[0].mxu0
    %v1014 = vadd.f32 0.0, %v1013
    %v1015 = vpop.f32.mrb[0].mxu0
    %1016 = vmatprep.mubr.f32.mxu0 0.0
    %1017 = vmatmul.mubr.f32.gmra.mrb[0].mxu0 %v887
    %v1018 = vpop.f32.mrb[0].mxu0
    %v1019 = vadd.f32 0.0, %v1018
    %v1020 = vpop.f32.mrb[0].mxu0
    %1021 = vmatprep.mubr.f32.mxu0 0.0
    %1022 = vmatmul.mubr.f32.gmra.mrb[0].mxu0 %v890
    %v1023 = vpop.f32.mrb[0].mxu0
    %v1024 = vadd.f32 0.0, %v1023
    %v1025 = vpop.f32.mrb[0].mxu0
    %1026 = vmatprep.mubr.f32.mxu0 0.0
    %1027 = vmatmul.mubr.f32.gmra.mrb[0].mxu0 %v893
    %v1028 = vpop.f32.mrb[0].mxu0
    %v1029 = vadd.f32 0.0, %v1028
    %v1030 = vpop.f32.mrb[0].mxu0
    %1031 = vmatprep.mubr.f32.mxu0 0.0
    %1032 = vmatmul.mubr.f32.gmra.mrb[0].mxu0 %v896
    %v1033 = vpop.f32.mrb[0].mxu0
    %v1034 = vadd.f32 0.0, %v1033
    %v1035 = vpop.f32.mrb[0].mxu0
    %1036 = vmatprep.mubr.f32.mxu0 0.0
    %1037 = vmatmul.mubr.f32.gmra.mrb[0].mxu0 %v899
    %v1038 = vpop.f32.mrb[0].mxu0
    %v1039 = vadd.f32 0.0, %v1038
    %v1040 = vpop.f32.mrb[0].mxu0
    %1041 = vmatprep.mubr.f32.mxu0 0.0
    %1042 = vmatmul.mubr.f32.gmra.mrb[0].mxu0 %v902
    %v1043 = vpop.f32.mrb[0].mxu0
    %v1044 = vadd.f32 0.0, %v1043
    %v1045 = vpop.f32.mrb[0].mxu0
    %1046 = vmatprep.mubr.f32.mxu0 0.0
    %1047 = vmatmul.mubr.f32.gmra.mrb[0].mxu0 %v905
    %v1048 = vpop.f32.mrb[0].mxu0
    %v1049 = vadd.f32 0.0, %v1048
    %v1050 = vpop.f32.mrb[0].mxu0
    %1051 = vmatprep.mubr.f32.mxu0 0.0
    %1052 = vmatmul.mubr.f32.gmra.mrb[0].mxu0 %v908
    %v1053 = vpop.f32.mrb[0].mxu0
    %v1054 = vadd.f32 0.0, %v1053
    %v1055 = vpop.f32.mrb[0].mxu0
    %1056 = vmatprep.mubr.f32.mxu0 0.0
    %1057 = vmatmul.mubr.f32.gmra.mrb[0].mxu0 %v911
    %v1058 = vpop.f32.mrb[0].mxu0
    %v1059 = vadd.f32 0.0, %v1058
    %v1060 = vpop.f32.mrb[0].mxu0
    %1061 = vmatprep.mubr.f32.mxu0 0.0
    %1062 = vmatmul.mubr.f32.gmra.mrb[0].mxu0 %v914
    %v1063 = vpop.f32.mrb[0].mxu0
    %v1064 = vadd.f32 0.0, %v1063
    %v1065 = vpop.f32.mrb[0].mxu0
    %1066 = vmatprep.mubr.f32.mxu0 0.0
    %1067 = vmatmul.mubr.f32.gmra.mrb[0].mxu0 %v917
    %v1068 = vpop.f32.mrb[0].mxu0
    %v1069 = vadd.f32 0.0, %v1068
    %v1070 = vpop.f32.mrb[0].mxu0
    %1071 = vmatprep.mubr.f32.mxu0 0.0
    %1072 = vmatmul.mubr.f32.gmra.mrb[0].mxu0 %v920
    %v1073 = vpop.f32.mrb[0].mxu0
    %v1074 = vadd.f32 0.0, %v1073
    %v1075 = vpop.f32.mrb[0].mxu0
    %1076 = vmatprep.mubr.f32.mxu0 0.0
    %1077 = vmatmul.mubr.f32.gmra.mrb[0].mxu0 %v923
    %v1078 = vpop.f32.mrb[0].mxu0
    %v1079 = vadd.f32 0.0, %v1078
    %v1080 = vpop.f32.mrb[0].mxu0
    %1081 = vdwg.mxu0
    %v1082 = vadd.f32 %v861, %v1004
    %v1083 = vadd.f32 %v862, %v1009
    %v1084 = vadd.f32 %v863, %v1014
    %v1085 = vadd.f32 %v864, %v1019
    %v1086 = vadd.f32 %v865, %v1024
    %v1087 = vadd.f32 %v866, %v1029
    %v1088 = vadd.f32 %v867, %v1034
    %v1089 = vadd.f32 %v868, %v1039
    %v1090 = vadd.f32 %v869, %v1044
    %v1091 = vadd.f32 %v870, %v1049
    %v1092 = vadd.f32 %v871, %v1054
    %v1093 = vadd.f32 %v872, %v1059
    %v1094 = vadd.f32 %v873, %v1064
    %v1095 = vadd.f32 %v874, %v1069
    %v1096 = vadd.f32 %v875, %v1074
    %v1097 = vadd.f32 %v876, %v1079
    %1098 = vst.msk [vmem:[%s860] sm:$0xff] %vm606, %v1082
    %1099 = vst.msk [vmem:[%s860 + $0x8] sm:$0xff] %vm606, %v1083
    %1100 = vst.msk [vmem:[%s860 + $0x10] sm:$0xff] %vm606, %v1084
    %1101 = vst.msk [vmem:[%s860 + $0x18] sm:$0xff] %vm606, %v1085
    %1102 = vst.msk [vmem:[%s860 + $0x20] sm:$0xff] %vm606, %v1086
    %1103 = vst.msk [vmem:[%s860 + $0x28] sm:$0xff] %vm606, %v1087
    %1104 = vst.msk [vmem:[%s860 + $0x30] sm:$0xff] %vm606, %v1088
    %1105 = vst.msk [vmem:[%s860 + $0x38] sm:$0xff] %vm606, %v1089
    %1106 = vst.msk [vmem:[%s860 + $0x40] sm:$0xff] %vm606, %v1090
    %1107 = vst.msk [vmem:[%s860 + $0x48] sm:$0xff] %vm606, %v1091
    %1108 = vst.msk [vmem:[%s860 + $0x50] sm:$0xff] %vm606, %v1092
    %1109 = vst.msk [vmem:[%s860 + $0x58] sm:$0xff] %vm606, %v1093
    %1110 = vst.msk [vmem:[%s860 + $0x60] sm:$0xff] %vm606, %v1094
    %1111 = vst.msk [vmem:[%s860 + $0x68] sm:$0xff] %vm606, %v1095
    %1112 = vst.msk [vmem:[%s860 + $0x70] sm:$0xff] %vm606, %v1096
    %1113 = vst.msk [vmem:[%s860 + $0x78] sm:$0xff] %vm606, %v1097
    %s1114 = scalar_lea.vmem %s0, 256
    %v1115 = vld [vmem:[%s1114] sm:$0xff]
    %v1116 = vld [vmem:[%s1114 + $0x8] sm:$0xff]
    %v1117 = vld [vmem:[%s1114 + $0x10] sm:$0xff]
    %v1118 = vld [vmem:[%s1114 + $0x18] sm:$0xff]
    %v1119 = vld [vmem:[%s1114 + $0x20] sm:$0xff]
    %v1120 = vld [vmem:[%s1114 + $0x28] sm:$0xff]
    %v1121 = vld [vmem:[%s1114 + $0x30] sm:$0xff]
    %v1122 = vld [vmem:[%s1114 + $0x38] sm:$0xff]
    %v1123 = vld [vmem:[%s1114 + $0x40] sm:$0xff]
    %v1124 = vld [vmem:[%s1114 + $0x48] sm:$0xff]
    %v1125 = vld [vmem:[%s1114 + $0x50] sm:$0xff]
    %v1126 = vld [vmem:[%s1114 + $0x58] sm:$0xff]
    %v1127 = vld [vmem:[%s1114 + $0x60] sm:$0xff]
    %v1128 = vld [vmem:[%s1114 + $0x68] sm:$0xff]
    %v1129 = vld [vmem:[%s1114 + $0x70] sm:$0xff]
    %v1130 = vld [vmem:[%s1114 + $0x78] sm:$0xff]
    %v1131 = vmul.f32 %v1115, %v1115
    %v1132 = vmul.f32 %v1116, %v1116
    %v1133 = vmul.f32 %v1117, %v1117
    %v1134 = vmul.f32 %v1118, %v1118
    %v1135 = vmul.f32 %v1119, %v1119
    %v1136 = vmul.f32 %v1120, %v1120
    %v1137 = vmul.f32 %v1121, %v1121
    %v1138 = vmul.f32 %v1122, %v1122
    %v1139 = vmul.f32 %v1123, %v1123
    %v1140 = vmul.f32 %v1124, %v1124
    %v1141 = vmul.f32 %v1125, %v1125
    %v1142 = vmul.f32 %v1126, %v1126
    %v1143 = vmul.f32 %v1127, %v1127
    %v1144 = vmul.f32 %v1128, %v1128
    %v1145 = vmul.f32 %v1129, %v1129
    %v1146 = vmul.f32 %v1130, %v1130
    %v1147 = vsel %vm164, %v1131, 0.0
    %v1148 = vsel %vm164, %v1132, 0.0
    %v1149 = vadd.f32 %v1147, %v1148
    %v1150 = vsel %vm164, %v1133, 0.0
    %v1151 = vadd.f32 %v1149, %v1150
    %v1152 = vsel %vm164, %v1134, 0.0
    %v1153 = vadd.f32 %v1151, %v1152
    %v1154 = vsel %vm164, %v1135, 0.0
    %v1155 = vadd.f32 %v1153, %v1154
    %v1156 = vsel %vm164, %v1136, 0.0
    %v1157 = vadd.f32 %v1155, %v1156
    %v1158 = vsel %vm164, %v1137, 0.0
    %v1159 = vadd.f32 %v1157, %v1158
    %v1160 = vsel %vm164, %v1138, 0.0
    %v1161 = vadd.f32 %v1159, %v1160
    %v1162 = vsel %vm164, %v1139, 0.0
    %v1163 = vadd.f32 %v1161, %v1162
    %v1164 = vsel %vm164, %v1140, 0.0
    %v1165 = vadd.f32 %v1163, %v1164
    %v1166 = vsel %vm164, %v1141, 0.0
    %v1167 = vadd.f32 %v1165, %v1166
    %v1168 = vsel %vm164, %v1142, 0.0
    %v1169 = vadd.f32 %v1167, %v1168
    %v1170 = vsel %vm164, %v1143, 0.0
    %v1171 = vadd.f32 %v1169, %v1170
    %v1172 = vsel %vm164, %v1144, 0.0
    %v1173 = vadd.f32 %v1171, %v1172
    %v1174 = vsel %vm164, %v1145, 0.0
    %v1175 = vadd.f32 %v1173, %v1174
    %v1176 = vsel %vm164, %v1146, 0.0
    %v1177 = vadd.f32 %v1175, %v1176
    %v1178 = vrot.slane %v1177, 4
    %v1179 = vadd.f32 %v1177, %v1178
    %v1180 = vrot.slane %v1179, 2
    %v1181 = vadd.f32 %v1179, %v1180
    %v1182 = vrot.slane %v1181, 1
    %v1183 = vadd.f32 %v1181, %v1182
    %v1184 = vmax.f32 %v1183, 1e-24
    %v1185 = vrsqrt.pop %v1184
    %1186 = vmatprep.subr.mxu0 0.0
    %1187 = vmatpush1.msra.mxu0 %v1115
    %1188 = vmatprep.subr.mxu0 0.0
    %1189 = vmatpush1.msra.mxu0 %v1116
    %1190 = vmatprep.subr.mxu0 0.0
    %1191 = vmatpush1.msra.mxu0 %v1117
    %1192 = vmatprep.subr.mxu0 0.0
    %1193 = vmatpush1.msra.mxu0 %v1118
    %1194 = vmatprep.subr.mxu0 0.0
    %1195 = vmatpush1.msra.mxu0 %v1119
    %1196 = vmatprep.subr.mxu0 0.0
    %1197 = vmatpush1.msra.mxu0 %v1120
    %1198 = vmatprep.subr.mxu0 0.0
    %1199 = vmatpush1.msra.mxu0 %v1121
    %1200 = vmatprep.subr.mxu0 0.0
    %1201 = vmatpush1.msra.mxu0 %v1122
    %1202 = vmatprep.subr.mxu0 0.0
    %1203 = vmatpush1.msra.mxu0 %v1123
    %1204 = vmatprep.subr.mxu0 0.0
    %1205 = vmatpush1.msra.mxu0 %v1124
    %1206 = vmatprep.subr.mxu0 0.0
    %1207 = vmatpush1.msra.mxu0 %v1125
    %1208 = vmatprep.subr.mxu0 0.0
    %1209 = vmatpush1.msra.mxu0 %v1126
    %1210 = vmatprep.subr.mxu0 0.0
    %1211 = vmatpush1.msra.mxu0 %v1127
    %1212 = vmatprep.subr.mxu0 0.0
    %1213 = vmatpush1.msra.mxu0 %v1128
    %1214 = vmatprep.subr.mxu0 0.0
    %1215 = vmatpush1.msra.mxu0 %v1129
    %1216 = vmatprep.subr.mxu0 0.0
    %1217 = vmatpush1.msra.mxu0 %v1130
    %1218 = vmatprep.subr.mxu0 0.0
    %1219 = vmatpush1.msra.mxu0 0.0
    %1220 = vmatprep.subr.mxu0 0.0
    %1221 = vmatpush1.msra.mxu0 0.0
    %1222 = vmatprep.subr.mxu0 0.0
    %1223 = vmatpush1.msra.mxu0 0.0
    %1224 = vmatprep.subr.mxu0 0.0
    %1225 = vmatpush1.msra.mxu0 0.0
    %1226 = vmatprep.subr.mxu0 0.0
    %1227 = vmatpush1.msra.mxu0 0.0
    %1228 = vmatprep.subr.mxu0 0.0
    %1229 = vmatpush1.msra.mxu0 0.0
    %1230 = vmatprep.subr.mxu0 0.0
    %1231 = vmatpush1.msra.mxu0 0.0
    %1232 = vmatprep.subr.mxu0 0.0
    %1233 = vmatpush1.msra.mxu0 0.0
    %1234 = vmatprep.subr.mxu0 0.0
    %1235 = vmatpush1.msra.mxu0 0.0
    %1236 = vmatprep.subr.mxu0 0.0
    %1237 = vmatpush1.msra.mxu0 0.0
    %1238 = vmatprep.subr.mxu0 0.0
    %1239 = vmatpush1.msra.mxu0 0.0
    %1240 = vmatprep.subr.mxu0 0.0
    %1241 = vmatpush1.msra.mxu0 0.0
    %1242 = vmatprep.subr.mxu0 0.0
    %1243 = vmatpush1.msra.mxu0 0.0
    %1244 = vmatprep.subr.mxu0 0.0
    %1245 = vmatpush1.msra.mxu0 0.0
    %1246 = vmatprep.subr.mxu0 0.0
    %1247 = vmatpush1.msra.mxu0 0.0
    %1248 = vmatprep.subr.mxu0 0.0
    %1249 = vmatpush1.msra.mxu0 0.0
    %1250 = vmatprep.mubr.f32.mxu0 0.0
    %1251 = vmatmul.mubr.f32.gmra.mrb[0].mxu0 %v104
    %v1252 = vpop.f32.mrb[0].mxu0
    %v1253 = vadd.f32 0.0, %v1252
    %v1254 = vpop.f32.mrb[0].mxu0
    %1255 = vmatprep.mubr.f32.mxu0 0.0
    %1256 = vmatmul.mubr.f32.gmra.mrb[0].mxu0 %v105
    %v1257 = vpop.f32.mrb[0].mxu0
    %v1258 = vadd.f32 0.0, %v1257
    %v1259 = vpop.f32.mrb[0].mxu0
    %1260 = vmatprep.mubr.f32.mxu0 0.0
    %1261 = vmatmul.mubr.f32.gmra.mrb[0].mxu0 %v106
    %v1262 = vpop.f32.mrb[0].mxu0
    %v1263 = vadd.f32 0.0, %v1262
    %v1264 = vpop.f32.mrb[0].mxu0
    %1265 = vmatprep.mubr.f32.mxu0 0.0
    %1266 = vmatmul.mubr.f32.gmra.mrb[0].mxu0 %v107
    %v1267 = vpop.f32.mrb[0].mxu0
    %v1268 = vadd.f32 0.0, %v1267
    %v1269 = vpop.f32.mrb[0].mxu0
    %1270 = vdwg.mxu0
    %v1271 = vmul.f32 %v1253, %v1185
    %v1272 = vmul.f32 %v1258, %v1185
    %v1273 = vmul.f32 %v1263, %v1185
    %v1274 = vmul.f32 %v1268, %v1185
    %v1275 = vadd.f32 %v1271, %v115
    %v1276 = vadd.f32 %v1272, %v120
    %v1277 = vadd.f32 %v1273, %v125
    %v1278 = vadd.f32 %v1274, %v130
    %v1279 = vsel %vm164, %v1275, -inf
    %v1280 = vsel %vm164, %v1276, -inf
    %v1281 = vsel %vm164, %v1277, -inf
    %v1282 = vsel %vm164, %v1278, -inf
    %v1283 = vmax.f32 %v1279, %v1280
    %v1284 = vmax.f32 %v1281, %v1282
    %v1285 = vmax.f32 %v1283, %v1284
    %v1286 = vrot.slane %v1285, 4
    %v1287 = vmax.f32 %v1285, %v1286
    %v1288 = vrot.slane %v1287, 2
    %v1289 = vmax.f32 %v1287, %v1288
    %v1290 = vrot.slane %v1289, 1
    %v1291 = vmax.f32 %v1289, %v1290
    %v1292 = vsub.f32 %v1275, %v1291
    %v1293 = vsub.f32 %v1276, %v1291
    %v1294 = vsub.f32 %v1277, %v1291
    %v1295 = vsub.f32 %v1278, %v1291
    %v1296 = vmul.f32 %v1292, 1.442695
    %v1297 = vpow.pop %v1296
    %v1298 = vmul.f32 %v1293, 1.442695
    %v1299 = vpow.pop %v1298
    %v1300 = vmul.f32 %v1294, 1.442695
    %v1301 = vpow.pop %v1300
    %v1302 = vmul.f32 %v1295, 1.442695
    %v1303 = vpow.pop %v1302
    %v1304 = vsel %vm164, %v1297, 0.0
    %v1305 = vsel %vm164, %v1299, 0.0
    %v1306 = vadd.f32 %v1304, %v1305
    %v1307 = vsel %vm164, %v1301, 0.0
    %v1308 = vadd.f32 %v1306, %v1307
    %v1309 = vsel %vm164, %v1303, 0.0
    %v1310 = vadd.f32 %v1308, %v1309
    %v1311 = vrot.slane %v1310, 4
    %v1312 = vadd.f32 %v1310, %v1311
    %v1313 = vrot.slane %v1312, 2
    %v1314 = vadd.f32 %v1312, %v1313
    %v1315 = vrot.slane %v1314, 1
    %v1316 = vadd.f32 %v1314, %v1315
    %v1317 = vrcp.pop %v1316
    %v1318 = vmul.f32 %v1297, %v1317
    %v1319 = vmul.f32 %v1299, %v1317
    %v1320 = vmul.f32 %v1301, %v1317
    %v1321 = vmul.f32 %v1303, %v1317
    %s1322 = scalar_lea.vmem [#allocation3], 64
    %v1323 = vld [vmem:[%s1322] sm:$0xff]
    %v1324 = vld [vmem:[%s1322 + $0x8] sm:$0xff]
    %v1325 = vld [vmem:[%s1322 + $0x10] sm:$0xff]
    %v1326 = vld [vmem:[%s1322 + $0x18] sm:$0xff]
    %v1327 = vsel %vm164, %v1318, 0.0
    %1328 = vadd.xlane.f32.xlu0 %v1327
    %v1329 = vpop.xlane.xlu0 %1328
    %v1330 = vsel %vm164, %v1319, 0.0
    %1331 = vadd.xlane.f32.xlu0 %v1330
    %v1332 = vpop.xlane.xlu0 %1331
    %v1333 = vsel %vm164, %v1320, 0.0
    %1334 = vadd.xlane.f32.xlu0 %v1333
    %v1335 = vpop.xlane.xlu0 %1334
    %v1336 = vsel %vm164, %v1321, 0.0
    %1337 = vadd.xlane.f32.xlu0 %v1336
    %v1338 = vpop.xlane.xlu0 %1337
    %v1339 = vadd.f32 %v1323, %v1329
    %v1340 = vadd.f32 %v1324, %v1332
    %v1341 = vadd.f32 %v1325, %v1335
    %v1342 = vadd.f32 %v1326, %v1338
    %1343 = vst.msk [vmem:[%s1322] sm:$0xff] %vm360, %v1339
    %1344 = vst.msk [vmem:[%s1322 + $0x8] sm:$0xff] %vm360, %v1340
    %1345 = vst.msk [vmem:[%s1322 + $0x10] sm:$0xff] %vm360, %v1341
    %1346 = vst.msk [vmem:[%s1322 + $0x18] sm:$0xff] %vm360, %v1342
    %v1347 = vmul.f32 %v1318, %v1185
    %v1348 = vmul.f32 %v1319, %v1185
    %v1349 = vmul.f32 %v1320, %v1185
    %v1350 = vmul.f32 %v1321, %v1185
    %s1351 = scalar_lea.vmem [#allocation2], 256
    %v1352 = vld [vmem:[%s1351] sm:$0xff]
    %v1353 = vld [vmem:[%s1351 + $0x8] sm:$0xff]
    %v1354 = vld [vmem:[%s1351 + $0x10] sm:$0xff]
    %v1355 = vld [vmem:[%s1351 + $0x18] sm:$0xff]
    %v1356 = vld [vmem:[%s1351 + $0x20] sm:$0xff]
    %v1357 = vld [vmem:[%s1351 + $0x28] sm:$0xff]
    %v1358 = vld [vmem:[%s1351 + $0x30] sm:$0xff]
    %v1359 = vld [vmem:[%s1351 + $0x38] sm:$0xff]
    %v1360 = vld [vmem:[%s1351 + $0x40] sm:$0xff]
    %v1361 = vld [vmem:[%s1351 + $0x48] sm:$0xff]
    %v1362 = vld [vmem:[%s1351 + $0x50] sm:$0xff]
    %v1363 = vld [vmem:[%s1351 + $0x58] sm:$0xff]
    %v1364 = vld [vmem:[%s1351 + $0x60] sm:$0xff]
    %v1365 = vld [vmem:[%s1351 + $0x68] sm:$0xff]
    %v1366 = vld [vmem:[%s1351 + $0x70] sm:$0xff]
    %v1367 = vld [vmem:[%s1351 + $0x78] sm:$0xff]
    %v1369 = vsel %vm164, %v1115, 0
    %v1372 = vsel %vm164, %v1116, 0
    %v1375 = vsel %vm164, %v1117, 0
    %v1378 = vsel %vm164, %v1118, 0
    %v1381 = vsel %vm164, %v1119, 0
    %v1384 = vsel %vm164, %v1120, 0
    %v1387 = vsel %vm164, %v1121, 0
    %v1390 = vsel %vm164, %v1122, 0
    %v1393 = vsel %vm164, %v1123, 0
    %v1396 = vsel %vm164, %v1124, 0
    %v1399 = vsel %vm164, %v1125, 0
    %v1402 = vsel %vm164, %v1126, 0
    %v1405 = vsel %vm164, %v1127, 0
    %v1408 = vsel %vm164, %v1128, 0
    %v1411 = vsel %vm164, %v1129, 0
    %v1414 = vsel %vm164, %v1130, 0
    %v1417 = vsel %vm164, %v1347, 0
    %v1420 = vsel %vm164, %v1348, 0
    %v1423 = vsel %vm164, %v1349, 0
    %v1426 = vsel %vm164, %v1350, 0
    %1428 = vmatprep.subr.mxu0 0.0
    %1429 = vmatpush1.xpose.msra.mxu0 %v1417
    %1430 = vmatprep.subr.mxu0 0.0
    %1431 = vmatpush1.xpose.msra.mxu0 %v1420
    %1432 = vmatprep.subr.mxu0 0.0
    %1433 = vmatpush1.xpose.msra.mxu0 %v1423
    %1434 = vmatprep.subr.mxu0 0.0
    %1435 = vmatpush1.xpose.msra.mxu0 %v1426
    %1436 = vmatprep.subr.mxu0 0.0
    %1437 = vmatpush1.xpose.msra.mxu0 0.0
    %1438 = vmatprep.subr.mxu0 0.0
    %1439 = vmatpush1.xpose.msra.mxu0 0.0
    %1440 = vmatprep.subr.mxu0 0.0
    %1441 = vmatpush1.xpose.msra.mxu0 0.0
    %1442 = vmatprep.subr.mxu0 0.0
    %1443 = vmatpush1.xpose.msra.mxu0 0.0
    %1444 = vmatprep.subr.mxu0 0.0
    %1445 = vmatpush1.xpose.msra.mxu0 0.0
    %1446 = vmatprep.subr.mxu0 0.0
    %1447 = vmatpush1.xpose.msra.mxu0 0.0
    %1448 = vmatprep.subr.mxu0 0.0
    %1449 = vmatpush1.xpose.msra.mxu0 0.0
    %1450 = vmatprep.subr.mxu0 0.0
    %1451 = vmatpush1.xpose.msra.mxu0 0.0
    %1452 = vmatprep.subr.mxu0 0.0
    %1453 = vmatpush1.xpose.msra.mxu0 0.0
    %1454 = vmatprep.subr.mxu0 0.0
    %1455 = vmatpush1.xpose.msra.mxu0 0.0
    %1456 = vmatprep.subr.mxu0 0.0
    %1457 = vmatpush1.xpose.msra.mxu0 0.0
    %1458 = vmatprep.subr.mxu0 0.0
    %1459 = vmatpush1.xpose.msra.mxu0 0.0
    %1460 = vmatprep.subr.mxu0 0.0
    %1461 = vmatpush1.xpose.msra.mxu0 0.0
    %1462 = vmatprep.subr.mxu0 0.0
    %1463 = vmatpush1.xpose.msra.mxu0 0.0
    %1464 = vmatprep.subr.mxu0 0.0
    %1465 = vmatpush1.xpose.msra.mxu0 0.0
    %1466 = vmatprep.subr.mxu0 0.0
    %1467 = vmatpush1.xpose.msra.mxu0 0.0
    %1468 = vmatprep.subr.mxu0 0.0
    %1469 = vmatpush1.xpose.msra.mxu0 0.0
    %1470 = vmatprep.subr.mxu0 0.0
    %1471 = vmatpush1.xpose.msra.mxu0 0.0
    %1472 = vmatprep.subr.mxu0 0.0
    %1473 = vmatpush1.xpose.msra.mxu0 0.0
    %1474 = vmatprep.subr.mxu0 0.0
    %1475 = vmatpush1.xpose.msra.mxu0 0.0
    %1476 = vmatprep.subr.mxu0 0.0
    %1477 = vmatpush1.xpose.msra.mxu0 0.0
    %1478 = vmatprep.subr.mxu0 0.0
    %1479 = vmatpush1.xpose.msra.mxu0 0.0
    %1480 = vmatprep.subr.mxu0 0.0
    %1481 = vmatpush1.xpose.msra.mxu0 0.0
    %1482 = vmatprep.subr.mxu0 0.0
    %1483 = vmatpush1.xpose.msra.mxu0 0.0
    %1484 = vmatprep.subr.mxu0 0.0
    %1485 = vmatpush1.xpose.msra.mxu0 0.0
    %1486 = vmatprep.subr.mxu0 0.0
    %1487 = vmatpush1.xpose.msra.mxu0 0.0
    %1488 = vmatprep.subr.mxu0 0.0
    %1489 = vmatpush1.xpose.msra.mxu0 0.0
    %1490 = vmatprep.subr.mxu0 0.0
    %1491 = vmatpush1.xpose.msra.mxu0 0.0
    %1492 = vmatprep.mubr.f32.mxu0 0.0
    %1493 = vmatmul.mubr.f32.gmra.mrb[0].mxu0 %v1369
    %v1494 = vpop.f32.mrb[0].mxu0
    %v1495 = vadd.f32 0.0, %v1494
    %v1496 = vpop.f32.mrb[0].mxu0
    %1497 = vmatprep.mubr.f32.mxu0 0.0
    %1498 = vmatmul.mubr.f32.gmra.mrb[0].mxu0 %v1372
    %v1499 = vpop.f32.mrb[0].mxu0
    %v1500 = vadd.f32 0.0, %v1499
    %v1501 = vpop.f32.mrb[0].mxu0
    %1502 = vmatprep.mubr.f32.mxu0 0.0
    %1503 = vmatmul.mubr.f32.gmra.mrb[0].mxu0 %v1375
    %v1504 = vpop.f32.mrb[0].mxu0
    %v1505 = vadd.f32 0.0, %v1504
    %v1506 = vpop.f32.mrb[0].mxu0
    %1507 = vmatprep.mubr.f32.mxu0 0.0
    %1508 = vmatmul.mubr.f32.gmra.mrb[0].mxu0 %v1378
    %v1509 = vpop.f32.mrb[0].mxu0
    %v1510 = vadd.f32 0.0, %v1509
    %v1511 = vpop.f32.mrb[0].mxu0
    %1512 = vmatprep.mubr.f32.mxu0 0.0
    %1513 = vmatmul.mubr.f32.gmra.mrb[0].mxu0 %v1381
    %v1514 = vpop.f32.mrb[0].mxu0
    %v1515 = vadd.f32 0.0, %v1514
    %v1516 = vpop.f32.mrb[0].mxu0
    %1517 = vmatprep.mubr.f32.mxu0 0.0
    %1518 = vmatmul.mubr.f32.gmra.mrb[0].mxu0 %v1384
    %v1519 = vpop.f32.mrb[0].mxu0
    %v1520 = vadd.f32 0.0, %v1519
    %v1521 = vpop.f32.mrb[0].mxu0
    %1522 = vmatprep.mubr.f32.mxu0 0.0
    %1523 = vmatmul.mubr.f32.gmra.mrb[0].mxu0 %v1387
    %v1524 = vpop.f32.mrb[0].mxu0
    %v1525 = vadd.f32 0.0, %v1524
    %v1526 = vpop.f32.mrb[0].mxu0
    %1527 = vmatprep.mubr.f32.mxu0 0.0
    %1528 = vmatmul.mubr.f32.gmra.mrb[0].mxu0 %v1390
    %v1529 = vpop.f32.mrb[0].mxu0
    %v1530 = vadd.f32 0.0, %v1529
    %v1531 = vpop.f32.mrb[0].mxu0
    %1532 = vmatprep.mubr.f32.mxu0 0.0
    %1533 = vmatmul.mubr.f32.gmra.mrb[0].mxu0 %v1393
    %v1534 = vpop.f32.mrb[0].mxu0
    %v1535 = vadd.f32 0.0, %v1534
    %v1536 = vpop.f32.mrb[0].mxu0
    %1537 = vmatprep.mubr.f32.mxu0 0.0
    %1538 = vmatmul.mubr.f32.gmra.mrb[0].mxu0 %v1396
    %v1539 = vpop.f32.mrb[0].mxu0
    %v1540 = vadd.f32 0.0, %v1539
    %v1541 = vpop.f32.mrb[0].mxu0
    %1542 = vmatprep.mubr.f32.mxu0 0.0
    %1543 = vmatmul.mubr.f32.gmra.mrb[0].mxu0 %v1399
    %v1544 = vpop.f32.mrb[0].mxu0
    %v1545 = vadd.f32 0.0, %v1544
    %v1546 = vpop.f32.mrb[0].mxu0
    %1547 = vmatprep.mubr.f32.mxu0 0.0
    %1548 = vmatmul.mubr.f32.gmra.mrb[0].mxu0 %v1402
    %v1549 = vpop.f32.mrb[0].mxu0
    %v1550 = vadd.f32 0.0, %v1549
    %v1551 = vpop.f32.mrb[0].mxu0
    %1552 = vmatprep.mubr.f32.mxu0 0.0
    %1553 = vmatmul.mubr.f32.gmra.mrb[0].mxu0 %v1405
    %v1554 = vpop.f32.mrb[0].mxu0
    %v1555 = vadd.f32 0.0, %v1554
    %v1556 = vpop.f32.mrb[0].mxu0
    %1557 = vmatprep.mubr.f32.mxu0 0.0
    %1558 = vmatmul.mubr.f32.gmra.mrb[0].mxu0 %v1408
    %v1559 = vpop.f32.mrb[0].mxu0
    %v1560 = vadd.f32 0.0, %v1559
    %v1561 = vpop.f32.mrb[0].mxu0
    %1562 = vmatprep.mubr.f32.mxu0 0.0
    %1563 = vmatmul.mubr.f32.gmra.mrb[0].mxu0 %v1411
    %v1564 = vpop.f32.mrb[0].mxu0
    %v1565 = vadd.f32 0.0, %v1564
    %v1566 = vpop.f32.mrb[0].mxu0
    %1567 = vmatprep.mubr.f32.mxu0 0.0
    %1568 = vmatmul.mubr.f32.gmra.mrb[0].mxu0 %v1414
    %v1569 = vpop.f32.mrb[0].mxu0
    %v1570 = vadd.f32 0.0, %v1569
    %v1571 = vpop.f32.mrb[0].mxu0
    %1572 = vdwg.mxu0
    %v1573 = vadd.f32 %v1352, %v1495
    %v1574 = vadd.f32 %v1353, %v1500
    %v1575 = vadd.f32 %v1354, %v1505
    %v1576 = vadd.f32 %v1355, %v1510
    %v1577 = vadd.f32 %v1356, %v1515
    %v1578 = vadd.f32 %v1357, %v1520
    %v1579 = vadd.f32 %v1358, %v1525
    %v1580 = vadd.f32 %v1359, %v1530
    %v1581 = vadd.f32 %v1360, %v1535
    %v1582 = vadd.f32 %v1361, %v1540
    %v1583 = vadd.f32 %v1362, %v1545
    %v1584 = vadd.f32 %v1363, %v1550
    %v1585 = vadd.f32 %v1364, %v1555
    %v1586 = vadd.f32 %v1365, %v1560
    %v1587 = vadd.f32 %v1366, %v1565
    %v1588 = vadd.f32 %v1367, %v1570
    %1589 = vst.msk [vmem:[%s1351] sm:$0xff] %vm606, %v1573
    %1590 = vst.msk [vmem:[%s1351 + $0x8] sm:$0xff] %vm606, %v1574
    %1591 = vst.msk [vmem:[%s1351 + $0x10] sm:$0xff] %vm606, %v1575
    %1592 = vst.msk [vmem:[%s1351 + $0x18] sm:$0xff] %vm606, %v1576
    %1593 = vst.msk [vmem:[%s1351 + $0x20] sm:$0xff] %vm606, %v1577
    %1594 = vst.msk [vmem:[%s1351 + $0x28] sm:$0xff] %vm606, %v1578
    %1595 = vst.msk [vmem:[%s1351 + $0x30] sm:$0xff] %vm606, %v1579
    %1596 = vst.msk [vmem:[%s1351 + $0x38] sm:$0xff] %vm606, %v1580
    %1597 = vst.msk [vmem:[%s1351 + $0x40] sm:$0xff] %vm606, %v1581
    %1598 = vst.msk [vmem:[%s1351 + $0x48] sm:$0xff] %vm606, %v1582
    %1599 = vst.msk [vmem:[%s1351 + $0x50] sm:$0xff] %vm606, %v1583
    %1600 = vst.msk [vmem:[%s1351 + $0x58] sm:$0xff] %vm606, %v1584
    %1601 = vst.msk [vmem:[%s1351 + $0x60] sm:$0xff] %vm606, %v1585
    %1602 = vst.msk [vmem:[%s1351 + $0x68] sm:$0xff] %vm606, %v1586
    %1603 = vst.msk [vmem:[%s1351 + $0x70] sm:$0xff] %vm606, %v1587
    %1604 = vst.msk [vmem:[%s1351 + $0x78] sm:$0xff] %vm606, %v1588
    %s1605 = scalar_lea.vmem %s0, 384
    %v1606 = vld [vmem:[%s1605] sm:$0xff]
    %v1607 = vld [vmem:[%s1605 + $0x8] sm:$0xff]
    %v1608 = vld [vmem:[%s1605 + $0x10] sm:$0xff]
    %v1609 = vld [vmem:[%s1605 + $0x18] sm:$0xff]
    %v1610 = vld [vmem:[%s1605 + $0x20] sm:$0xff]
    %v1611 = vld [vmem:[%s1605 + $0x28] sm:$0xff]
    %v1612 = vld [vmem:[%s1605 + $0x30] sm:$0xff]
    %v1613 = vld [vmem:[%s1605 + $0x38] sm:$0xff]
    %v1614 = vld [vmem:[%s1605 + $0x40] sm:$0xff]
    %v1615 = vld [vmem:[%s1605 + $0x48] sm:$0xff]
    %v1616 = vld [vmem:[%s1605 + $0x50] sm:$0xff]
    %v1617 = vld [vmem:[%s1605 + $0x58] sm:$0xff]
    %v1618 = vld [vmem:[%s1605 + $0x60] sm:$0xff]
    %v1619 = vld [vmem:[%s1605 + $0x68] sm:$0xff]
    %v1620 = vld [vmem:[%s1605 + $0x70] sm:$0xff]
    %v1621 = vld [vmem:[%s1605 + $0x78] sm:$0xff]
    %v1622 = vmul.f32 %v1606, %v1606
    %v1623 = vmul.f32 %v1607, %v1607
    %v1624 = vmul.f32 %v1608, %v1608
    %v1625 = vmul.f32 %v1609, %v1609
    %v1626 = vmul.f32 %v1610, %v1610
    %v1627 = vmul.f32 %v1611, %v1611
    %v1628 = vmul.f32 %v1612, %v1612
    %v1629 = vmul.f32 %v1613, %v1613
    %v1630 = vmul.f32 %v1614, %v1614
    %v1631 = vmul.f32 %v1615, %v1615
    %v1632 = vmul.f32 %v1616, %v1616
    %v1633 = vmul.f32 %v1617, %v1617
    %v1634 = vmul.f32 %v1618, %v1618
    %v1635 = vmul.f32 %v1619, %v1619
    %v1636 = vmul.f32 %v1620, %v1620
    %v1637 = vmul.f32 %v1621, %v1621
    %v1638 = vsel %vm164, %v1622, 0.0
    %v1639 = vsel %vm164, %v1623, 0.0
    %v1640 = vadd.f32 %v1638, %v1639
    %v1641 = vsel %vm164, %v1624, 0.0
    %v1642 = vadd.f32 %v1640, %v1641
    %v1643 = vsel %vm164, %v1625, 0.0
    %v1644 = vadd.f32 %v1642, %v1643
    %v1645 = vsel %vm164, %v1626, 0.0
    %v1646 = vadd.f32 %v1644, %v1645
    %v1647 = vsel %vm164, %v1627, 0.0
    %v1648 = vadd.f32 %v1646, %v1647
    %v1649 = vsel %vm164, %v1628, 0.0
    %v1650 = vadd.f32 %v1648, %v1649
    %v1651 = vsel %vm164, %v1629, 0.0
    %v1652 = vadd.f32 %v1650, %v1651
    %v1653 = vsel %vm164, %v1630, 0.0
    %v1654 = vadd.f32 %v1652, %v1653
    %v1655 = vsel %vm164, %v1631, 0.0
    %v1656 = vadd.f32 %v1654, %v1655
    %v1657 = vsel %vm164, %v1632, 0.0
    %v1658 = vadd.f32 %v1656, %v1657
    %v1659 = vsel %vm164, %v1633, 0.0
    %v1660 = vadd.f32 %v1658, %v1659
    %v1661 = vsel %vm164, %v1634, 0.0
    %v1662 = vadd.f32 %v1660, %v1661
    %v1663 = vsel %vm164, %v1635, 0.0
    %v1664 = vadd.f32 %v1662, %v1663
    %v1665 = vsel %vm164, %v1636, 0.0
    %v1666 = vadd.f32 %v1664, %v1665
    %v1667 = vsel %vm164, %v1637, 0.0
    %v1668 = vadd.f32 %v1666, %v1667
    %v1669 = vrot.slane %v1668, 4
    %v1670 = vadd.f32 %v1668, %v1669
    %v1671 = vrot.slane %v1670, 2
    %v1672 = vadd.f32 %v1670, %v1671
    %v1673 = vrot.slane %v1672, 1
    %v1674 = vadd.f32 %v1672, %v1673
    %v1675 = vmax.f32 %v1674, 1e-24
    %v1676 = vrsqrt.pop %v1675
    %1677 = vmatprep.subr.mxu0 0.0
    %1678 = vmatpush1.msra.mxu0 %v1606
    %1679 = vmatprep.subr.mxu0 0.0
    %1680 = vmatpush1.msra.mxu0 %v1607
    %1681 = vmatprep.subr.mxu0 0.0
    %1682 = vmatpush1.msra.mxu0 %v1608
    %1683 = vmatprep.subr.mxu0 0.0
    %1684 = vmatpush1.msra.mxu0 %v1609
    %1685 = vmatprep.subr.mxu0 0.0
    %1686 = vmatpush1.msra.mxu0 %v1610
    %1687 = vmatprep.subr.mxu0 0.0
    %1688 = vmatpush1.msra.mxu0 %v1611
    %1689 = vmatprep.subr.mxu0 0.0
    %1690 = vmatpush1.msra.mxu0 %v1612
    %1691 = vmatprep.subr.mxu0 0.0
    %1692 = vmatpush1.msra.mxu0 %v1613
    %1693 = vmatprep.subr.mxu0 0.0
    %1694 = vmatpush1.msra.mxu0 %v1614
    %1695 = vmatprep.subr.mxu0 0.0
    %1696 = vmatpush1.msra.mxu0 %v1615
    %1697 = vmatprep.subr.mxu0 0.0
    %1698 = vmatpush1.msra.mxu0 %v1616
    %1699 = vmatprep.subr.mxu0 0.0
    %1700 = vmatpush1.msra.mxu0 %v1617
    %1701 = vmatprep.subr.mxu0 0.0
    %1702 = vmatpush1.msra.mxu0 %v1618
    %1703 = vmatprep.subr.mxu0 0.0
    %1704 = vmatpush1.msra.mxu0 %v1619
    %1705 = vmatprep.subr.mxu0 0.0
    %1706 = vmatpush1.msra.mxu0 %v1620
    %1707 = vmatprep.subr.mxu0 0.0
    %1708 = vmatpush1.msra.mxu0 %v1621
    %1709 = vmatprep.subr.mxu0 0.0
    %1710 = vmatpush1.msra.mxu0 0.0
    %1711 = vmatprep.subr.mxu0 0.0
    %1712 = vmatpush1.msra.mxu0 0.0
    %1713 = vmatprep.subr.mxu0 0.0
    %1714 = vmatpush1.msra.mxu0 0.0
    %1715 = vmatprep.subr.mxu0 0.0
    %1716 = vmatpush1.msra.mxu0 0.0
    %1717 = vmatprep.subr.mxu0 0.0
    %1718 = vmatpush1.msra.mxu0 0.0
    %1719 = vmatprep.subr.mxu0 0.0
    %1720 = vmatpush1.msra.mxu0 0.0
    %1721 = vmatprep.subr.mxu0 0.0
    %1722 = vmatpush1.msra.mxu0 0.0
    %1723 = vmatprep.subr.mxu0 0.0
    %1724 = vmatpush1.msra.mxu0 0.0
    %1725 = vmatprep.subr.mxu0 0.0
    %1726 = vmatpush1.msra.mxu0 0.0
    %1727 = vmatprep.subr.mxu0 0.0
    %1728 = vmatpush1.msra.mxu0 0.0
    %1729 = vmatprep.subr.mxu0 0.0
    %1730 = vmatpush1.msra.mxu0 0.0
    %1731 = vmatprep.subr.mxu0 0.0
    %1732 = vmatpush1.msra.mxu0 0.0
    %1733 = vmatprep.subr.mxu0 0.0
    %1734 = vmatpush1.msra.mxu0 0.0
    %1735 = vmatprep.subr.mxu0 0.0
    %1736 = vmatpush1.msra.mxu0 0.0
    %1737 = vmatprep.subr.mxu0 0.0
    %1738 = vmatpush1.msra.mxu0 0.0
    %1739 = vmatprep.subr.mxu0 0.0
    %1740 = vmatpush1.msra.mxu0 0.0
    %1741 = vmatprep.mubr.f32.mxu0 0.0
    %1742 = vmatmul.mubr.f32.gmra.mrb[0].mxu0 %v104
    %v1743 = vpop.f32.mrb[0].mxu0
    %v1744 = vadd.f32 0.0, %v1743
    %v1745 = vpop.f32.mrb[0].mxu0
    %1746 = vmatprep.mubr.f32.mxu0 0.0
    %1747 = vmatmul.mubr.f32.gmra.mrb[0].mxu0 %v105
    %v1748 = vpop.f32.mrb[0].mxu0
    %v1749 = vadd.f32 0.0, %v1748
    %v1750 = vpop.f32.mrb[0].mxu0
    %1751 = vmatprep.mubr.f32.mxu0 0.0
    %1752 = vmatmul.mubr.f32.gmra.mrb[0].mxu0 %v106
    %v1753 = vpop.f32.mrb[0].mxu0
    %v1754 = vadd.f32 0.0, %v1753
    %v1755 = vpop.f32.mrb[0].mxu0
    %1756 = vmatprep.mubr.f32.mxu0 0.0
    %1757 = vmatmul.mubr.f32.gmra.mrb[0].mxu0 %v107
    %v1758 = vpop.f32.mrb[0].mxu0
    %v1759 = vadd.f32 0.0, %v1758
    %v1760 = vpop.f32.mrb[0].mxu0
    %1761 = vdwg.mxu0
    %v1762 = vmul.f32 %v1744, %v1676
    %v1763 = vmul.f32 %v1749, %v1676
    %v1764 = vmul.f32 %v1754, %v1676
    %v1765 = vmul.f32 %v1759, %v1676
    %v1766 = vadd.f32 %v1762, %v115
    %v1767 = vadd.f32 %v1763, %v120
    %v1768 = vadd.f32 %v1764, %v125
    %v1769 = vadd.f32 %v1765, %v130
    %v1770 = vsel %vm164, %v1766, -inf
    %v1771 = vsel %vm164, %v1767, -inf
    %v1772 = vsel %vm164, %v1768, -inf
    %v1773 = vsel %vm164, %v1769, -inf
    %v1774 = vmax.f32 %v1770, %v1771
    %v1775 = vmax.f32 %v1772, %v1773
    %v1776 = vmax.f32 %v1774, %v1775
    %v1777 = vrot.slane %v1776, 4
    %v1778 = vmax.f32 %v1776, %v1777
    %v1779 = vrot.slane %v1778, 2
    %v1780 = vmax.f32 %v1778, %v1779
    %v1781 = vrot.slane %v1780, 1
    %v1782 = vmax.f32 %v1780, %v1781
    %v1783 = vsub.f32 %v1766, %v1782
    %v1784 = vsub.f32 %v1767, %v1782
    %v1785 = vsub.f32 %v1768, %v1782
    %v1786 = vsub.f32 %v1769, %v1782
    %v1787 = vmul.f32 %v1783, 1.442695
    %v1788 = vpow.pop %v1787
    %v1789 = vmul.f32 %v1784, 1.442695
    %v1790 = vpow.pop %v1789
    %v1791 = vmul.f32 %v1785, 1.442695
    %v1792 = vpow.pop %v1791
    %v1793 = vmul.f32 %v1786, 1.442695
    %v1794 = vpow.pop %v1793
    %v1795 = vsel %vm164, %v1788, 0.0
    %v1796 = vsel %vm164, %v1790, 0.0
    %v1797 = vadd.f32 %v1795, %v1796
    %v1798 = vsel %vm164, %v1792, 0.0
    %v1799 = vadd.f32 %v1797, %v1798
    %v1800 = vsel %vm164, %v1794, 0.0
    %v1801 = vadd.f32 %v1799, %v1800
    %v1802 = vrot.slane %v1801, 4
    %v1803 = vadd.f32 %v1801, %v1802
    %v1804 = vrot.slane %v1803, 2
    %v1805 = vadd.f32 %v1803, %v1804
    %v1806 = vrot.slane %v1805, 1
    %v1807 = vadd.f32 %v1805, %v1806
    %v1808 = vrcp.pop %v1807
    %v1809 = vmul.f32 %v1788, %v1808
    %v1810 = vmul.f32 %v1790, %v1808
    %v1811 = vmul.f32 %v1792, %v1808
    %v1812 = vmul.f32 %v1794, %v1808
    %s1813 = scalar_lea.vmem [#allocation3], 96
    %v1814 = vld [vmem:[%s1813] sm:$0xff]
    %v1815 = vld [vmem:[%s1813 + $0x8] sm:$0xff]
    %v1816 = vld [vmem:[%s1813 + $0x10] sm:$0xff]
    %v1817 = vld [vmem:[%s1813 + $0x18] sm:$0xff]
    %v1818 = vsel %vm164, %v1809, 0.0
    %1819 = vadd.xlane.f32.xlu0 %v1818
    %v1820 = vpop.xlane.xlu0 %1819
    %v1821 = vsel %vm164, %v1810, 0.0
    %1822 = vadd.xlane.f32.xlu0 %v1821
    %v1823 = vpop.xlane.xlu0 %1822
    %v1824 = vsel %vm164, %v1811, 0.0
    %1825 = vadd.xlane.f32.xlu0 %v1824
    %v1826 = vpop.xlane.xlu0 %1825
    %v1827 = vsel %vm164, %v1812, 0.0
    %1828 = vadd.xlane.f32.xlu0 %v1827
    %v1829 = vpop.xlane.xlu0 %1828
    %v1830 = vadd.f32 %v1814, %v1820
    %v1831 = vadd.f32 %v1815, %v1823
    %v1832 = vadd.f32 %v1816, %v1826
    %v1833 = vadd.f32 %v1817, %v1829
    %1834 = vst.msk [vmem:[%s1813] sm:$0xff] %vm360, %v1830
    %1835 = vst.msk [vmem:[%s1813 + $0x8] sm:$0xff] %vm360, %v1831
    %1836 = vst.msk [vmem:[%s1813 + $0x10] sm:$0xff] %vm360, %v1832
    %1837 = vst.msk [vmem:[%s1813 + $0x18] sm:$0xff] %vm360, %v1833
    %v1838 = vmul.f32 %v1809, %v1676
    %v1839 = vmul.f32 %v1810, %v1676
    %v1840 = vmul.f32 %v1811, %v1676
    %v1841 = vmul.f32 %v1812, %v1676
    %s1842 = scalar_lea.vmem [#allocation2], 384
    %v1843 = vld [vmem:[%s1842] sm:$0xff]
    %v1844 = vld [vmem:[%s1842 + $0x8] sm:$0xff]
    %v1845 = vld [vmem:[%s1842 + $0x10] sm:$0xff]
    %v1846 = vld [vmem:[%s1842 + $0x18] sm:$0xff]
    %v1847 = vld [vmem:[%s1842 + $0x20] sm:$0xff]
    %v1848 = vld [vmem:[%s1842 + $0x28] sm:$0xff]
    %v1849 = vld [vmem:[%s1842 + $0x30] sm:$0xff]
    %v1850 = vld [vmem:[%s1842 + $0x38] sm:$0xff]
    %v1851 = vld [vmem:[%s1842 + $0x40] sm:$0xff]
    %v1852 = vld [vmem:[%s1842 + $0x48] sm:$0xff]
    %v1853 = vld [vmem:[%s1842 + $0x50] sm:$0xff]
    %v1854 = vld [vmem:[%s1842 + $0x58] sm:$0xff]
    %v1855 = vld [vmem:[%s1842 + $0x60] sm:$0xff]
    %v1856 = vld [vmem:[%s1842 + $0x68] sm:$0xff]
    %v1857 = vld [vmem:[%s1842 + $0x70] sm:$0xff]
    %v1858 = vld [vmem:[%s1842 + $0x78] sm:$0xff]
    %v1860 = vsel %vm164, %v1606, 0
    %v1863 = vsel %vm164, %v1607, 0
    %v1866 = vsel %vm164, %v1608, 0
    %v1869 = vsel %vm164, %v1609, 0
    %v1872 = vsel %vm164, %v1610, 0
    %v1875 = vsel %vm164, %v1611, 0
    %v1878 = vsel %vm164, %v1612, 0
    %v1881 = vsel %vm164, %v1613, 0
    %v1884 = vsel %vm164, %v1614, 0
    %v1887 = vsel %vm164, %v1615, 0
    %v1890 = vsel %vm164, %v1616, 0
    %v1893 = vsel %vm164, %v1617, 0
    %v1896 = vsel %vm164, %v1618, 0
    %v1899 = vsel %vm164, %v1619, 0
    %v1902 = vsel %vm164, %v1620, 0
    %v1905 = vsel %vm164, %v1621, 0
    %v1908 = vsel %vm164, %v1838, 0
    %v1911 = vsel %vm164, %v1839, 0
    %v1914 = vsel %vm164, %v1840, 0
    %v1917 = vsel %vm164, %v1841, 0
    %1919 = vmatprep.subr.mxu0 0.0
    %1920 = vmatpush1.xpose.msra.mxu0 %v1908
    %1921 = vmatprep.subr.mxu0 0.0
    %1922 = vmatpush1.xpose.msra.mxu0 %v1911
    %1923 = vmatprep.subr.mxu0 0.0
    %1924 = vmatpush1.xpose.msra.mxu0 %v1914
    %1925 = vmatprep.subr.mxu0 0.0
    %1926 = vmatpush1.xpose.msra.mxu0 %v1917
    %1927 = vmatprep.subr.mxu0 0.0
    %1928 = vmatpush1.xpose.msra.mxu0 0.0
    %1929 = vmatprep.subr.mxu0 0.0
    %1930 = vmatpush1.xpose.msra.mxu0 0.0
    %1931 = vmatprep.subr.mxu0 0.0
    %1932 = vmatpush1.xpose.msra.mxu0 0.0
    %1933 = vmatprep.subr.mxu0 0.0
    %1934 = vmatpush1.xpose.msra.mxu0 0.0
    %1935 = vmatprep.subr.mxu0 0.0
    %1936 = vmatpush1.xpose.msra.mxu0 0.0
    %1937 = vmatprep.subr.mxu0 0.0
    %1938 = vmatpush1.xpose.msra.mxu0 0.0
    %1939 = vmatprep.subr.mxu0 0.0
    %1940 = vmatpush1.xpose.msra.mxu0 0.0
    %1941 = vmatprep.subr.mxu0 0.0
    %1942 = vmatpush1.xpose.msra.mxu0 0.0
    %1943 = vmatprep.subr.mxu0 0.0
    %1944 = vmatpush1.xpose.msra.mxu0 0.0
    %1945 = vmatprep.subr.mxu0 0.0
    %1946 = vmatpush1.xpose.msra.mxu0 0.0
    %1947 = vmatprep.subr.mxu0 0.0
    %1948 = vmatpush1.xpose.msra.mxu0 0.0
    %1949 = vmatprep.subr.mxu0 0.0
    %1950 = vmatpush1.xpose.msra.mxu0 0.0
    %1951 = vmatprep.subr.mxu0 0.0
    %1952 = vmatpush1.xpose.msra.mxu0 0.0
    %1953 = vmatprep.subr.mxu0 0.0
    %1954 = vmatpush1.xpose.msra.mxu0 0.0
    %1955 = vmatprep.subr.mxu0 0.0
    %1956 = vmatpush1.xpose.msra.mxu0 0.0
    %1957 = vmatprep.subr.mxu0 0.0
    %1958 = vmatpush1.xpose.msra.mxu0 0.0
    %1959 = vmatprep.subr.mxu0 0.0
    %1960 = vmatpush1.xpose.msra.mxu0 0.0
    %1961 = vmatprep.subr.mxu0 0.0
    %1962 = vmatpush1.xpose.msra.mxu0 0.0
    %1963 = vmatprep.subr.mxu0 0.0
    %1964 = vmatpush1.xpose.msra.mxu0 0.0
    %1965 = vmatprep.subr.mxu0 0.0
    %1966 = vmatpush1.xpose.msra.mxu0 0.0
    %1967 = vmatprep.subr.mxu0 0.0
    %1968 = vmatpush1.xpose.msra.mxu0 0.0
    %1969 = vmatprep.subr.mxu0 0.0
    %1970 = vmatpush1.xpose.msra.mxu0 0.0
    %1971 = vmatprep.subr.mxu0 0.0
    %1972 = vmatpush1.xpose.msra.mxu0 0.0
    %1973 = vmatprep.subr.mxu0 0.0
    %1974 = vmatpush1.xpose.msra.mxu0 0.0
    %1975 = vmatprep.subr.mxu0 0.0
    %1976 = vmatpush1.xpose.msra.mxu0 0.0
    %1977 = vmatprep.subr.mxu0 0.0
    %1978 = vmatpush1.xpose.msra.mxu0 0.0
    %1979 = vmatprep.subr.mxu0 0.0
    %1980 = vmatpush1.xpose.msra.mxu0 0.0
    %1981 = vmatprep.subr.mxu0 0.0
    %1982 = vmatpush1.xpose.msra.mxu0 0.0
    %1983 = vmatprep.mubr.f32.mxu0 0.0
    %1984 = vmatmul.mubr.f32.gmra.mrb[0].mxu0 %v1860
    %v1985 = vpop.f32.mrb[0].mxu0
    %v1986 = vadd.f32 0.0, %v1985
    %v1987 = vpop.f32.mrb[0].mxu0
    %1988 = vmatprep.mubr.f32.mxu0 0.0
    %1989 = vmatmul.mubr.f32.gmra.mrb[0].mxu0 %v1863
    %v1990 = vpop.f32.mrb[0].mxu0
    %v1991 = vadd.f32 0.0, %v1990
    %v1992 = vpop.f32.mrb[0].mxu0
    %1993 = vmatprep.mubr.f32.mxu0 0.0
    %1994 = vmatmul.mubr.f32.gmra.mrb[0].mxu0 %v1866
    %v1995 = vpop.f32.mrb[0].mxu0
    %v1996 = vadd.f32 0.0, %v1995
    %v1997 = vpop.f32.mrb[0].mxu0
    %1998 = vmatprep.mubr.f32.mxu0 0.0
    %1999 = vmatmul.mubr.f32.gmra.mrb[0].mxu0 %v1869
    %v2000 = vpop.f32.mrb[0].mxu0
    %v2001 = vadd.f32 0.0, %v2000
    %v2002 = vpop.f32.mrb[0].mxu0
    %2003 = vmatprep.mubr.f32.mxu0 0.0
    %2004 = vmatmul.mubr.f32.gmra.mrb[0].mxu0 %v1872
    %v2005 = vpop.f32.mrb[0].mxu0
    %v2006 = vadd.f32 0.0, %v2005
    %v2007 = vpop.f32.mrb[0].mxu0
    %2008 = vmatprep.mubr.f32.mxu0 0.0
    %2009 = vmatmul.mubr.f32.gmra.mrb[0].mxu0 %v1875
    %v2010 = vpop.f32.mrb[0].mxu0
    %v2011 = vadd.f32 0.0, %v2010
    %v2012 = vpop.f32.mrb[0].mxu0
    %2013 = vmatprep.mubr.f32.mxu0 0.0
    %2014 = vmatmul.mubr.f32.gmra.mrb[0].mxu0 %v1878
    %v2015 = vpop.f32.mrb[0].mxu0
    %v2016 = vadd.f32 0.0, %v2015
    %v2017 = vpop.f32.mrb[0].mxu0
    %2018 = vmatprep.mubr.f32.mxu0 0.0
    %2019 = vmatmul.mubr.f32.gmra.mrb[0].mxu0 %v1881
    %v2020 = vpop.f32.mrb[0].mxu0
    %v2021 = vadd.f32 0.0, %v2020
    %v2022 = vpop.f32.mrb[0].mxu0
    %2023 = vmatprep.mubr.f32.mxu0 0.0
    %2024 = vmatmul.mubr.f32.gmra.mrb[0].mxu0 %v1884
    %v2025 = vpop.f32.mrb[0].mxu0
    %v2026 = vadd.f32 0.0, %v2025
    %v2027 = vpop.f32.mrb[0].mxu0
    %2028 = vmatprep.mubr.f32.mxu0 0.0
    %2029 = vmatmul.mubr.f32.gmra.mrb[0].mxu0 %v1887
    %v2030 = vpop.f32.mrb[0].mxu0
    %v2031 = vadd.f32 0.0, %v2030
    %v2032 = vpop.f32.mrb[0].mxu0
    %2033 = vmatprep.mubr.f32.mxu0 0.0
    %2034 = vmatmul.mubr.f32.gmra.mrb[0].mxu0 %v1890
    %v2035 = vpop.f32.mrb[0].mxu0
    %v2036 = vadd.f32 0.0, %v2035
    %v2037 = vpop.f32.mrb[0].mxu0
    %2038 = vmatprep.mubr.f32.mxu0 0.0
    %2039 = vmatmul.mubr.f32.gmra.mrb[0].mxu0 %v1893
    %v2040 = vpop.f32.mrb[0].mxu0
    %v2041 = vadd.f32 0.0, %v2040
    %v2042 = vpop.f32.mrb[0].mxu0
    %2043 = vmatprep.mubr.f32.mxu0 0.0
    %2044 = vmatmul.mubr.f32.gmra.mrb[0].mxu0 %v1896
    %v2045 = vpop.f32.mrb[0].mxu0
    %v2046 = vadd.f32 0.0, %v2045
    %v2047 = vpop.f32.mrb[0].mxu0
    %2048 = vmatprep.mubr.f32.mxu0 0.0
    %2049 = vmatmul.mubr.f32.gmra.mrb[0].mxu0 %v1899
    %v2050 = vpop.f32.mrb[0].mxu0
    %v2051 = vadd.f32 0.0, %v2050
    %v2052 = vpop.f32.mrb[0].mxu0
    %2053 = vmatprep.mubr.f32.mxu0 0.0
    %2054 = vmatmul.mubr.f32.gmra.mrb[0].mxu0 %v1902
    %v2055 = vpop.f32.mrb[0].mxu0
    %v2056 = vadd.f32 0.0, %v2055
    %v2057 = vpop.f32.mrb[0].mxu0
    %2058 = vmatprep.mubr.f32.mxu0 0.0
    %2059 = vmatmul.mubr.f32.gmra.mrb[0].mxu0 %v1905
    %v2060 = vpop.f32.mrb[0].mxu0
    %v2061 = vadd.f32 0.0, %v2060
    %v2062 = vpop.f32.mrb[0].mxu0
    %2063 = vdwg.mxu0
    %v2064 = vadd.f32 %v1843, %v1986
    %v2065 = vadd.f32 %v1844, %v1991
    %v2066 = vadd.f32 %v1845, %v1996
    %v2067 = vadd.f32 %v1846, %v2001
    %v2068 = vadd.f32 %v1847, %v2006
    %v2069 = vadd.f32 %v1848, %v2011
    %v2070 = vadd.f32 %v1849, %v2016
    %v2071 = vadd.f32 %v1850, %v2021
    %v2072 = vadd.f32 %v1851, %v2026
    %v2073 = vadd.f32 %v1852, %v2031
    %v2074 = vadd.f32 %v1853, %v2036
    %v2075 = vadd.f32 %v1854, %v2041
    %v2076 = vadd.f32 %v1855, %v2046
    %v2077 = vadd.f32 %v1856, %v2051
    %v2078 = vadd.f32 %v1857, %v2056
    %v2079 = vadd.f32 %v1858, %v2061
    %2080 = vst.msk [vmem:[%s1842] sm:$0xff] %vm606, %v2064
    %2081 = vst.msk [vmem:[%s1842 + $0x8] sm:$0xff] %vm606, %v2065
    %2082 = vst.msk [vmem:[%s1842 + $0x10] sm:$0xff] %vm606, %v2066
    %2083 = vst.msk [vmem:[%s1842 + $0x18] sm:$0xff] %vm606, %v2067
    %2084 = vst.msk [vmem:[%s1842 + $0x20] sm:$0xff] %vm606, %v2068
    %2085 = vst.msk [vmem:[%s1842 + $0x28] sm:$0xff] %vm606, %v2069
    %2086 = vst.msk [vmem:[%s1842 + $0x30] sm:$0xff] %vm606, %v2070
    %2087 = vst.msk [vmem:[%s1842 + $0x38] sm:$0xff] %vm606, %v2071
    %2088 = vst.msk [vmem:[%s1842 + $0x40] sm:$0xff] %vm606, %v2072
    %2089 = vst.msk [vmem:[%s1842 + $0x48] sm:$0xff] %vm606, %v2073
    %2090 = vst.msk [vmem:[%s1842 + $0x50] sm:$0xff] %vm606, %v2074
    %2091 = vst.msk [vmem:[%s1842 + $0x58] sm:$0xff] %vm606, %v2075
    %2092 = vst.msk [vmem:[%s1842 + $0x60] sm:$0xff] %vm606, %v2076
    %2093 = vst.msk [vmem:[%s1842 + $0x68] sm:$0xff] %vm606, %v2077
    %2094 = vst.msk [vmem:[%s1842 + $0x70] sm:$0xff] %vm606, %v2078
    %2095 = vst.msk [vmem:[%s1842 + $0x78] sm:$0xff] %vm606, %v2079
    // Predicated region
    $region22: #{tpu_custom_call.1} parent=1 // pred_check
      %p2096 = pneg %p18
    $region23: #{tpu_custom_call.1} parent=1 // pred_check_branch
      %2098 = sbr.rel (%p2096) target = $region25
    $region24: #{tpu_custom_call.1} parent=1 // pred_region
      %v2099 = vld [vmem:[%s3] sm:$0xff]
      %v2100 = vld [vmem:[%s3 + $0x8] sm:$0xff]
      %v2101 = vld [vmem:[%s3 + $0x10] sm:$0xff]
      %v2102 = vld [vmem:[%s3 + $0x18] sm:$0xff]
      %v2103 = vld [vmem:[#allocation2] sm:$0xff]
      %v2104 = vld [vmem:[#allocation2 + $0x8] sm:$0xff]
      %v2105 = vld [vmem:[#allocation2 + $0x10] sm:$0xff]
      %v2106 = vld [vmem:[#allocation2 + $0x18] sm:$0xff]
      %v2107 = vld [vmem:[#allocation2 + $0x20] sm:$0xff]
      %v2108 = vld [vmem:[#allocation2 + $0x28] sm:$0xff]
      %v2109 = vld [vmem:[#allocation2 + $0x30] sm:$0xff]
      %v2110 = vld [vmem:[#allocation2 + $0x38] sm:$0xff]
      %v2111 = vld [vmem:[#allocation2 + $0x40] sm:$0xff]
      %v2112 = vld [vmem:[#allocation2 + $0x48] sm:$0xff]
      %v2113 = vld [vmem:[#allocation2 + $0x50] sm:$0xff]
      %v2114 = vld [vmem:[#allocation2 + $0x58] sm:$0xff]
      %v2115 = vld [vmem:[#allocation2 + $0x60] sm:$0xff]
      %v2116 = vld [vmem:[#allocation2 + $0x68] sm:$0xff]
      %v2117 = vld [vmem:[#allocation2 + $0x70] sm:$0xff]
      %v2118 = vld [vmem:[#allocation2 + $0x78] sm:$0xff]
      %2119 = vxpose.xlu0.b32.start [1/16] %v2103, 128
      %2120 = vxpose.xlu0.b32.cont [2/16] %v2104, 128
      %2121 = vxpose.xlu0.b32.cont [3/16] %v2105, 128
      %2122 = vxpose.xlu0.b32.cont [4/16] %v2106, 128
      %2123 = vxpose.xlu0.b32.cont [5/16] %v2107, 128
      %2124 = vxpose.xlu0.b32.cont [6/16] %v2108, 128
      %2125 = vxpose.xlu0.b32.cont [7/16] %v2109, 128
      %2126 = vxpose.xlu0.b32.cont [8/16] %v2110, 128
      %2127 = vxpose.xlu0.b32.cont [9/16] %v2111, 128
      %2128 = vxpose.xlu0.b32.cont [10/16] %v2112, 128
      %2129 = vxpose.xlu0.b32.cont [11/16] %v2113, 128
      %2130 = vxpose.xlu0.b32.cont [12/16] %v2114, 128
      %2131 = vxpose.xlu0.b32.cont [13/16] %v2115, 128
      %2132 = vxpose.xlu0.b32.cont [14/16] %v2116, 128
      %2133 = vxpose.xlu0.b32.cont [15/16] %v2117, 128
      %2134 = vxpose.xlu0.b32.end [16/16] %v2118, 128
      %v2135 = vpop.trf.xlu0
      %v2136 = vpop.trf.xlu0
      %v2137 = vpop.trf.xlu0
      %v2138 = vpop.trf.xlu0
      %v2139 = vpop.trf.xlu0
      %v2140 = vpop.trf.xlu0
      %v2141 = vpop.trf.xlu0
      %v2142 = vpop.trf.xlu0
      %v2143 = vpop.trf.xlu0
      %v2144 = vpop.trf.xlu0
      %v2145 = vpop.trf.xlu0
      %v2146 = vpop.trf.xlu0
      %v2147 = vpop.trf.xlu0
      %v2148 = vpop.trf.xlu0
      %v2149 = vpop.trf.xlu0
      %v2150 = vpop.trf.xlu0
      %v2151 = vld [vmem:[#allocation3] sm:$0xff]
      %v2152 = vld [vmem:[#allocation3 + $0x8] sm:$0xff]
      %v2153 = vld [vmem:[#allocation3 + $0x10] sm:$0xff]
      %v2154 = vld [vmem:[#allocation3 + $0x18] sm:$0xff]
      %2156 = vset.pattern.permute.xlu0 0
      %2157 = vperm.xlu0 %2156, %v2151
      %v2158 = vpop.permute.xlu0 %2157
      %2161 = vset.pattern.permute.xlu0 0
      %2162 = vperm.xlu0 %2161, %v2152
      %v2163 = vpop.permute.xlu0 %2162
      %2166 = vset.pattern.permute.xlu0 0
      %2167 = vperm.xlu0 %2166, %v2153
      %v2168 = vpop.permute.xlu0 %2167
      %2171 = vset.pattern.permute.xlu0 0
      %2172 = vperm.xlu0 %2171, %v2154
      %v2173 = vpop.permute.xlu0 %2172
      %v2175 = vmul.f32 %v2099, %v2158
      %v2176 = vmul.f32 %v2100, %v2163
      %v2177 = vmul.f32 %v2101, %v2168
      %v2178 = vmul.f32 %v2102, %v2173
      %v2179 = vsub.f32 %v2135, %v2175
      %v2180 = vsub.f32 %v2136, %v2176
      %v2181 = vsub.f32 %v2137, %v2177
      %v2182 = vsub.f32 %v2138, %v2178
      %v2183 = vmul.f32 %v2179, %v2179
      %v2184 = vmul.f32 %v2180, %v2180
      %v2185 = vmul.f32 %v2181, %v2181
      %v2186 = vmul.f32 %v2182, %v2182
      %2187 = vadd.xlane.f32.xlu0 %v2183
      %v2188 = vpop.xlane.xlu0 %2187
      %2189 = vadd.xlane.f32.xlu0 %v2184
      %v2190 = vpop.xlane.xlu0 %2189
      %2191 = vadd.xlane.f32.xlu0 %v2185
      %v2192 = vpop.xlane.xlu0 %2191
      %2193 = vadd.xlane.f32.xlu0 %v2186
      %v2194 = vpop.xlane.xlu0 %2193
      %v2195 = vmax.f32 %v2188, 1e-24
      %v2196 = vmax.f32 %v2190, 1e-24
      %v2197 = vmax.f32 %v2192, 1e-24
      %v2198 = vmax.f32 %v2194, 1e-24
      %v2199 = vrsqrt.pop %v2195
      %v2200 = vrsqrt.pop %v2196
      %v2201 = vrsqrt.pop %v2197
      %v2202 = vrsqrt.pop %v2198
      %v2203 = vmul.f32 %v2179, %v2199
      %v2204 = vmul.f32 %v2180, %v2200
      %v2205 = vmul.f32 %v2181, %v2201
      %v2206 = vmul.f32 %v2182, %v2202
      %v2207 = vmul.f32 %v2203, %v2203
      %v2208 = vmul.f32 %v2204, %v2204
      %v2209 = vmul.f32 %v2205, %v2205
      %v2210 = vmul.f32 %v2206, %v2206
      %v2211 = vadd.f32 %v2207, %v2208
      %v2212 = vadd.f32 %v2211, %v2209
      %v2213 = vadd.f32 %v2212, %v2210
      %2214 = vadd.xlane.f32.xlu0 %v2213
      %v2215 = vpop.xlane.xlu0 %2214
      %v2216 = vrot.slane %v2215, 4
      %v2217 = vadd.f32 %v2215, %v2216
      %v2218 = vrot.slane %v2217, 2
      %v2219 = vadd.f32 %v2217, %v2218
      %v2220 = vrot.slane %v2219, 1
      %v2221 = vadd.f32 %v2219, %v2220
      %s2222 = vtos %v2221
      %v2223 = vstv %s2222
      %v2224 = vmax.f32 %v2223, 1e-24
      %v2225 = vrsqrt.pop %v2224
      %v2226 = vmul.f32 %v2203, %v2225
      %v2227 = vmul.f32 %v2204, %v2225
      %v2228 = vmul.f32 %v2205, %v2225
      %v2229 = vmul.f32 %v2206, %v2225
      %2230 = vst [vmem:[#allocation4] sm:$0xff] %v2226
      %2231 = vst [vmem:[#allocation4 + $0x8] sm:$0xff] %v2227
      %2232 = vst [vmem:[#allocation4 + $0x10] sm:$0xff] %v2228
      %2233 = vst [vmem:[#allocation4 + $0x18] sm:$0xff] %v2229
      %v2234 = vld [vmem:[%s860] sm:$0xff]
      %v2235 = vld [vmem:[%s860 + $0x8] sm:$0xff]
      %v2236 = vld [vmem:[%s860 + $0x10] sm:$0xff]
      %v2237 = vld [vmem:[%s860 + $0x18] sm:$0xff]
      %v2238 = vld [vmem:[%s860 + $0x20] sm:$0xff]
      %v2239 = vld [vmem:[%s860 + $0x28] sm:$0xff]
      %v2240 = vld [vmem:[%s860 + $0x30] sm:$0xff]
      %v2241 = vld [vmem:[%s860 + $0x38] sm:$0xff]
      %v2242 = vld [vmem:[%s860 + $0x40] sm:$0xff]
      %v2243 = vld [vmem:[%s860 + $0x48] sm:$0xff]
      %v2244 = vld [vmem:[%s860 + $0x50] sm:$0xff]
      %v2245 = vld [vmem:[%s860 + $0x58] sm:$0xff]
      %v2246 = vld [vmem:[%s860 + $0x60] sm:$0xff]
      %v2247 = vld [vmem:[%s860 + $0x68] sm:$0xff]
      %v2248 = vld [vmem:[%s860 + $0x70] sm:$0xff]
      %v2249 = vld [vmem:[%s860 + $0x78] sm:$0xff]
      %2250 = vxpose.xlu0.b32.start [1/16] %v2234, 128
      %2251 = vxpose.xlu0.b32.cont [2/16] %v2235, 128
      %2252 = vxpose.xlu0.b32.cont [3/16] %v2236, 128
      %2253 = vxpose.xlu0.b32.cont [4/16] %v2237, 128
      %2254 = vxpose.xlu0.b32.cont [5/16] %v2238, 128
      %2255 = vxpose.xlu0.b32.cont [6/16] %v2239, 128
      %2256 = vxpose.xlu0.b32.cont [7/16] %v2240, 128
      %2257 = vxpose.xlu0.b32.cont [8/16] %v2241, 128
      %2258 = vxpose.xlu0.b32.cont [9/16] %v2242, 128
      %2259 = vxpose.xlu0.b32.cont [10/16] %v2243, 128
      %2260 = vxpose.xlu0.b32.cont [11/16] %v2244, 128
      %2261 = vxpose.xlu0.b32.cont [12/16] %v2245, 128
      %2262 = vxpose.xlu0.b32.cont [13/16] %v2246, 128
      %2263 = vxpose.xlu0.b32.cont [14/16] %v2247, 128
      %2264 = vxpose.xlu0.b32.cont [15/16] %v2248, 128
      %2265 = vxpose.xlu0.b32.end [16/16] %v2249, 128
      %v2266 = vpop.trf.xlu0
      %v2267 = vpop.trf.xlu0
      %v2268 = vpop.trf.xlu0
      %v2269 = vpop.trf.xlu0
      %v2270 = vpop.trf.xlu0
      %v2271 = vpop.trf.xlu0
      %v2272 = vpop.trf.xlu0
      %v2273 = vpop.trf.xlu0
      %v2274 = vpop.trf.xlu0
      %v2275 = vpop.trf.xlu0
      %v2276 = vpop.trf.xlu0
      %v2277 = vpop.trf.xlu0
      %v2278 = vpop.trf.xlu0
      %v2279 = vpop.trf.xlu0
      %v2280 = vpop.trf.xlu0
      %v2281 = vpop.trf.xlu0
      %v2282 = vld [vmem:[%s831] sm:$0xff]
      %v2283 = vld [vmem:[%s831 + $0x8] sm:$0xff]
      %v2284 = vld [vmem:[%s831 + $0x10] sm:$0xff]
      %v2285 = vld [vmem:[%s831 + $0x18] sm:$0xff]
      %2287 = vset.pattern.permute.xlu0 0
      %2288 = vperm.xlu0 %2287, %v2282
      %v2289 = vpop.permute.xlu0 %2288
      %2292 = vset.pattern.permute.xlu0 0
      %2293 = vperm.xlu0 %2292, %v2283
      %v2294 = vpop.permute.xlu0 %2293
      %2297 = vset.pattern.permute.xlu0 0
      %2298 = vperm.xlu0 %2297, %v2284
      %v2299 = vpop.permute.xlu0 %2298
      %2302 = vset.pattern.permute.xlu0 0
      %2303 = vperm.xlu0 %2302, %v2285
      %v2304 = vpop.permute.xlu0 %2303
      %v2306 = vmul.f32 %v2099, %v2289
      %v2307 = vmul.f32 %v2100, %v2294
      %v2308 = vmul.f32 %v2101, %v2299
      %v2309 = vmul.f32 %v2102, %v2304
      %v2310 = vsub.f32 %v2266, %v2306
      %v2311 = vsub.f32 %v2267, %v2307
      %v2312 = vsub.f32 %v2268, %v2308
      %v2313 = vsub.f32 %v2269, %v2309
      %v2314 = vmul.f32 %v2310, %v2310
      %v2315 = vmul.f32 %v2311, %v2311
      %v2316 = vmul.f32 %v2312, %v2312
      %v2317 = vmul.f32 %v2313, %v2313
      %2318 = vadd.xlane.f32.xlu0 %v2314
      %v2319 = vpop.xlane.xlu0 %2318
      %2320 = vadd.xlane.f32.xlu0 %v2315
      %v2321 = vpop.xlane.xlu0 %2320
      %2322 = vadd.xlane.f32.xlu0 %v2316
      %v2323 = vpop.xlane.xlu0 %2322
      %2324 = vadd.xlane.f32.xlu0 %v2317
      %v2325 = vpop.xlane.xlu0 %2324
      %v2326 = vmax.f32 %v2319, 1e-24
      %v2327 = vmax.f32 %v2321, 1e-24
      %v2328 = vmax.f32 %v2323, 1e-24
      %v2329 = vmax.f32 %v2325, 1e-24
      %v2330 = vrsqrt.pop %v2326
      %v2331 = vrsqrt.pop %v2327
      %v2332 = vrsqrt.pop %v2328
      %v2333 = vrsqrt.pop %v2329
      %v2334 = vmul.f32 %v2310, %v2330
      %v2335 = vmul.f32 %v2311, %v2331
      %v2336 = vmul.f32 %v2312, %v2332
      %v2337 = vmul.f32 %v2313, %v2333
      %v2338 = vmul.f32 %v2334, %v2334
      %v2339 = vmul.f32 %v2335, %v2335
      %v2340 = vmul.f32 %v2336, %v2336
      %v2341 = vmul.f32 %v2337, %v2337
      %v2342 = vadd.f32 %v2338, %v2339
      %v2343 = vadd.f32 %v2342, %v2340
      %v2344 = vadd.f32 %v2343, %v2341
      %2345 = vadd.xlane.f32.xlu0 %v2344
      %v2346 = vpop.xlane.xlu0 %2345
      %v2347 = vrot.slane %v2346, 4
      %v2348 = vadd.f32 %v2346, %v2347
      %v2349 = vrot.slane %v2348, 2
      %v2350 = vadd.f32 %v2348, %v2349
      %v2351 = vrot.slane %v2350, 1
      %v2352 = vadd.f32 %v2350, %v2351
      %s2353 = vtos %v2352
      %v2354 = vstv %s2353
      %v2355 = vmax.f32 %v2354, 1e-24
      %v2356 = vrsqrt.pop %v2355
      %v2357 = vmul.f32 %v2334, %v2356
      %v2358 = vmul.f32 %v2335, %v2356
      %v2359 = vmul.f32 %v2336, %v2356
      %v2360 = vmul.f32 %v2337, %v2356
      %s2361 = scalar_lea.vmem [#allocation4], 32
      %2362 = vst [vmem:[%s2361] sm:$0xff] %v2357
      %2363 = vst [vmem:[%s2361 + $0x8] sm:$0xff] %v2358
      %2364 = vst [vmem:[%s2361 + $0x10] sm:$0xff] %v2359
      %2365 = vst [vmem:[%s2361 + $0x18] sm:$0xff] %v2360
      %v2366 = vld [vmem:[%s1351] sm:$0xff]
      %v2367 = vld [vmem:[%s1351 + $0x8] sm:$0xff]
      %v2368 = vld [vmem:[%s1351 + $0x10] sm:$0xff]
      %v2369 = vld [vmem:[%s1351 + $0x18] sm:$0xff]
      %v2370 = vld [vmem:[%s1351 + $0x20] sm:$0xff]
      %v2371 = vld [vmem:[%s1351 + $0x28] sm:$0xff]
      %v2372 = vld [vmem:[%s1351 + $0x30] sm:$0xff]
      %v2373 = vld [vmem:[%s1351 + $0x38] sm:$0xff]
      %v2374 = vld [vmem:[%s1351 + $0x40] sm:$0xff]
      %v2375 = vld [vmem:[%s1351 + $0x48] sm:$0xff]
      %v2376 = vld [vmem:[%s1351 + $0x50] sm:$0xff]
      %v2377 = vld [vmem:[%s1351 + $0x58] sm:$0xff]
      %v2378 = vld [vmem:[%s1351 + $0x60] sm:$0xff]
      %v2379 = vld [vmem:[%s1351 + $0x68] sm:$0xff]
      %v2380 = vld [vmem:[%s1351 + $0x70] sm:$0xff]
      %v2381 = vld [vmem:[%s1351 + $0x78] sm:$0xff]
      %2382 = vxpose.xlu0.b32.start [1/16] %v2366, 128
      %2383 = vxpose.xlu0.b32.cont [2/16] %v2367, 128
      %2384 = vxpose.xlu0.b32.cont [3/16] %v2368, 128
      %2385 = vxpose.xlu0.b32.cont [4/16] %v2369, 128
      %2386 = vxpose.xlu0.b32.cont [5/16] %v2370, 128
      %2387 = vxpose.xlu0.b32.cont [6/16] %v2371, 128
      %2388 = vxpose.xlu0.b32.cont [7/16] %v2372, 128
      %2389 = vxpose.xlu0.b32.cont [8/16] %v2373, 128
      %2390 = vxpose.xlu0.b32.cont [9/16] %v2374, 128
      %2391 = vxpose.xlu0.b32.cont [10/16] %v2375, 128
      %2392 = vxpose.xlu0.b32.cont [11/16] %v2376, 128
      %2393 = vxpose.xlu0.b32.cont [12/16] %v2377, 128
      %2394 = vxpose.xlu0.b32.cont [13/16] %v2378, 128
      %2395 = vxpose.xlu0.b32.cont [14/16] %v2379, 128
      %2396 = vxpose.xlu0.b32.cont [15/16] %v2380, 128
      %2397 = vxpose.xlu0.b32.end [16/16] %v2381, 128
      %v2398 = vpop.trf.xlu0
      %v2399 = vpop.trf.xlu0
      %v2400 = vpop.trf.xlu0
      %v2401 = vpop.trf.xlu0
      %v2402 = vpop.trf.xlu0
      %v2403 = vpop.trf.xlu0
      %v2404 = vpop.trf.xlu0
      %v2405 = vpop.trf.xlu0
      %v2406 = vpop.trf.xlu0
      %v2407 = vpop.trf.xlu0
      %v2408 = vpop.trf.xlu0
      %v2409 = vpop.trf.xlu0
      %v2410 = vpop.trf.xlu0
      %v2411 = vpop.trf.xlu0
      %v2412 = vpop.trf.xlu0
      %v2413 = vpop.trf.xlu0
      %v2414 = vld [vmem:[%s1322] sm:$0xff]
      %v2415 = vld [vmem:[%s1322 + $0x8] sm:$0xff]
      %v2416 = vld [vmem:[%s1322 + $0x10] sm:$0xff]
      %v2417 = vld [vmem:[%s1322 + $0x18] sm:$0xff]
      %2419 = vset.pattern.permute.xlu0 0
      %2420 = vperm.xlu0 %2419, %v2414
      %v2421 = vpop.permute.xlu0 %2420
      %2424 = vset.pattern.permute.xlu0 0
      %2425 = vperm.xlu0 %2424, %v2415
      %v2426 = vpop.permute.xlu0 %2425
      %2429 = vset.pattern.permute.xlu0 0
      %2430 = vperm.xlu0 %2429, %v2416
      %v2431 = vpop.permute.xlu0 %2430
      %2434 = vset.pattern.permute.xlu0 0
      %2435 = vperm.xlu0 %2434, %v2417
      %v2436 = vpop.permute.xlu0 %2435
      %v2438 = vmul.f32 %v2099, %v2421
      %v2439 = vmul.f32 %v2100, %v2426
      %v2440 = vmul.f32 %v2101, %v2431
      %v2441 = vmul.f32 %v2102, %v2436
      %v2442 = vsub.f32 %v2398, %v2438
      %v2443 = vsub.f32 %v2399, %v2439
      %v2444 = vsub.f32 %v2400, %v2440
      %v2445 = vsub.f32 %v2401, %v2441
      %v2446 = vmul.f32 %v2442, %v2442
      %v2447 = vmul.f32 %v2443, %v2443
      %v2448 = vmul.f32 %v2444, %v2444
      %v2449 = vmul.f32 %v2445, %v2445
      %2450 = vadd.xlane.f32.xlu0 %v2446
      %v2451 = vpop.xlane.xlu0 %2450
      %2452 = vadd.xlane.f32.xlu0 %v2447
      %v2453 = vpop.xlane.xlu0 %2452
      %2454 = vadd.xlane.f32.xlu0 %v2448
      %v2455 = vpop.xlane.xlu0 %2454
      %2456 = vadd.xlane.f32.xlu0 %v2449
      %v2457 = vpop.xlane.xlu0 %2456
      %v2458 = vmax.f32 %v2451, 1e-24
      %v2459 = vmax.f32 %v2453, 1e-24
      %v2460 = vmax.f32 %v2455, 1e-24
      %v2461 = vmax.f32 %v2457, 1e-24
      %v2462 = vrsqrt.pop %v2458
      %v2463 = vrsqrt.pop %v2459
      %v2464 = vrsqrt.pop %v2460
      %v2465 = vrsqrt.pop %v2461
      %v2466 = vmul.f32 %v2442, %v2462
      %v2467 = vmul.f32 %v2443, %v2463
      %v2468 = vmul.f32 %v2444, %v2464
      %v2469 = vmul.f32 %v2445, %v2465
      %v2470 = vmul.f32 %v2466, %v2466
      %v2471 = vmul.f32 %v2467, %v2467
      %v2472 = vmul.f32 %v2468, %v2468
      %v2473 = vmul.f32 %v2469, %v2469
      %v2474 = vadd.f32 %v2470, %v2471
      %v2475 = vadd.f32 %v2474, %v2472
      %v2476 = vadd.f32 %v2475, %v2473
      %2477 = vadd.xlane.f32.xlu0 %v2476
      %v2478 = vpop.xlane.xlu0 %2477
      %v2479 = vrot.slane %v2478, 4
      %v2480 = vadd.f32 %v2478, %v2479
      %v2481 = vrot.slane %v2480, 2
      %v2482 = vadd.f32 %v2480, %v2481
      %v2483 = vrot.slane %v2482, 1
      %v2484 = vadd.f32 %v2482, %v2483
      %s2485 = vtos %v2484
      %v2486 = vstv %s2485
      %v2487 = vmax.f32 %v2486, 1e-24
      %v2488 = vrsqrt.pop %v2487
      %v2489 = vmul.f32 %v2466, %v2488
      %v2490 = vmul.f32 %v2467, %v2488
      %v2491 = vmul.f32 %v2468, %v2488
      %v2492 = vmul.f32 %v2469, %v2488
      %s2493 = scalar_lea.vmem [#allocation4], 64
      %2494 = vst [vmem:[%s2493] sm:$0xff] %v2489
      %2495 = vst [vmem:[%s2493 + $0x8] sm:$0xff] %v2490
      %2496 = vst [vmem:[%s2493 + $0x10] sm:$0xff] %v2491
      %2497 = vst [vmem:[%s2493 + $0x18] sm:$0xff] %v2492
      %v2498 = vld [vmem:[%s1842] sm:$0xff]
      %v2499 = vld [vmem:[%s1842 + $0x8] sm:$0xff]
      %v2500 = vld [vmem:[%s1842 + $0x10] sm:$0xff]
      %v2501 = vld [vmem:[%s1842 + $0x18] sm:$0xff]
      %v2502 = vld [vmem:[%s1842 + $0x20] sm:$0xff]
      %v2503 = vld [vmem:[%s1842 + $0x28] sm:$0xff]
      %v2504 = vld [vmem:[%s1842 + $0x30] sm:$0xff]
      %v2505 = vld [vmem:[%s1842 + $0x38] sm:$0xff]
      %v2506 = vld [vmem:[%s1842 + $0x40] sm:$0xff]
      %v2507 = vld [vmem:[%s1842 + $0x48] sm:$0xff]
      %v2508 = vld [vmem:[%s1842 + $0x50] sm:$0xff]
      %v2509 = vld [vmem:[%s1842 + $0x58] sm:$0xff]
      %v2510 = vld [vmem:[%s1842 + $0x60] sm:$0xff]
      %v2511 = vld [vmem:[%s1842 + $0x68] sm:$0xff]
      %v2512 = vld [vmem:[%s1842 + $0x70] sm:$0xff]
      %v2513 = vld [vmem:[%s1842 + $0x78] sm:$0xff]
      %2514 = vxpose.xlu0.b32.start [1/16] %v2498, 128
      %2515 = vxpose.xlu0.b32.cont [2/16] %v2499, 128
      %2516 = vxpose.xlu0.b32.cont [3/16] %v2500, 128
      %2517 = vxpose.xlu0.b32.cont [4/16] %v2501, 128
      %2518 = vxpose.xlu0.b32.cont [5/16] %v2502, 128
      %2519 = vxpose.xlu0.b32.cont [6/16] %v2503, 128
      %2520 = vxpose.xlu0.b32.cont [7/16] %v2504, 128
      %2521 = vxpose.xlu0.b32.cont [8/16] %v2505, 128
      %2522 = vxpose.xlu0.b32.cont [9/16] %v2506, 128
      %2523 = vxpose.xlu0.b32.cont [10/16] %v2507, 128
      %2524 = vxpose.xlu0.b32.cont [11/16] %v2508, 128
      %2525 = vxpose.xlu0.b32.cont [12/16] %v2509, 128
      %2526 = vxpose.xlu0.b32.cont [13/16] %v2510, 128
      %2527 = vxpose.xlu0.b32.cont [14/16] %v2511, 128
      %2528 = vxpose.xlu0.b32.cont [15/16] %v2512, 128
      %2529 = vxpose.xlu0.b32.end [16/16] %v2513, 128
      %v2530 = vpop.trf.xlu0
      %v2531 = vpop.trf.xlu0
      %v2532 = vpop.trf.xlu0
      %v2533 = vpop.trf.xlu0
      %v2534 = vpop.trf.xlu0
      %v2535 = vpop.trf.xlu0
      %v2536 = vpop.trf.xlu0
      %v2537 = vpop.trf.xlu0
      %v2538 = vpop.trf.xlu0
      %v2539 = vpop.trf.xlu0
      %v2540 = vpop.trf.xlu0
      %v2541 = vpop.trf.xlu0
      %v2542 = vpop.trf.xlu0
      %v2543 = vpop.trf.xlu0
      %v2544 = vpop.trf.xlu0
      %v2545 = vpop.trf.xlu0
      %v2546 = vld [vmem:[%s1813] sm:$0xff]
      %v2547 = vld [vmem:[%s1813 + $0x8] sm:$0xff]
      %v2548 = vld [vmem:[%s1813 + $0x10] sm:$0xff]
      %v2549 = vld [vmem:[%s1813 + $0x18] sm:$0xff]
      %2551 = vset.pattern.permute.xlu0 0
      %2552 = vperm.xlu0 %2551, %v2546
      %v2553 = vpop.permute.xlu0 %2552
      %2556 = vset.pattern.permute.xlu0 0
      %2557 = vperm.xlu0 %2556, %v2547
      %v2558 = vpop.permute.xlu0 %2557
      %2561 = vset.pattern.permute.xlu0 0
      %2562 = vperm.xlu0 %2561, %v2548
      %v2563 = vpop.permute.xlu0 %2562
      %2566 = vset.pattern.permute.xlu0 0
      %2567 = vperm.xlu0 %2566, %v2549
      %v2568 = vpop.permute.xlu0 %2567
      %v2570 = vmul.f32 %v2099, %v2553
      %v2571 = vmul.f32 %v2100, %v2558
      %v2572 = vmul.f32 %v2101, %v2563
      %v2573 = vmul.f32 %v2102, %v2568
      %v2574 = vsub.f32 %v2530, %v2570
      %v2575 = vsub.f32 %v2531, %v2571
      %v2576 = vsub.f32 %v2532, %v2572
      %v2577 = vsub.f32 %v2533, %v2573
      %v2578 = vmul.f32 %v2574, %v2574
      %v2579 = vmul.f32 %v2575, %v2575
      %v2580 = vmul.f32 %v2576, %v2576
      %v2581 = vmul.f32 %v2577, %v2577
      %2582 = vadd.xlane.f32.xlu0 %v2578
      %v2583 = vpop.xlane.xlu0 %2582
      %2584 = vadd.xlane.f32.xlu0 %v2579
      %v2585 = vpop.xlane.xlu0 %2584
      %2586 = vadd.xlane.f32.xlu0 %v2580
      %v2587 = vpop.xlane.xlu0 %2586
      %2588 = vadd.xlane.f32.xlu0 %v2581
      %v2589 = vpop.xlane.xlu0 %2588
      %v2590 = vmax.f32 %v2583, 1e-24
      %v2591 = vmax.f32 %v2585, 1e-24
      %v2592 = vmax.f32 %v2587, 1e-24
      %v2593 = vmax.f32 %v2589, 1e-24
      %v2594 = vrsqrt.pop %v2590
      %v2595 = vrsqrt.pop %v2591
      %v2596 = vrsqrt.pop %v2592
      %v2597 = vrsqrt.pop %v2593
      %v2598 = vmul.f32 %v2574, %v2594
      %v2599 = vmul.f32 %v2575, %v2595
      %v2600 = vmul.f32 %v2576, %v2596
      %v2601 = vmul.f32 %v2577, %v2597
      %v2602 = vmul.f32 %v2598, %v2598
      %v2603 = vmul.f32 %v2599, %v2599
      %v2604 = vmul.f32 %v2600, %v2600
      %v2605 = vmul.f32 %v2601, %v2601
      %v2606 = vadd.f32 %v2602, %v2603
      %v2607 = vadd.f32 %v2606, %v2604
      %v2608 = vadd.f32 %v2607, %v2605
      %2609 = vadd.xlane.f32.xlu0 %v2608
      %v2610 = vpop.xlane.xlu0 %2609
      %v2611 = vrot.slane %v2610, 4
      %v2612 = vadd.f32 %v2610, %v2611
      %v2613 = vrot.slane %v2612, 2
      %v2614 = vadd.f32 %v2612, %v2613
      %v2615 = vrot.slane %v2614, 1
      %v2616 = vadd.f32 %v2614, %v2615
      %s2617 = vtos %v2616
      %v2618 = vstv %s2617
      %v2619 = vmax.f32 %v2618, 1e-24
      %v2620 = vrsqrt.pop %v2619
      %v2621 = vmul.f32 %v2598, %v2620
      %v2622 = vmul.f32 %v2599, %v2620
      %v2623 = vmul.f32 %v2600, %v2620
      %v2624 = vmul.f32 %v2601, %v2620
      %s2625 = scalar_lea.vmem [#allocation4], 96
      %2626 = vst [vmem:[%s2625] sm:$0xff] %v2621
      %2627 = vst [vmem:[%s2625 + $0x8] sm:$0xff] %v2622
      %2628 = vst [vmem:[%s2625 + $0x10] sm:$0xff] %v2623
      %2629 = vst [vmem:[%s2625 + $0x18] sm:$0xff] %v2624
    $region25: #{tpu_custom_call.1} parent=1 // pred_fallthru
      _
    // Predicated region
    $region26: #{tpu_custom_call.1} parent=1 // pred_check
      _
    $region27: #{tpu_custom_call.1} parent=1 // pred_check_branch
      %2631 = sbr.rel (0) target = $region29
    $region28: #{tpu_custom_call.1} parent=1 // pred_region
      %s2633 = ssub.s32 2048, 2048
      %2634 = vsyncadd [#allocation5], %s2633
      %s2635 = sshll.u32 [#allocation4], 4
      %s2636 = int_to_ptr.vmem [resolvable:$true] %s2635
      %2641 = dma.vmem_to_hbm [thread:$0]  %s2636, 2048, %s4, [#allocation5], 128, 128, 8
    $region29: #{tpu_custom_call.1} parent=1 // pred_fallthru
      _
    // Predicated region
    $region30: #{tpu_custom_call.1} parent=1 // pred_check
      _
    $region31: #{tpu_custom_call.1} parent=1 // pred_check_branch
      %2643 = sbr.rel (0) target = $region33
    $region32: #{tpu_custom_call.1} parent=1 // pred_region
      %2644 = dma.done [#allocation5], 2048
    $region33: #{tpu_custom_call.1} parent=1 // pred_fallthru
      _
    %2645 = vsyncpa [#allocation5], 1

</llo_original>
